<compile_context>
chip_gen: v5e
topology: v5e:2x2
jax: 0.10.0
libtpu: 0.0.40
codegen_flags: <defaults>
</compile_context>

<pallas_src>
import jax
import jax.numpy as jnp
from jax import lax
from jax.experimental import pallas as pl
from jax.experimental.pallas import tpu as pltpu


# ----------------------------------------------------------------------------
# Fused kernel: conv1+ReLU+pool1 -> conv2+ReLU+pool2 -> 3-layer MLP
# ----------------------------------------------------------------------------
def cifar10_fused_kernel(p1_ref, w1_ref, b1_ref, w2_ref, b2_ref,
                         w3_ref, b3_ref, w4_ref, b4_ref, w5_ref, b5_ref,
                         o_ref):
    T = p1_ref.shape[0]                 # images per grid step
    f32, bf16 = jnp.float32, jnp.bfloat16

    # ---- conv1 (3x3, 3->16) as a single GEMM over T images (+bias, +ReLU) ----
    # patch rows are ordered (t, i, j, po, qo) with (oh, ow) = (3*po+i, 3*qo+j)
    p1 = p1_ref[...].reshape(T * 900, 32)
    y1 = jnp.dot(p1, w1_ref[...], preferred_element_type=f32) + b1_ref[...]
    y1 = jnp.maximum(y1, 0.0)                                  # (T*900, 16) f32

    # ---- maxpool 3x3/3 fused: the 9 window positions sit on axis 1 ----
    h1 = jnp.max(y1.reshape(T, 9, 100, 16), axis=1)            # (T, 100, 16)
    h1 = h1.reshape(T, 10, 10, 16).astype(bf16)

    # ---- conv2 padding=1: zero-pad spatial dims to 12x12 (VMEM values) ----
    zr = jnp.zeros((T, 1, 10, 16), bf16)
    h1 = jnp.concatenate([zr, h1, zr], axis=1)                 # (T, 12, 10, 16)
    zc = jnp.zeros((T, 12, 1, 16), bf16)
    h1 = jnp.concatenate([zc, h1, zc], axis=2)                 # (T, 12, 12, 16)

    # ---- conv2 (4x4, 16->64): im2col built in-kernel (no HBM patch tensor).
    # Only the 8x8 output positions consumed by the 4x4/4 pool are computed.
    taps = [h1[:, dy:dy + 8, dx:dx + 8, :]
            for dy in range(4) for dx in range(4)]             # 16 x (T,8,8,16)
    p2 = jnp.concatenate(taps, axis=-1).reshape(T * 64, 256)   # features (dy,dx,ci)
    y2 = jnp.dot(p2, w2_ref[...], preferred_element_type=f32) + b2_ref[...]
    y2 = jnp.maximum(y2, 0.0).reshape(T, 8, 8, 64)             # f32

    # ---- maxpool 4x4/4 -> 2x2; flatten channels-last (p,q,c) order ----
    pooled = []
    for p in range(2):
        for q in range(2):
            blk = y2[:, 4 * p:4 * p + 4, 4 * q:4 * q + 4, :].reshape(T, 16, 64)
            pooled.append(jnp.max(blk, axis=1))                # (T, 64)
    feat = jnp.concatenate(pooled, axis=-1).astype(bf16)       # (T, 256)

    # ---- classifier (w3 columns pre-permuted to (p,q,c); 192 padded to 256) ----
    h = jnp.dot(feat, w3_ref[...], preferred_element_type=f32) + b3_ref[...]
    h = jnp.maximum(h, 0.0).astype(bf16)
    h = jnp.dot(h, w4_ref[...], preferred_element_type=f32) + b4_ref[...]
    h = jnp.maximum(h, 0.0).astype(bf16)
    out = jnp.dot(h, w5_ref[...], preferred_element_type=f32) + b5_ref[...]
    o_ref[...] = out.astype(o_ref.dtype)                       # (T, 128) lane-dense


# ----------------------------------------------------------------------------
# Wrapper-side layout helpers (pure data movement, no FLOPs)
# ----------------------------------------------------------------------------
def _conv1_patches(x_nhwc_bf16):
    # (B,32,32,3) -> (B,900,32): features (dy,dx,ci) padded 27->32,
    # rows ordered (i, j, po, qo) so pool1 is a 9-way max over axis 1.
    B = x_nhwc_bf16.shape[0]
    cols = [x_nhwc_bf16[:, dy:dy + 30, dx:dx + 30, :]
            for dy in range(3) for dx in range(3)]
    pat = jnp.concatenate(cols, axis=-1)                        # (B,30,30,27)
    pat = jnp.pad(pat, ((0, 0), (0, 0), (0, 0), (0, 5)))        # K 27 -> 32
    pat = pat.reshape(B, 10, 3, 10, 3, 32).transpose(0, 2, 4, 1, 3, 5)
    return pat.reshape(B, 900, 32)


# ----------------------------------------------------------------------------
# Full forward pass (same semantics as the PyTorch CIFAR10 module)
# ----------------------------------------------------------------------------
def cifar10_forward(x_nchw, params):
    w1, b1, w2, b2, w3, b3, w4, b4, w5, b5 = params
    bf16, f32 = jnp.bfloat16, jnp.float32
    B = x_nchw.shape[0]

    # Images per grid step; keeps grid >= 2 whenever B >= 2 (v7x megacore),
    # per-step VMEM footprint ~2 MB at T=8 (safe for v7x 32 MiB scoped limit).
    T = max(1, min(8, B // 2))
    nt = -(-B // T)
    Bp = nt * T

    xb = x_nchw.astype(bf16).transpose(0, 2, 3, 1)              # (B,32,32,3)
    if Bp != B:
        xb = jnp.pad(xb, ((0, Bp - B), (0, 0), (0, 0), (0, 0)))
    p1 = _conv1_patches(xb)                                     # (Bp, 900, 32)

    # Weights: transposed / permuted / zero-padded in the wrapper (layout only).
    w1t = jnp.pad(w1.transpose(2, 3, 1, 0).reshape(27, 16),
                  ((0, 5), (0, 0))).astype(bf16)                # (32, 16)
    b1r = b1.reshape(1, 16).astype(f32)
    w2t = w2.transpose(2, 3, 1, 0).reshape(256, 64).astype(bf16)  # (256, 64), (dy,dx,ci)
    b2r = b2.reshape(1, 64).astype(f32)
    # permute w3 columns from torch (c,p,q) flatten order to the kernel's (p,q,c)
    w3t = (w3.reshape(384, 64, 2, 2).transpose(0, 2, 3, 1)
             .reshape(384, 256).T.astype(bf16))                 # (256, 384)
    b3r = b3.reshape(1, 384).astype(f32)
    w4t = jnp.pad(w4.T, ((0, 0), (0, 64))).astype(bf16)         # (384, 256) lane-dense
    b4r = jnp.pad(b4, (0, 64)).reshape(1, 256).astype(f32)
    w5t = jnp.pad(w5.T, ((0, 64), (0, 118))).astype(bf16)       # (256, 128) lane-dense
    b5r = jnp.pad(b5, (0, 118)).reshape(1, 128).astype(f32)

    flops = Bp * (2 * 900 * 27 * 16 + 2 * 64 * 256 * 64
                  + 2 * (256 * 384 + 384 * 192 + 192 * 10))
    bytes_accessed = (p1.size * 2
                      + (w1t.size + w2t.size + w3t.size + w4t.size + w5t.size) * 2
                      + (b1r.size + b2r.size + b3r.size + b4r.size + b5r.size) * 4
                      + Bp * 128 * 4)

    const2 = lambda b: (0, 0)
    out = pl.pallas_call(
        cifar10_fused_kernel,
        out_shape=jax.ShapeDtypeStruct((nt, T, 128), f32),
        grid=(nt,),
        in_specs=[
            pl.BlockSpec((T, 900, 32), lambda b: (b, 0, 0)),    # batch-tiled input stream
            pl.BlockSpec((32, 16), const2),                     # VMEM-resident weights
            pl.BlockSpec((1, 16), const2),
            pl.BlockSpec((256, 64), const2),
            pl.BlockSpec((1, 64), const2),
            pl.BlockSpec((256, 384), const2),
            pl.BlockSpec((1, 384), const2),
            pl.BlockSpec((384, 256), const2),
            pl.BlockSpec((1, 256), const2),
            pl.BlockSpec((256, 128), const2),
            pl.BlockSpec((1, 128), const2),
        ],
        out_specs=pl.BlockSpec((None, T, 128), lambda b: (b, 0, 0)),
        compiler_params=pltpu.CompilerParams(dimension_semantics=("parallel",)),
        cost_estimate=pl.CostEstimate(flops=flops, transcendentals=0,
                                      bytes_accessed=bytes_accessed),
    )(p1, w1t, b1r, w2t, b2r, w3t, b3r, w4t, b4r, w5t, b5r)

    # strip batch padding and the lane padding (128 -> 10 classes)
    return out.reshape(Bp, 128)[:B, :10]


# ----------------------------------------------------------------------------
# Pure-JAX reference (mirrors the kernel's bf16 rounding points)
# ----------------------------------------------------------------------------
def reference_forward(x, params):
    w1, b1, w2, b2, w3, b3, w4, b4, w5, b5 = params
    q = lambda a: a.astype(jnp.bfloat16).astype(jnp.float32)
    P = lax.Precision.HIGHEST
    dn = ("NCHW", "OIHW", "NCHW")

    y = lax.conv_general_dilated(q(x), q(w1), (1, 1), "VALID",
                                 dimension_numbers=dn, precision=P)
    y = q(jnp.maximum(y + b1[None, :, None, None], 0.0))
    y = lax.reduce_window(y, -jnp.inf, lax.max, (1, 1, 3, 3), (1, 1, 3, 3), "VALID")

    y = lax.conv_general_dilated(y, q(w2), (1, 1), ((1, 1), (1, 1)),
                                 dimension_numbers=dn, precision=P)
    y = q(jnp.maximum(y + b2[None, :, None, None], 0.0))
    y = lax.reduce_window(y, -jnp.inf, lax.max, (1, 1, 4, 4), (1, 1, 4, 4), "VALID")

    feat = y.reshape(y.shape[0], 256)
    h = jnp.maximum(jnp.dot(q(feat), q(w3).T, precision=P) + b3, 0.0)
    h = jnp.maximum(jnp.dot(q(h), q(w4).T, precision=P) + b4, 0.0)
    return jnp.dot(q(h), q(w5).T, precision=P) + b5


if __name__ == "__main__":
    key = jax.random.PRNGKey(0)
    ks = jax.random.split(key, 11)
    B = 2
    x = jax.random.normal(ks[0], (B, 3, 32, 32), jnp.float32)

    def uinit(k, shape, fan_in):
        bound = 1.0 / jnp.sqrt(float(fan_in))
        return jax.random.uniform(k, shape, jnp.float32, -bound, bound)

    # PyTorch-default-style U(-1/sqrt(fan_in), 1/sqrt(fan_in)) init, PyTorch layouts.
    w1 = uinit(ks[1], (16, 3, 3, 3), 27);    b1 = uinit(ks[2], (16,), 27)
    w2 = uinit(ks[3], (64, 16, 4, 4), 256);  b2 = uinit(ks[4], (64,), 256)
    w3 = uinit(ks[5], (384, 256), 256);      b3 = uinit(ks[6], (384,), 256)
    w4 = uinit(ks[7], (192, 384), 384);      b4 = uinit(ks[8], (192,), 384)
    w5 = uinit(ks[9], (10, 192), 192);       b5 = uinit(ks[10], (10,), 192)
    params = (w1, b1, w2, b2, w3, b3, w4, b4, w5, b5)

    fwd = jax.jit(cifar10_forward)
    out = fwd(x, params)
    jax.block_until_ready(out)

    ref = reference_forward(x, params)
    assert out.shape == (B, 10)
    assert jnp.allclose(out, ref, atol=2e-3, rtol=2e-3), float(jnp.max(jnp.abs(out - ref)))
    print("KERNEL_OK")
</pallas_src>

<mosaic_0001>
module attributes {stable_mosaic.version = 11 : i64} {
  func.func @cifar10_fused_kernel(%arg0: i32, %arg1: memref<1x900x32xbf16, #tpu.memory_space<vmem>>, %arg2: memref<32x16xbf16, #tpu.memory_space<vmem>>, %arg3: memref<1x16xf32, #tpu.memory_space<vmem>>, %arg4: memref<256x64xbf16, #tpu.memory_space<vmem>>, %arg5: memref<1x64xf32, #tpu.memory_space<vmem>>, %arg6: memref<256x384xbf16, #tpu.memory_space<vmem>>, %arg7: memref<1x384xf32, #tpu.memory_space<vmem>>, %arg8: memref<384x256xbf16, #tpu.memory_space<vmem>>, %arg9: memref<1x256xf32, #tpu.memory_space<vmem>>, %arg10: memref<256x128xbf16, #tpu.memory_space<vmem>>, %arg11: memref<1x128xf32, #tpu.memory_space<vmem>>, %arg12: memref<1x1x128xf32, #tpu.memory_space<vmem>>) attributes {dimension_semantics = [#tpu.dimension_semantics<parallel>], iteration_bounds = array<i64: 2>, scalar_prefetch = 0 : i64, scratch_operands = 0 : i64, tpu.core_type = #tpu.core_type<tc>, window_params = [{transform_indices = @transform_0, window_bounds = array<i64: 1, 900, 32>}, {pipeline_mode = #tpu.pipeline_mode<synchronous>, transform_indices = @transform_1, window_bounds = array<i64: 32, 16>}, {pipeline_mode = #tpu.pipeline_mode<synchronous>, transform_indices = @transform_2, window_bounds = array<i64: 1, 16>}, {pipeline_mode = #tpu.pipeline_mode<synchronous>, transform_indices = @transform_3, window_bounds = array<i64: 256, 64>}, {pipeline_mode = #tpu.pipeline_mode<synchronous>, transform_indices = @transform_4, window_bounds = array<i64: 1, 64>}, {pipeline_mode = #tpu.pipeline_mode<synchronous>, transform_indices = @transform_5, window_bounds = array<i64: 256, 384>}, {pipeline_mode = #tpu.pipeline_mode<synchronous>, transform_indices = @transform_6, window_bounds = array<i64: 1, 384>}, {pipeline_mode = #tpu.pipeline_mode<synchronous>, transform_indices = @transform_7, window_bounds = array<i64: 384, 256>}, {pipeline_mode = #tpu.pipeline_mode<synchronous>, transform_indices = @transform_8, window_bounds = array<i64: 1, 256>}, {pipeline_mode = #tpu.pipeline_mode<synchronous>, transform_indices = @transform_9, window_bounds = array<i64: 256, 128>}, {pipeline_mode = #tpu.pipeline_mode<synchronous>, transform_indices = @transform_10, window_bounds = array<i64: 1, 128>}, {transform_indices = @transform_11, window_bounds = array<i64: 1, 1, 128>}]} {
    %c0 = arith.constant 0 : index
    %c0_0 = arith.constant 0 : index
    %c0_1 = arith.constant 0 : index
    %0 = vector.load %arg1[%c0, %c0_0, %c0_1] : memref<1x900x32xbf16, #tpu.memory_space<vmem>>, vector<1x900x32xbf16>
    %1 = vector.shape_cast %0 : vector<1x900x32xbf16> to vector<900x32xbf16>
    %c0_2 = arith.constant 0 : index
    %c0_3 = arith.constant 0 : index
    %2 = vector.load %arg2[%c0_2, %c0_3] : memref<32x16xbf16, #tpu.memory_space<vmem>>, vector<32x16xbf16>
    %cst = arith.constant dense<0.000000e+00> : vector<900x16xf32>
    %3 = tpu.matmul %1, %2, %cst {dimension_numbers = #tpu.dot_dimension_numbers<[1], [0], [0], [1], [0, 0, 1, 1], [], []>} : vector<900x32xbf16>, vector<32x16xbf16>, vector<900x16xf32> -> vector<900x16xf32>
    %c0_4 = arith.constant 0 : index
    %c0_5 = arith.constant 0 : index
    %4 = vector.load %arg3[%c0_4, %c0_5] : memref<1x16xf32, #tpu.memory_space<vmem>>, vector<1x16xf32>
    %5 = vector.broadcast %4 : vector<1x16xf32> to vector<900x16xf32>
    %6 = arith.addf %3, %5 : vector<900x16xf32>
    %cst_6 = arith.constant 0.000000e+00 : f32
    %7 = vector.broadcast %cst_6 : f32 to vector<900x16xf32>
    %8 = arith.maximumf %6, %7 : vector<900x16xf32>
    %9 = vector.shape_cast %8 : vector<900x16xf32> to vector<1x9x100x16xf32>
    %cst_7 = arith.constant dense<0xFF800000> : vector<1x100x16xf32>
    %10 = vector.multi_reduction <maximumf>, %9, %cst_7 [1] : vector<1x9x100x16xf32> to vector<1x100x16xf32>
    %11 = vector.shape_cast %10 : vector<1x100x16xf32> to vector<1x10x10x16xf32>
    %12 = arith.truncf %11 : vector<1x10x10x16xf32> to vector<1x10x10x16xbf16>
    %cst_8 = arith.constant 0.000000e+00 : bf16
    %13 = vector.broadcast %cst_8 : bf16 to vector<1x1x10x16xbf16>
    %14 = tpu.concatenate %13, %12, %13 in 1 : vector<1x1x10x16xbf16>, vector<1x10x10x16xbf16>, vector<1x1x10x16xbf16> -> vector<1x12x10x16xbf16>
    %cst_9 = arith.constant 0.000000e+00 : bf16
    %15 = vector.broadcast %cst_9 : bf16 to vector<1x12x1x16xbf16>
    %16 = tpu.concatenate %15, %14, %15 in 2 : vector<1x12x1x16xbf16>, vector<1x12x10x16xbf16>, vector<1x12x1x16xbf16> -> vector<1x12x12x16xbf16>
    %17 = vector.extract_strided_slice %16 {offsets = [0, 0, 0, 0], sizes = [1, 8, 8, 16], strides = [1, 1, 1, 1]} : vector<1x12x12x16xbf16> to vector<1x8x8x16xbf16>
    %18 = vector.extract_strided_slice %16 {offsets = [0, 0, 1, 0], sizes = [1, 8, 8, 16], strides = [1, 1, 1, 1]} : vector<1x12x12x16xbf16> to vector<1x8x8x16xbf16>
    %19 = vector.extract_strided_slice %16 {offsets = [0, 0, 2, 0], sizes = [1, 8, 8, 16], strides = [1, 1, 1, 1]} : vector<1x12x12x16xbf16> to vector<1x8x8x16xbf16>
    %20 = vector.extract_strided_slice %16 {offsets = [0, 0, 3, 0], sizes = [1, 8, 8, 16], strides = [1, 1, 1, 1]} : vector<1x12x12x16xbf16> to vector<1x8x8x16xbf16>
    %21 = vector.extract_strided_slice %16 {offsets = [0, 1, 0, 0], sizes = [1, 8, 8, 16], strides = [1, 1, 1, 1]} : vector<1x12x12x16xbf16> to vector<1x8x8x16xbf16>
    %22 = vector.extract_strided_slice %16 {offsets = [0, 1, 1, 0], sizes = [1, 8, 8, 16], strides = [1, 1, 1, 1]} : vector<1x12x12x16xbf16> to vector<1x8x8x16xbf16>
    %23 = vector.extract_strided_slice %16 {offsets = [0, 1, 2, 0], sizes = [1, 8, 8, 16], strides = [1, 1, 1, 1]} : vector<1x12x12x16xbf16> to vector<1x8x8x16xbf16>
    %24 = vector.extract_strided_slice %16 {offsets = [0, 1, 3, 0], sizes = [1, 8, 8, 16], strides = [1, 1, 1, 1]} : vector<1x12x12x16xbf16> to vector<1x8x8x16xbf16>
    %25 = vector.extract_strided_slice %16 {offsets = [0, 2, 0, 0], sizes = [1, 8, 8, 16], strides = [1, 1, 1, 1]} : vector<1x12x12x16xbf16> to vector<1x8x8x16xbf16>
    %26 = vector.extract_strided_slice %16 {offsets = [0, 2, 1, 0], sizes = [1, 8, 8, 16], strides = [1, 1, 1, 1]} : vector<1x12x12x16xbf16> to vector<1x8x8x16xbf16>
    %27 = vector.extract_strided_slice %16 {offsets = [0, 2, 2, 0], sizes = [1, 8, 8, 16], strides = [1, 1, 1, 1]} : vector<1x12x12x16xbf16> to vector<1x8x8x16xbf16>
    %28 = vector.extract_strided_slice %16 {offsets = [0, 2, 3, 0], sizes = [1, 8, 8, 16], strides = [1, 1, 1, 1]} : vector<1x12x12x16xbf16> to vector<1x8x8x16xbf16>
    %29 = vector.extract_strided_slice %16 {offsets = [0, 3, 0, 0], sizes = [1, 8, 8, 16], strides = [1, 1, 1, 1]} : vector<1x12x12x16xbf16> to vector<1x8x8x16xbf16>
    %30 = vector.extract_strided_slice %16 {offsets = [0, 3, 1, 0], sizes = [1, 8, 8, 16], strides = [1, 1, 1, 1]} : vector<1x12x12x16xbf16> to vector<1x8x8x16xbf16>
    %31 = vector.extract_strided_slice %16 {offsets = [0, 3, 2, 0], sizes = [1, 8, 8, 16], strides = [1, 1, 1, 1]} : vector<1x12x12x16xbf16> to vector<1x8x8x16xbf16>
    %32 = vector.extract_strided_slice %16 {offsets = [0, 3, 3, 0], sizes = [1, 8, 8, 16], strides = [1, 1, 1, 1]} : vector<1x12x12x16xbf16> to vector<1x8x8x16xbf16>
    %33 = tpu.concatenate %17, %18, %19, %20, %21, %22, %23, %24, %25, %26, %27, %28, %29, %30, %31, %32 in 3 : vector<1x8x8x16xbf16>, vector<1x8x8x16xbf16>, vector<1x8x8x16xbf16>, vector<1x8x8x16xbf16>, vector<1x8x8x16xbf16>, vector<1x8x8x16xbf16>, vector<1x8x8x16xbf16>, vector<1x8x8x16xbf16>, vector<1x8x8x16xbf16>, vector<1x8x8x16xbf16>, vector<1x8x8x16xbf16>, vector<1x8x8x16xbf16>, vector<1x8x8x16xbf16>, vector<1x8x8x16xbf16>, vector<1x8x8x16xbf16>, vector<1x8x8x16xbf16> -> vector<1x8x8x256xbf16>
    %34 = vector.shape_cast %33 : vector<1x8x8x256xbf16> to vector<64x256xbf16>
    %c0_10 = arith.constant 0 : index
    %c0_11 = arith.constant 0 : index
    %35 = vector.load %arg4[%c0_10, %c0_11] : memref<256x64xbf16, #tpu.memory_space<vmem>>, vector<256x64xbf16>
    %cst_12 = arith.constant dense<0.000000e+00> : vector<64x64xf32>
    %36 = tpu.matmul %34, %35, %cst_12 {dimension_numbers = #tpu.dot_dimension_numbers<[1], [0], [0], [1], [0, 0, 1, 1], [], []>} : vector<64x256xbf16>, vector<256x64xbf16>, vector<64x64xf32> -> vector<64x64xf32>
    %c0_13 = arith.constant 0 : index
    %c0_14 = arith.constant 0 : index
    %37 = vector.load %arg5[%c0_13, %c0_14] : memref<1x64xf32, #tpu.memory_space<vmem>>, vector<1x64xf32>
    %38 = vector.broadcast %37 : vector<1x64xf32> to vector<64x64xf32>
    %39 = arith.addf %36, %38 : vector<64x64xf32>
    %cst_15 = arith.constant 0.000000e+00 : f32
    %40 = vector.broadcast %cst_15 : f32 to vector<64x64xf32>
    %41 = arith.maximumf %39, %40 : vector<64x64xf32>
    %42 = vector.shape_cast %41 : vector<64x64xf32> to vector<1x8x8x64xf32>
    %43 = vector.extract_strided_slice %42 {offsets = [0, 0, 0, 0], sizes = [1, 4, 4, 64], strides = [1, 1, 1, 1]} : vector<1x8x8x64xf32> to vector<1x4x4x64xf32>
    %44 = vector.shape_cast %43 : vector<1x4x4x64xf32> to vector<1x16x64xf32>
    %cst_16 = arith.constant dense<0xFF800000> : vector<1x64xf32>
    %45 = vector.multi_reduction <maximumf>, %44, %cst_16 [1] : vector<1x16x64xf32> to vector<1x64xf32>
    %46 = vector.extract_strided_slice %42 {offsets = [0, 0, 4, 0], sizes = [1, 4, 4, 64], strides = [1, 1, 1, 1]} : vector<1x8x8x64xf32> to vector<1x4x4x64xf32>
    %47 = vector.shape_cast %46 : vector<1x4x4x64xf32> to vector<1x16x64xf32>
    %cst_17 = arith.constant dense<0xFF800000> : vector<1x64xf32>
    %48 = vector.multi_reduction <maximumf>, %47, %cst_17 [1] : vector<1x16x64xf32> to vector<1x64xf32>
    %49 = vector.extract_strided_slice %42 {offsets = [0, 4, 0, 0], sizes = [1, 4, 4, 64], strides = [1, 1, 1, 1]} : vector<1x8x8x64xf32> to vector<1x4x4x64xf32>
    %50 = vector.shape_cast %49 : vector<1x4x4x64xf32> to vector<1x16x64xf32>
    %cst_18 = arith.constant dense<0xFF800000> : vector<1x64xf32>
    %51 = vector.multi_reduction <maximumf>, %50, %cst_18 [1] : vector<1x16x64xf32> to vector<1x64xf32>
    %52 = vector.extract_strided_slice %42 {offsets = [0, 4, 4, 0], sizes = [1, 4, 4, 64], strides = [1, 1, 1, 1]} : vector<1x8x8x64xf32> to vector<1x4x4x64xf32>
    %53 = vector.shape_cast %52 : vector<1x4x4x64xf32> to vector<1x16x64xf32>
    %cst_19 = arith.constant dense<0xFF800000> : vector<1x64xf32>
    %54 = vector.multi_reduction <maximumf>, %53, %cst_19 [1] : vector<1x16x64xf32> to vector<1x64xf32>
    %55 = tpu.concatenate %45, %48, %51, %54 in 1 : vector<1x64xf32>, vector<1x64xf32>, vector<1x64xf32>, vector<1x64xf32> -> vector<1x256xf32>
    %56 = arith.truncf %55 : vector<1x256xf32> to vector<1x256xbf16>
    %c0_20 = arith.constant 0 : index
    %c0_21 = arith.constant 0 : index
    %57 = vector.load %arg6[%c0_20, %c0_21] : memref<256x384xbf16, #tpu.memory_space<vmem>>, vector<256x384xbf16>
    %cst_22 = arith.constant dense<0.000000e+00> : vector<1x384xf32>
    %58 = tpu.matmul %56, %57, %cst_22 {dimension_numbers = #tpu.dot_dimension_numbers<[1], [0], [0], [1], [0, 0, 1, 1], [], []>} : vector<1x256xbf16>, vector<256x384xbf16>, vector<1x384xf32> -> vector<1x384xf32>
    %c0_23 = arith.constant 0 : index
    %c0_24 = arith.constant 0 : index
    %59 = vector.load %arg7[%c0_23, %c0_24] : memref<1x384xf32, #tpu.memory_space<vmem>>, vector<1x384xf32>
    %60 = arith.addf %58, %59 : vector<1x384xf32>
    %cst_25 = arith.constant 0.000000e+00 : f32
    %61 = vector.broadcast %cst_25 : f32 to vector<1x384xf32>
    %62 = arith.maximumf %60, %61 : vector<1x384xf32>
    %63 = arith.truncf %62 : vector<1x384xf32> to vector<1x384xbf16>
    %c0_26 = arith.constant 0 : index
    %c0_27 = arith.constant 0 : index
    %64 = vector.load %arg8[%c0_26, %c0_27] : memref<384x256xbf16, #tpu.memory_space<vmem>>, vector<384x256xbf16>
    %cst_28 = arith.constant dense<0.000000e+00> : vector<1x256xf32>
    %65 = tpu.matmul %63, %64, %cst_28 {dimension_numbers = #tpu.dot_dimension_numbers<[1], [0], [0], [1], [0, 0, 1, 1], [], []>} : vector<1x384xbf16>, vector<384x256xbf16>, vector<1x256xf32> -> vector<1x256xf32>
    %c0_29 = arith.constant 0 : index
    %c0_30 = arith.constant 0 : index
    %66 = vector.load %arg9[%c0_29, %c0_30] : memref<1x256xf32, #tpu.memory_space<vmem>>, vector<1x256xf32>
    %67 = arith.addf %65, %66 : vector<1x256xf32>
    %cst_31 = arith.constant 0.000000e+00 : f32
    %68 = vector.broadcast %cst_31 : f32 to vector<1x256xf32>
    %69 = arith.maximumf %67, %68 : vector<1x256xf32>
    %70 = arith.truncf %69 : vector<1x256xf32> to vector<1x256xbf16>
    %c0_32 = arith.constant 0 : index
    %c0_33 = arith.constant 0 : index
    %71 = vector.load %arg10[%c0_32, %c0_33] : memref<256x128xbf16, #tpu.memory_space<vmem>>, vector<256x128xbf16>
    %cst_34 = arith.constant dense<0.000000e+00> : vector<1x128xf32>
    %72 = tpu.matmul %70, %71, %cst_34 {dimension_numbers = #tpu.dot_dimension_numbers<[1], [0], [0], [1], [0, 0, 1, 1], [], []>} : vector<1x256xbf16>, vector<256x128xbf16>, vector<1x128xf32> -> vector<1x128xf32>
    %c0_35 = arith.constant 0 : index
    %c0_36 = arith.constant 0 : index
    %73 = vector.load %arg11[%c0_35, %c0_36] : memref<1x128xf32, #tpu.memory_space<vmem>>, vector<1x128xf32>
    %74 = arith.addf %72, %73 : vector<1x128xf32>
    %c0_37 = arith.constant 0 : index
    %c0_38 = arith.constant 0 : index
    %c0_39 = arith.constant 0 : index
    %75 = vector.load %arg12[%c0_37, %c0_38, %c0_39] : memref<1x1x128xf32, #tpu.memory_space<vmem>>, vector<1x1x128xf32>
    %76 = vector.shape_cast %75 : vector<1x1x128xf32> to vector<1x128xf32>
    %77 = vector.shape_cast %74 : vector<1x128xf32> to vector<1x1x128xf32>
    tpu.vector_store %arg12[%c0_37, %c0_38, %c0_39], %77 {strides = array<i32>} : memref<1x1x128xf32, #tpu.memory_space<vmem>>, vector<1x1x128xf32>,
    return
  }
  func.func @transform_0(%arg0: i32) -> (i32, i32, i32) {
    %c0_i32 = arith.constant 0 : i32
    %c0_i32_0 = arith.constant 0 : i32
    %c0_i32_1 = arith.constant 0 : i32
    return %arg0, %c0_i32, %c0_i32_0 : i32, i32, i32
  }
  func.func @transform_1(%arg0: i32) -> (i32, i32) {
    %c0_i32 = arith.constant 0 : i32
    %c0_i32_0 = arith.constant 0 : i32
    %c0_i32_1 = arith.constant 0 : i32
    return %c0_i32, %c0_i32_0 : i32, i32
  }
  func.func @transform_2(%arg0: i32) -> (i32, i32) {
    %c0_i32 = arith.constant 0 : i32
    %c0_i32_0 = arith.constant 0 : i32
    %c0_i32_1 = arith.constant 0 : i32
    return %c0_i32, %c0_i32_0 : i32, i32
  }
  func.func @transform_3(%arg0: i32) -> (i32, i32) {
    %c0_i32 = arith.constant 0 : i32
    %c0_i32_0 = arith.constant 0 : i32
    %c0_i32_1 = arith.constant 0 : i32
    return %c0_i32, %c0_i32_0 : i32, i32
  }
  func.func @transform_4(%arg0: i32) -> (i32, i32) {
    %c0_i32 = arith.constant 0 : i32
    %c0_i32_0 = arith.constant 0 : i32
    %c0_i32_1 = arith.constant 0 : i32
    return %c0_i32, %c0_i32_0 : i32, i32
  }
  func.func @transform_5(%arg0: i32) -> (i32, i32) {
    %c0_i32 = arith.constant 0 : i32
    %c0_i32_0 = arith.constant 0 : i32
    %c0_i32_1 = arith.constant 0 : i32
    return %c0_i32, %c0_i32_0 : i32, i32
  }
  func.func @transform_6(%arg0: i32) -> (i32, i32) {
    %c0_i32 = arith.constant 0 : i32
    %c0_i32_0 = arith.constant 0 : i32
    %c0_i32_1 = arith.constant 0 : i32
    return %c0_i32, %c0_i32_0 : i32, i32
  }
  func.func @transform_7(%arg0: i32) -> (i32, i32) {
    %c0_i32 = arith.constant 0 : i32
    %c0_i32_0 = arith.constant 0 : i32
    %c0_i32_1 = arith.constant 0 : i32
    return %c0_i32, %c0_i32_0 : i32, i32
  }
  func.func @transform_8(%arg0: i32) -> (i32, i32) {
    %c0_i32 = arith.constant 0 : i32
    %c0_i32_0 = arith.constant 0 : i32
    %c0_i32_1 = arith.constant 0 : i32
    return %c0_i32, %c0_i32_0 : i32, i32
  }
  func.func @transform_9(%arg0: i32) -> (i32, i32) {
    %c0_i32 = arith.constant 0 : i32
    %c0_i32_0 = arith.constant 0 : i32
    %c0_i32_1 = arith.constant 0 : i32
    return %c0_i32, %c0_i32_0 : i32, i32
  }
  func.func @transform_10(%arg0: i32) -> (i32, i32) {
    %c0_i32 = arith.constant 0 : i32
    %c0_i32_0 = arith.constant 0 : i32
    %c0_i32_1 = arith.constant 0 : i32
    return %c0_i32, %c0_i32_0 : i32, i32
  }
  func.func @transform_11(%arg0: i32) -> (i32, i32, i32) {
    %c0_i32 = arith.constant 0 : i32
    %c0_i32_0 = arith.constant 0 : i32
    %c0_i32_1 = arith.constant 0 : i32
    return %arg0, %c0_i32, %c0_i32_0 : i32, i32, i32
  }
}

</mosaic_0001>

<llo_original>
// kernel: cifar10_forward.1
$region0: #{cifar10_forward.1}
  #allocation0 [shape = 'u32[]', space=smem, size = 0x4, offset = 0x4, fixed_abs, tag = 'smem constant byte address 0x4 - core index']
  #allocation1 [shape = 'u32[72,128]{1,0:T(1,128)}', space=vmem, size = 0x9000, scoped, tag = 'internal scratch']
  %s0 = inlined_call_operand.vmem [shape: bf16[2,900,32], index: 0, kind: input, shape index: {}]
  %s1 = inlined_call_operand.vmem [shape: bf16[32,16], index: 1, kind: input, shape index: {}]
  %s2 = inlined_call_operand.vmem [shape: f32[1,16], index: 2, kind: input, shape index: {}]
  %s3 = inlined_call_operand.vmem [shape: bf16[256,64], index: 3, kind: input, shape index: {}]
  %s4 = inlined_call_operand.vmem [shape: f32[1,64], index: 4, kind: input, shape index: {}]
  %s5 = inlined_call_operand.vmem [shape: bf16[256,384], index: 5, kind: input, shape index: {}]
  %s6 = inlined_call_operand.vmem [shape: f32[1,384], index: 6, kind: input, shape index: {}]
  %s7 = inlined_call_operand.vmem [shape: bf16[384,256], index: 7, kind: input, shape index: {}]
  %s8 = inlined_call_operand.vmem [shape: f32[1,256], index: 8, kind: input, shape index: {}]
  %s9 = inlined_call_operand.vmem [shape: bf16[256,128], index: 9, kind: input, shape index: {}]
  %s10 = inlined_call_operand.vmem [shape: f32[1,128], index: 10, kind: input, shape index: {}]
  %s11 = inlined_call_operand.hbm [shape: f32[2,1,128], index: 11, kind: output, shape index: {}]
  %s12 = sld [smem:[#allocation0]]
  $region77: #{cifar10_forward.1} parent=0
    _
  %s14 = ssub.s32 1, %s12
  %s15 = scalar_select 0, %s14, %s12
  $region1: #{cifar10_forward.1} parent=0
    #allocation2 [shape = 'u8[1024]{0}', space=vmem, size = 0x400, scoped, tag = 'output window, operand 0']
    #allocation3 [shape = 's32[2]{0}', space=sflag, size = 0x8, scoped, tag = 'scoped memory for cifar10_forward.1']
    %16 = vsyncpa [#allocation3], 0
    %s17 = scalar_lea.sflag [#allocation3], 1
    %18 = vsyncpa %s17, 0
    loop: start=0, step=1, limit=4
    $region2: #{cifar10_forward.1} parent=1 // loop_pre_header
      _
    $region3: #{cifar10_forward.1} parent=1 // loop_header
      %s20 = sphi 0, %s24
      %p21 = scmp.ge.s32.totalorder %s20, 4
      %s30 = sphi 0, %s32
      %s33 = sphi 0, %s30
      %s34 = sphi 0, %s33
      %s50 = sphi 0, %s34
      %s54 = sphi 0, %s54
      %s56 = sphi 0, %s54
      %s57 = sphi 0, %s56
      %s71 = sphi 0, %s57
      %s75 = sphi 0, %s75
      %s77 = sphi 0, %s75
      %s78 = sphi 0, %s77
      %s92 = sphi 0, %s78
      %s96 = sphi 0, %s96
      %s98 = sphi 0, %s96
      %s99 = sphi 0, %s98
      %s113 = sphi 0, %s99
      %s117 = sphi 0, %s117
      %s119 = sphi 0, %s117
      %s120 = sphi 0, %s119
      %s134 = sphi 0, %s120
      %s138 = sphi 0, %s138
      %s140 = sphi 0, %s138
      %s141 = sphi 0, %s140
      %s155 = sphi 0, %s141
      %s159 = sphi 0, %s159
      %s161 = sphi 0, %s159
      %s162 = sphi 0, %s161
      %s176 = sphi 0, %s162
      %s180 = sphi 0, %s180
      %s182 = sphi 0, %s180
      %s183 = sphi 0, %s182
      %s197 = sphi 0, %s183
      %s201 = sphi 0, %s201
      %s203 = sphi 0, %s201
      %s204 = sphi 0, %s203
      %s218 = sphi 0, %s204
      %s222 = sphi 0, %s222
      %s224 = sphi 0, %s222
      %s225 = sphi 0, %s224
      %s239 = sphi 0, %s225
      %s243 = sphi 0, %s243
      %s245 = sphi 0, %s243
      %s246 = sphi 0, %s245
      %s260 = sphi 0, %s246
      %s266 = sphi 0, %s268
      %s269 = sphi 0, %s266
      %s270 = sphi 0, %s269
      %s286 = sphi 0, %s270
    $region4: #{cifar10_forward.1} parent=1 // loop_header_branch
      %23 = sbr.rel (%p21) target = $region8
    $region5: #{cifar10_forward.1} parent=1 // loop_body
      %s25 = ssub.s32 %s20, 1
      %s26 = ssub.s32 %s20, 2
      %s27 = sadd.s32 %s20, 1
      %s28 = ssub.s32 %s20, %s27
      %p29 = scmp.eq.s32.totalorder %s28, 0
      %s31 = sadd.s32 %s30, 1
      %s32 = scalar_select %p29, %s30, %s31
      %p35 = pneg %p29
      %p36 = scmp.eq.s32.totalorder %s20, 1
      %p37 = por %p35, %p36
      %p38 = scmp.ne.s32.totalorder %s30, %s33
      %p39 = scmp.eq.s32.totalorder %s20, 0
      %p40 = por %p38, %p39
      %p41 = scmp.ne.s32.totalorder %s30, %s33
      %p42 = scmp.eq.s32.totalorder %s25, 1
      %p43 = por %p41, %p42
      %p44 = scmp.ne.s32.totalorder %s33, %s34
      %p45 = scmp.eq.s32.totalorder %s25, 0
      %p46 = por %p44, %p45
      %p47 = scmp.ne.s32.totalorder %s33, %s34
      %p48 = scmp.eq.s32.totalorder %s26, 1
      %p49 = por %p47, %p48
      %p51 = scmp.ne.s32.totalorder %s34, %s50
      %p52 = scmp.eq.s32.totalorder %s26, 0
      %p53 = por %p51, %p52
      %s55 = sadd.s32 %s54, 1
      %p58 = scmp.eq.s32.totalorder %s20, 1
      %p59 = scmp.ne.s32.totalorder %s54, %s56
      %p60 = scmp.eq.s32.totalorder %s20, 0
      %p61 = por %p59, %p60
      %p62 = scmp.ne.s32.totalorder %s54, %s56
      %p63 = scmp.eq.s32.totalorder %s25, 1
      %p64 = por %p62, %p63
      %p65 = scmp.ne.s32.totalorder %s56, %s57
      %p66 = scmp.eq.s32.totalorder %s25, 0
      %p67 = por %p65, %p66
      %p68 = scmp.ne.s32.totalorder %s56, %s57
      %p69 = scmp.eq.s32.totalorder %s26, 1
      %p70 = por %p68, %p69
      %p72 = scmp.ne.s32.totalorder %s57, %s71
      %p73 = scmp.eq.s32.totalorder %s26, 0
      %p74 = por %p72, %p73
      %s76 = sadd.s32 %s75, 1
      %p79 = scmp.eq.s32.totalorder %s20, 1
      %p80 = scmp.ne.s32.totalorder %s75, %s77
      %p81 = scmp.eq.s32.totalorder %s20, 0
      %p82 = por %p80, %p81
      %p83 = scmp.ne.s32.totalorder %s75, %s77
      %p84 = scmp.eq.s32.totalorder %s25, 1
      %p85 = por %p83, %p84
      %p86 = scmp.ne.s32.totalorder %s77, %s78
      %p87 = scmp.eq.s32.totalorder %s25, 0
      %p88 = por %p86, %p87
      %p89 = scmp.ne.s32.totalorder %s77, %s78
      %p90 = scmp.eq.s32.totalorder %s26, 1
      %p91 = por %p89, %p90
      %p93 = scmp.ne.s32.totalorder %s78, %s92
      %p94 = scmp.eq.s32.totalorder %s26, 0
      %p95 = por %p93, %p94
      %s97 = sadd.s32 %s96, 1
      %p100 = scmp.eq.s32.totalorder %s20, 1
      %p101 = scmp.ne.s32.totalorder %s96, %s98
      %p102 = scmp.eq.s32.totalorder %s20, 0
      %p103 = por %p101, %p102
      %p104 = scmp.ne.s32.totalorder %s96, %s98
      %p105 = scmp.eq.s32.totalorder %s25, 1
      %p106 = por %p104, %p105
      %p107 = scmp.ne.s32.totalorder %s98, %s99
      %p108 = scmp.eq.s32.totalorder %s25, 0
      %p109 = por %p107, %p108
      %p110 = scmp.ne.s32.totalorder %s98, %s99
      %p111 = scmp.eq.s32.totalorder %s26, 1
      %p112 = por %p110, %p111
      %p114 = scmp.ne.s32.totalorder %s99, %s113
      %p115 = scmp.eq.s32.totalorder %s26, 0
      %p116 = por %p114, %p115
      %s118 = sadd.s32 %s117, 1
      %p121 = scmp.eq.s32.totalorder %s20, 1
      %p122 = scmp.ne.s32.totalorder %s117, %s119
      %p123 = scmp.eq.s32.totalorder %s20, 0
      %p124 = por %p122, %p123
      %p125 = scmp.ne.s32.totalorder %s117, %s119
      %p126 = scmp.eq.s32.totalorder %s25, 1
      %p127 = por %p125, %p126
      %p128 = scmp.ne.s32.totalorder %s119, %s120
      %p129 = scmp.eq.s32.totalorder %s25, 0
      %p130 = por %p128, %p129
      %p131 = scmp.ne.s32.totalorder %s119, %s120
      %p132 = scmp.eq.s32.totalorder %s26, 1
      %p133 = por %p131, %p132
      %p135 = scmp.ne.s32.totalorder %s120, %s134
      %p136 = scmp.eq.s32.totalorder %s26, 0
      %p137 = por %p135, %p136
      %s139 = sadd.s32 %s138, 1
      %p142 = scmp.eq.s32.totalorder %s20, 1
      %p143 = scmp.ne.s32.totalorder %s138, %s140
      %p144 = scmp.eq.s32.totalorder %s20, 0
      %p145 = por %p143, %p144
      %p146 = scmp.ne.s32.totalorder %s138, %s140
      %p147 = scmp.eq.s32.totalorder %s25, 1
      %p148 = por %p146, %p147
      %p149 = scmp.ne.s32.totalorder %s140, %s141
      %p150 = scmp.eq.s32.totalorder %s25, 0
      %p151 = por %p149, %p150
      %p152 = scmp.ne.s32.totalorder %s140, %s141
      %p153 = scmp.eq.s32.totalorder %s26, 1
      %p154 = por %p152, %p153
      %p156 = scmp.ne.s32.totalorder %s141, %s155
      %p157 = scmp.eq.s32.totalorder %s26, 0
      %p158 = por %p156, %p157
      %s160 = sadd.s32 %s159, 1
      %p163 = scmp.eq.s32.totalorder %s20, 1
      %p164 = scmp.ne.s32.totalorder %s159, %s161
      %p165 = scmp.eq.s32.totalorder %s20, 0
      %p166 = por %p164, %p165
      %p167 = scmp.ne.s32.totalorder %s159, %s161
      %p168 = scmp.eq.s32.totalorder %s25, 1
      %p169 = por %p167, %p168
      %p170 = scmp.ne.s32.totalorder %s161, %s162
      %p171 = scmp.eq.s32.totalorder %s25, 0
      %p172 = por %p170, %p171
      %p173 = scmp.ne.s32.totalorder %s161, %s162
      %p174 = scmp.eq.s32.totalorder %s26, 1
      %p175 = por %p173, %p174
      %p177 = scmp.ne.s32.totalorder %s162, %s176
      %p178 = scmp.eq.s32.totalorder %s26, 0
      %p179 = por %p177, %p178
      %s181 = sadd.s32 %s180, 1
      %p184 = scmp.eq.s32.totalorder %s20, 1
      %p185 = scmp.ne.s32.totalorder %s180, %s182
      %p186 = scmp.eq.s32.totalorder %s20, 0
      %p187 = por %p185, %p186
      %p188 = scmp.ne.s32.totalorder %s180, %s182
      %p189 = scmp.eq.s32.totalorder %s25, 1
      %p190 = por %p188, %p189
      %p191 = scmp.ne.s32.totalorder %s182, %s183
      %p192 = scmp.eq.s32.totalorder %s25, 0
      %p193 = por %p191, %p192
      %p194 = scmp.ne.s32.totalorder %s182, %s183
      %p195 = scmp.eq.s32.totalorder %s26, 1
      %p196 = por %p194, %p195
      %p198 = scmp.ne.s32.totalorder %s183, %s197
      %p199 = scmp.eq.s32.totalorder %s26, 0
      %p200 = por %p198, %p199
      %s202 = sadd.s32 %s201, 1
      %p205 = scmp.eq.s32.totalorder %s20, 1
      %p206 = scmp.ne.s32.totalorder %s201, %s203
      %p207 = scmp.eq.s32.totalorder %s20, 0
      %p208 = por %p206, %p207
      %p209 = scmp.ne.s32.totalorder %s201, %s203
      %p210 = scmp.eq.s32.totalorder %s25, 1
      %p211 = por %p209, %p210
      %p212 = scmp.ne.s32.totalorder %s203, %s204
      %p213 = scmp.eq.s32.totalorder %s25, 0
      %p214 = por %p212, %p213
      %p215 = scmp.ne.s32.totalorder %s203, %s204
      %p216 = scmp.eq.s32.totalorder %s26, 1
      %p217 = por %p215, %p216
      %p219 = scmp.ne.s32.totalorder %s204, %s218
      %p220 = scmp.eq.s32.totalorder %s26, 0
      %p221 = por %p219, %p220
      %s223 = sadd.s32 %s222, 1
      %p226 = scmp.eq.s32.totalorder %s20, 1
      %p227 = scmp.ne.s32.totalorder %s222, %s224
      %p228 = scmp.eq.s32.totalorder %s20, 0
      %p229 = por %p227, %p228
      %p230 = scmp.ne.s32.totalorder %s222, %s224
      %p231 = scmp.eq.s32.totalorder %s25, 1
      %p232 = por %p230, %p231
      %p233 = scmp.ne.s32.totalorder %s224, %s225
      %p234 = scmp.eq.s32.totalorder %s25, 0
      %p235 = por %p233, %p234
      %p236 = scmp.ne.s32.totalorder %s224, %s225
      %p237 = scmp.eq.s32.totalorder %s26, 1
      %p238 = por %p236, %p237
      %p240 = scmp.ne.s32.totalorder %s225, %s239
      %p241 = scmp.eq.s32.totalorder %s26, 0
      %p242 = por %p240, %p241
      %s244 = sadd.s32 %s243, 1
      %p247 = scmp.eq.s32.totalorder %s20, 1
      %p248 = scmp.ne.s32.totalorder %s243, %s245
      %p249 = scmp.eq.s32.totalorder %s20, 0
      %p250 = por %p248, %p249
      %p251 = scmp.ne.s32.totalorder %s243, %s245
      %p252 = scmp.eq.s32.totalorder %s25, 1
      %p253 = por %p251, %p252
      %p254 = scmp.ne.s32.totalorder %s245, %s246
      %p255 = scmp.eq.s32.totalorder %s25, 0
      %p256 = por %p254, %p255
      %p257 = scmp.ne.s32.totalorder %s245, %s246
      %p258 = scmp.eq.s32.totalorder %s26, 1
      %p259 = por %p257, %p258
      %p261 = scmp.ne.s32.totalorder %s246, %s260
      %p262 = scmp.eq.s32.totalorder %s26, 0
      %p263 = por %p261, %p262
      %s264 = ssub.s32 %s20, %s27
      %p265 = scmp.eq.s32.totalorder %s264, 0
      %s267 = sadd.s32 %s266, 1
      %s268 = scalar_select %p265, %s266, %s267
      %p271 = pneg %p265
      %p272 = scmp.eq.s32.totalorder %s20, 1
      %p273 = por %p271, %p272
      %p274 = scmp.ne.s32.totalorder %s266, %s269
      %p275 = scmp.eq.s32.totalorder %s20, 0
      %p276 = por %p274, %p275
      %p277 = scmp.ne.s32.totalorder %s266, %s269
      %p278 = scmp.eq.s32.totalorder %s25, 1
      %p279 = por %p277, %p278
      %p280 = scmp.ne.s32.totalorder %s269, %s270
      %p281 = scmp.eq.s32.totalorder %s25, 0
      %p282 = por %p280, %p281
      %p283 = scmp.ne.s32.totalorder %s269, %s270
      %p284 = scmp.eq.s32.totalorder %s26, 1
      %p285 = por %p283, %p284
      %p287 = scmp.ne.s32.totalorder %s270, %s286
      %p288 = scmp.eq.s32.totalorder %s26, 0
      %p289 = por %p287, %p288
      %p290 = scmp.le.s32.totalorder 1, %s20
      %p291 = scmp.lt.s32.totalorder %s20, 3
      %p292 = pnand %p290, %p291
      %p293 = pneg %p292
      // Predicated region
      $region9: #{cifar10_forward.1} parent=5 // pred_check
        _
      $region10: #{cifar10_forward.1} parent=5 // pred_check_branch
        %295 = sbr.rel (%p292) target = $region12
      $region11: #{cifar10_forward.1} parent=5 // pred_region
        %s296 = ssub.s32 %s20, 1
        // Predicated region
        $region13: #{cifar10_forward.1} parent=11 // pred_check
          %p297 = pneg %p67
        $region14: #{cifar10_forward.1} parent=11 // pred_check_branch
          %299 = sbr.rel (%p297) target = $region16
        $region15: #{cifar10_forward.1} parent=11 // pred_region
          _
        $region16: #{cifar10_forward.1} parent=11 // pred_fallthru
          _
        // Predicated region
        $region17: #{cifar10_forward.1} parent=11 // pred_check
          %p300 = pneg %p88
        $region18: #{cifar10_forward.1} parent=11 // pred_check_branch
          %302 = sbr.rel (%p300) target = $region20
        $region19: #{cifar10_forward.1} parent=11 // pred_region
          _
        $region20: #{cifar10_forward.1} parent=11 // pred_fallthru
          _
        // Predicated region
        $region21: #{cifar10_forward.1} parent=11 // pred_check
          %p303 = pneg %p109
        $region22: #{cifar10_forward.1} parent=11 // pred_check_branch
          %305 = sbr.rel (%p303) target = $region24
        $region23: #{cifar10_forward.1} parent=11 // pred_region
          _
        $region24: #{cifar10_forward.1} parent=11 // pred_fallthru
          _
        // Predicated region
        $region25: #{cifar10_forward.1} parent=11 // pred_check
          %p306 = pneg %p130
        $region26: #{cifar10_forward.1} parent=11 // pred_check_branch
          %308 = sbr.rel (%p306) target = $region28
        $region27: #{cifar10_forward.1} parent=11 // pred_region
          _
        $region28: #{cifar10_forward.1} parent=11 // pred_fallthru
          _
        // Predicated region
        $region29: #{cifar10_forward.1} parent=11 // pred_check
          %p309 = pneg %p151
        $region30: #{cifar10_forward.1} parent=11 // pred_check_branch
          %311 = sbr.rel (%p309) target = $region32
        $region31: #{cifar10_forward.1} parent=11 // pred_region
          _
        $region32: #{cifar10_forward.1} parent=11 // pred_fallthru
          _
        // Predicated region
        $region33: #{cifar10_forward.1} parent=11 // pred_check
          %p312 = pneg %p172
        $region34: #{cifar10_forward.1} parent=11 // pred_check_branch
          %314 = sbr.rel (%p312) target = $region36
        $region35: #{cifar10_forward.1} parent=11 // pred_region
          _
        $region36: #{cifar10_forward.1} parent=11 // pred_fallthru
          _
        // Predicated region
        $region37: #{cifar10_forward.1} parent=11 // pred_check
          %p315 = pneg %p193
        $region38: #{cifar10_forward.1} parent=11 // pred_check_branch
          %317 = sbr.rel (%p315) target = $region40
        $region39: #{cifar10_forward.1} parent=11 // pred_region
          _
        $region40: #{cifar10_forward.1} parent=11 // pred_fallthru
          _
        // Predicated region
        $region41: #{cifar10_forward.1} parent=11 // pred_check
          %p318 = pneg %p214
        $region42: #{cifar10_forward.1} parent=11 // pred_check_branch
          %320 = sbr.rel (%p318) target = $region44
        $region43: #{cifar10_forward.1} parent=11 // pred_region
          _
        $region44: #{cifar10_forward.1} parent=11 // pred_fallthru
          _
        // Predicated region
        $region45: #{cifar10_forward.1} parent=11 // pred_check
          %p321 = pneg %p235
        $region46: #{cifar10_forward.1} parent=11 // pred_check_branch
          %323 = sbr.rel (%p321) target = $region48
        $region47: #{cifar10_forward.1} parent=11 // pred_region
          _
        $region48: #{cifar10_forward.1} parent=11 // pred_fallthru
          _
        // Predicated region
        $region49: #{cifar10_forward.1} parent=11 // pred_check
          %p324 = pneg %p256
        $region50: #{cifar10_forward.1} parent=11 // pred_check_branch
          %326 = sbr.rel (%p324) target = $region52
        $region51: #{cifar10_forward.1} parent=11 // pred_region
          _
        $region52: #{cifar10_forward.1} parent=11 // pred_fallthru
          _
      $region12: #{cifar10_forward.1} parent=5 // pred_fallthru
        _
      %p327 = scmp.lt.s32.totalorder %s20, 2
      // Predicated region
      $region53: #{cifar10_forward.1} parent=5 // pred_check
        %p328 = pneg %p327
      $region54: #{cifar10_forward.1} parent=5 // pred_check_branch
        %330 = sbr.rel (%p328) target = $region56
      $region55: #{cifar10_forward.1} parent=5 // pred_region
        // Predicated region
        $region57: #{cifar10_forward.1} parent=55 // pred_check
          %p331 = pneg %p40
        $region58: #{cifar10_forward.1} parent=55 // pred_check_branch
          %333 = sbr.rel (%p331) target = $region60
        $region59: #{cifar10_forward.1} parent=55 // pred_region
          %p334 = scmp.lt.s32.totalorder %s20, 1
          %s335 = scalar_select %p334, %s20, 1
          %s336 = smul.addr %s335, 113
          %s337 = smul.addr %s336, 4
          %s338 = scalar_lea.vmem %s0, %s337
        $region60: #{cifar10_forward.1} parent=55 // pred_fallthru
          _
      $region56: #{cifar10_forward.1} parent=5 // pred_fallthru
        _
      %p339 = scmp.le.s32.totalorder 1, %s20
      %p340 = scmp.lt.s32.totalorder %s20, 3
      %p341 = pnand %p339, %p340
      %p342 = pneg %p341
      // Predicated region
      $region61: #{cifar10_forward.1} parent=5 // pred_check
        _
      $region62: #{cifar10_forward.1} parent=5 // pred_check_branch
        %344 = sbr.rel (%p341) target = $region64
      $region63: #{cifar10_forward.1} parent=5 // pred_region
        %s345 = ssub.s32 %s20, 1
        %p346 = scmp.lt.s32.totalorder %s25, 1
        %s347 = scalar_select %p346, %s25, 1
        %s348 = smul.addr %s347, 113
        %s349 = smul.addr %s348, 4
        %s350 = scalar_lea.vmem %s0, %s349
        %p351 = pneg %p46
        %p352 = pneg %p43
        %p353 = pneg %p67
        %p354 = pneg %p64
        %p355 = pneg %p88
        %p356 = pneg %p85
        %p357 = pneg %p109
        %p358 = pneg %p106
        %p359 = pneg %p130
        %p360 = pneg %p127
        %p361 = pneg %p151
        %p362 = pneg %p148
        %p363 = pneg %p172
        %p364 = pneg %p169
        %p365 = pneg %p193
        %p366 = pneg %p190
        %p367 = pneg %p214
        %p368 = pneg %p211
        %p369 = pneg %p235
        %p370 = pneg %p232
        %p371 = pneg %p256
        %p372 = pneg %p253
        %p373 = pneg %p282
        %p374 = pneg %p279
        %s375 = sand.u32 %s269, 1
        %s376 = scalar_lea.sflag [#allocation3], %s375
        %s377 = sand.u32 %s269, 1
        %s378 = scalar_lea.vmem [#allocation2], %s377
        %p379 = scmp.lt.s32.totalorder %s25, 1
        %s380 = scalar_select %p379, %s25, 1
        %s381 = smul.addr %s380, 113
        %s382 = smul.addr %s381, 4
        %s383 = scalar_lea.vmem %s0, %s382
        %v385 = vld [vmem:[%s383] sm:$0xf]
        %v386 = vld [vmem:[%s383 + $0x4] sm:$0xf]
        %v387 = vld [vmem:[%s383 + $0x8] sm:$0xf]
        %v388 = vld [vmem:[%s383 + $0xc] sm:$0xf]
        %v389 = vld [vmem:[%s383 + $0x10] sm:$0xf]
        %v390 = vld [vmem:[%s383 + $0x14] sm:$0xf]
        %v391 = vld [vmem:[%s383 + $0x18] sm:$0xf]
        %v392 = vld [vmem:[%s383 + $0x1c] sm:$0xf]
        %v393 = vld [vmem:[%s383 + $0x20] sm:$0xf]
        %v394 = vld [vmem:[%s383 + $0x24] sm:$0xf]
        %v395 = vld [vmem:[%s383 + $0x28] sm:$0xf]
        %v396 = vld [vmem:[%s383 + $0x2c] sm:$0xf]
        %v397 = vld [vmem:[%s383 + $0x30] sm:$0xf]
        %v398 = vld [vmem:[%s383 + $0x34] sm:$0xf]
        %v399 = vld [vmem:[%s383 + $0x38] sm:$0xf]
        %v400 = vld [vmem:[%s383 + $0x3c] sm:$0xf]
        %v401 = vld [vmem:[%s383 + $0x40] sm:$0xf]
        %v402 = vld [vmem:[%s383 + $0x44] sm:$0xf]
        %v403 = vld [vmem:[%s383 + $0x48] sm:$0xf]
        %v404 = vld [vmem:[%s383 + $0x4c] sm:$0xf]
        %v405 = vld [vmem:[%s383 + $0x50] sm:$0xf]
        %v406 = vld [vmem:[%s383 + $0x54] sm:$0xf]
        %v407 = vld [vmem:[%s383 + $0x58] sm:$0xf]
        %v408 = vld [vmem:[%s383 + $0x5c] sm:$0xf]
        %v409 = vld [vmem:[%s383 + $0x60] sm:$0xf]
        %v410 = vld [vmem:[%s383 + $0x64] sm:$0xf]
        %v411 = vld [vmem:[%s383 + $0x68] sm:$0xf]
        %v412 = vld [vmem:[%s383 + $0x6c] sm:$0xf]
        %v413 = vld [vmem:[%s383 + $0x70] sm:$0xf]
        %v414 = vld [vmem:[%s383 + $0x74] sm:$0xf]
        %v415 = vld [vmem:[%s383 + $0x78] sm:$0xf]
        %v416 = vld [vmem:[%s383 + $0x7c] sm:$0xf]
        %v417 = vld [vmem:[%s383 + $0x80] sm:$0xf]
        %v418 = vld [vmem:[%s383 + $0x84] sm:$0xf]
        %v419 = vld [vmem:[%s383 + $0x88] sm:$0xf]
        %v420 = vld [vmem:[%s383 + $0x8c] sm:$0xf]
        %v421 = vld [vmem:[%s383 + $0x90] sm:$0xf]
        %v422 = vld [vmem:[%s383 + $0x94] sm:$0xf]
        %v423 = vld [vmem:[%s383 + $0x98] sm:$0xf]
        %v424 = vld [vmem:[%s383 + $0x9c] sm:$0xf]
        %v425 = vld [vmem:[%s383 + $0xa0] sm:$0xf]
        %v426 = vld [vmem:[%s383 + $0xa4] sm:$0xf]
        %v427 = vld [vmem:[%s383 + $0xa8] sm:$0xf]
        %v428 = vld [vmem:[%s383 + $0xac] sm:$0xf]
        %v429 = vld [vmem:[%s383 + $0xb0] sm:$0xf]
        %v430 = vld [vmem:[%s383 + $0xb4] sm:$0xf]
        %v431 = vld [vmem:[%s383 + $0xb8] sm:$0xf]
        %v432 = vld [vmem:[%s383 + $0xbc] sm:$0xf]
        %v433 = vld [vmem:[%s383 + $0xc0] sm:$0xf]
        %v434 = vld [vmem:[%s383 + $0xc4] sm:$0xf]
        %v435 = vld [vmem:[%s383 + $0xc8] sm:$0xf]
        %v436 = vld [vmem:[%s383 + $0xcc] sm:$0xf]
        %v437 = vld [vmem:[%s383 + $0xd0] sm:$0xf]
        %v438 = vld [vmem:[%s383 + $0xd4] sm:$0xf]
        %v439 = vld [vmem:[%s383 + $0xd8] sm:$0xf]
        %v440 = vld [vmem:[%s383 + $0xdc] sm:$0xf]
        %v441 = vld [vmem:[%s383 + $0xe0] sm:$0xf]
        %v442 = vld [vmem:[%s383 + $0xe4] sm:$0xf]
        %v443 = vld [vmem:[%s383 + $0xe8] sm:$0xf]
        %v444 = vld [vmem:[%s383 + $0xec] sm:$0xf]
        %v445 = vld [vmem:[%s383 + $0xf0] sm:$0xf]
        %v446 = vld [vmem:[%s383 + $0xf4] sm:$0xf]
        %v447 = vld [vmem:[%s383 + $0xf8] sm:$0xf]
        %v448 = vld [vmem:[%s383 + $0xfc] sm:$0xf]
        %v449 = vld [vmem:[%s383 + $0x100] sm:$0xf]
        %v450 = vld [vmem:[%s383 + $0x104] sm:$0xf]
        %v451 = vld [vmem:[%s383 + $0x108] sm:$0xf]
        %v452 = vld [vmem:[%s383 + $0x10c] sm:$0xf]
        %v453 = vld [vmem:[%s383 + $0x110] sm:$0xf]
        %v454 = vld [vmem:[%s383 + $0x114] sm:$0xf]
        %v455 = vld [vmem:[%s383 + $0x118] sm:$0xf]
        %v456 = vld [vmem:[%s383 + $0x11c] sm:$0xf]
        %v457 = vld [vmem:[%s383 + $0x120] sm:$0xf]
        %v458 = vld [vmem:[%s383 + $0x124] sm:$0xf]
        %v459 = vld [vmem:[%s383 + $0x128] sm:$0xf]
        %v460 = vld [vmem:[%s383 + $0x12c] sm:$0xf]
        %v461 = vld [vmem:[%s383 + $0x130] sm:$0xf]
        %v462 = vld [vmem:[%s383 + $0x134] sm:$0xf]
        %v463 = vld [vmem:[%s383 + $0x138] sm:$0xf]
        %v464 = vld [vmem:[%s383 + $0x13c] sm:$0xf]
        %v465 = vld [vmem:[%s383 + $0x140] sm:$0xf]
        %v466 = vld [vmem:[%s383 + $0x144] sm:$0xf]
        %v467 = vld [vmem:[%s383 + $0x148] sm:$0xf]
        %v468 = vld [vmem:[%s383 + $0x14c] sm:$0xf]
        %v469 = vld [vmem:[%s383 + $0x150] sm:$0xf]
        %v470 = vld [vmem:[%s383 + $0x154] sm:$0xf]
        %v471 = vld [vmem:[%s383 + $0x158] sm:$0xf]
        %v472 = vld [vmem:[%s383 + $0x15c] sm:$0xf]
        %v473 = vld [vmem:[%s383 + $0x160] sm:$0xf]
        %v474 = vld [vmem:[%s383 + $0x164] sm:$0xf]
        %v475 = vld [vmem:[%s383 + $0x168] sm:$0xf]
        %v476 = vld [vmem:[%s383 + $0x16c] sm:$0xf]
        %v477 = vld [vmem:[%s383 + $0x170] sm:$0xf]
        %v478 = vld [vmem:[%s383 + $0x174] sm:$0xf]
        %v479 = vld [vmem:[%s383 + $0x178] sm:$0xf]
        %v480 = vld [vmem:[%s383 + $0x17c] sm:$0xf]
        %v481 = vld [vmem:[%s383 + $0x180] sm:$0xf]
        %v482 = vld [vmem:[%s383 + $0x184] sm:$0xf]
        %v483 = vld [vmem:[%s383 + $0x188] sm:$0xf]
        %v484 = vld [vmem:[%s383 + $0x18c] sm:$0xf]
        %v485 = vld [vmem:[%s383 + $0x190] sm:$0xf]
        %v486 = vld [vmem:[%s383 + $0x194] sm:$0xf]
        %v487 = vld [vmem:[%s383 + $0x198] sm:$0xf]
        %v488 = vld [vmem:[%s383 + $0x19c] sm:$0xf]
        %v489 = vld [vmem:[%s383 + $0x1a0] sm:$0xf]
        %v490 = vld [vmem:[%s383 + $0x1a4] sm:$0xf]
        %v491 = vld [vmem:[%s383 + $0x1a8] sm:$0xf]
        %v492 = vld [vmem:[%s383 + $0x1ac] sm:$0xf]
        %v493 = vld [vmem:[%s383 + $0x1b0] sm:$0xf]
        %v494 = vld [vmem:[%s383 + $0x1b4] sm:$0xf]
        %v495 = vld [vmem:[%s383 + $0x1b8] sm:$0xf]
        %v496 = vld [vmem:[%s383 + $0x1bc] sm:$0xf]
        %v497 = vld [vmem:[%s383 + $0x1c0] sm:$0x3]
        %v498 = vld [vmem:[%s1] sm:$0xf]
        %v499 = vld [vmem:[%s1 + $0x4] sm:$0xf]
        %v500 = vld [vmem:[%s1 + $0x8] sm:$0xf]
        %v501 = vld [vmem:[%s1 + $0xc] sm:$0xf]
        %v502 = vld [vmem:[%s2] sm:$0x1]
        %v504 = vperm.slane %v502, 0
        %v619 = vunpack.c.l.b16 %v385
        %v620 = vunpack.c.l.b16 %v386
        %v621 = vunpack.c.l.b16 %v387
        %v622 = vunpack.c.l.b16 %v388
        %v623 = vunpack.c.l.b16 %v389
        %v624 = vunpack.c.l.b16 %v390
        %v625 = vunpack.c.l.b16 %v391
        %v626 = vunpack.c.l.b16 %v392
        %v627 = vunpack.c.l.b16 %v393
        %v628 = vunpack.c.l.b16 %v394
        %v629 = vunpack.c.l.b16 %v395
        %v630 = vunpack.c.l.b16 %v396
        %v631 = vunpack.c.l.b16 %v397
        %v632 = vunpack.c.l.b16 %v398
        %v633 = vunpack.c.l.b16 %v399
        %v634 = vunpack.c.l.b16 %v400
        %v635 = vunpack.c.l.b16 %v401
        %v636 = vunpack.c.l.b16 %v402
        %v637 = vunpack.c.l.b16 %v403
        %v638 = vunpack.c.l.b16 %v404
        %v639 = vunpack.c.l.b16 %v405
        %v640 = vunpack.c.l.b16 %v406
        %v641 = vunpack.c.l.b16 %v407
        %v642 = vunpack.c.l.b16 %v408
        %v643 = vunpack.c.l.b16 %v409
        %v644 = vunpack.c.l.b16 %v410
        %v645 = vunpack.c.l.b16 %v411
        %v646 = vunpack.c.l.b16 %v412
        %v647 = vunpack.c.l.b16 %v413
        %v648 = vunpack.c.l.b16 %v414
        %v649 = vunpack.c.l.b16 %v415
        %v650 = vunpack.c.l.b16 %v416
        %v651 = vunpack.c.l.b16 %v417
        %v652 = vunpack.c.l.b16 %v418
        %v653 = vunpack.c.l.b16 %v419
        %v654 = vunpack.c.l.b16 %v420
        %v655 = vunpack.c.l.b16 %v421
        %v656 = vunpack.c.l.b16 %v422
        %v657 = vunpack.c.l.b16 %v423
        %v658 = vunpack.c.l.b16 %v424
        %v659 = vunpack.c.l.b16 %v425
        %v660 = vunpack.c.l.b16 %v426
        %v661 = vunpack.c.l.b16 %v427
        %v662 = vunpack.c.l.b16 %v428
        %v663 = vunpack.c.l.b16 %v429
        %v664 = vunpack.c.l.b16 %v430
        %v665 = vunpack.c.l.b16 %v431
        %v666 = vunpack.c.l.b16 %v432
        %v667 = vunpack.c.l.b16 %v433
        %v668 = vunpack.c.l.b16 %v434
        %v669 = vunpack.c.l.b16 %v435
        %v670 = vunpack.c.l.b16 %v436
        %v671 = vunpack.c.l.b16 %v437
        %v672 = vunpack.c.l.b16 %v438
        %v673 = vunpack.c.l.b16 %v439
        %v674 = vunpack.c.l.b16 %v440
        %v675 = vunpack.c.l.b16 %v441
        %v676 = vunpack.c.l.b16 %v442
        %v677 = vunpack.c.l.b16 %v443
        %v678 = vunpack.c.l.b16 %v444
        %v679 = vunpack.c.l.b16 %v445
        %v680 = vunpack.c.l.b16 %v446
        %v681 = vunpack.c.l.b16 %v447
        %v682 = vunpack.c.l.b16 %v448
        %v683 = vunpack.c.l.b16 %v449
        %v684 = vunpack.c.l.b16 %v450
        %v685 = vunpack.c.l.b16 %v451
        %v686 = vunpack.c.l.b16 %v452
        %v687 = vunpack.c.l.b16 %v453
        %v688 = vunpack.c.l.b16 %v454
        %v689 = vunpack.c.l.b16 %v455
        %v690 = vunpack.c.l.b16 %v456
        %v691 = vunpack.c.l.b16 %v457
        %v692 = vunpack.c.l.b16 %v458
        %v693 = vunpack.c.l.b16 %v459
        %v694 = vunpack.c.l.b16 %v460
        %v695 = vunpack.c.l.b16 %v461
        %v696 = vunpack.c.l.b16 %v462
        %v697 = vunpack.c.l.b16 %v463
        %v698 = vunpack.c.l.b16 %v464
        %v699 = vunpack.c.l.b16 %v465
        %v700 = vunpack.c.l.b16 %v466
        %v701 = vunpack.c.l.b16 %v467
        %v702 = vunpack.c.l.b16 %v468
        %v703 = vunpack.c.l.b16 %v469
        %v704 = vunpack.c.l.b16 %v470
        %v705 = vunpack.c.l.b16 %v471
        %v706 = vunpack.c.l.b16 %v472
        %v707 = vunpack.c.l.b16 %v473
        %v708 = vunpack.c.l.b16 %v474
        %v709 = vunpack.c.l.b16 %v475
        %v710 = vunpack.c.l.b16 %v476
        %v711 = vunpack.c.l.b16 %v477
        %v712 = vunpack.c.l.b16 %v478
        %v713 = vunpack.c.l.b16 %v479
        %v714 = vunpack.c.l.b16 %v480
        %v715 = vunpack.c.l.b16 %v481
        %v716 = vunpack.c.l.b16 %v482
        %v717 = vunpack.c.l.b16 %v483
        %v718 = vunpack.c.l.b16 %v484
        %v719 = vunpack.c.l.b16 %v485
        %v720 = vunpack.c.l.b16 %v486
        %v721 = vunpack.c.l.b16 %v487
        %v722 = vunpack.c.l.b16 %v488
        %v723 = vunpack.c.l.b16 %v489
        %v724 = vunpack.c.l.b16 %v490
        %v725 = vunpack.c.l.b16 %v491
        %v726 = vunpack.c.l.b16 %v492
        %v727 = vunpack.c.l.b16 %v493
        %v728 = vunpack.c.l.b16 %v494
        %v729 = vunpack.c.l.b16 %v495
        %v730 = vunpack.c.l.b16 %v496
        %v731 = vunpack.c.l.b16 %v497
        %v732 = vpack.c.b16 %v620, %v619
        %v733 = vpack.c.b16 %v622, %v621
        %v734 = vpack.c.b16 %v624, %v623
        %v735 = vpack.c.b16 %v626, %v625
        %v736 = vpack.c.b16 %v628, %v627
        %v737 = vpack.c.b16 %v630, %v629
        %v738 = vpack.c.b16 %v632, %v631
        %v739 = vpack.c.b16 %v634, %v633
        %v740 = vpack.c.b16 %v636, %v635
        %v741 = vpack.c.b16 %v638, %v637
        %v742 = vpack.c.b16 %v640, %v639
        %v743 = vpack.c.b16 %v642, %v641
        %v744 = vpack.c.b16 %v644, %v643
        %v745 = vpack.c.b16 %v646, %v645
        %v746 = vpack.c.b16 %v648, %v647
        %v747 = vpack.c.b16 %v650, %v649
        %v748 = vpack.c.b16 %v652, %v651
        %v749 = vpack.c.b16 %v654, %v653
        %v750 = vpack.c.b16 %v656, %v655
        %v751 = vpack.c.b16 %v658, %v657
        %v752 = vpack.c.b16 %v660, %v659
        %v753 = vpack.c.b16 %v662, %v661
        %v754 = vpack.c.b16 %v664, %v663
        %v755 = vpack.c.b16 %v666, %v665
        %v756 = vpack.c.b16 %v668, %v667
        %v757 = vpack.c.b16 %v670, %v669
        %v758 = vpack.c.b16 %v672, %v671
        %v759 = vpack.c.b16 %v674, %v673
        %v760 = vpack.c.b16 %v676, %v675
        %v761 = vpack.c.b16 %v678, %v677
        %v762 = vpack.c.b16 %v680, %v679
        %v763 = vpack.c.b16 %v682, %v681
        %v764 = vpack.c.b16 %v684, %v683
        %v765 = vpack.c.b16 %v686, %v685
        %v766 = vpack.c.b16 %v688, %v687
        %v767 = vpack.c.b16 %v690, %v689
        %v768 = vpack.c.b16 %v692, %v691
        %v769 = vpack.c.b16 %v694, %v693
        %v770 = vpack.c.b16 %v696, %v695
        %v771 = vpack.c.b16 %v698, %v697
        %v772 = vpack.c.b16 %v700, %v699
        %v773 = vpack.c.b16 %v702, %v701
        %v774 = vpack.c.b16 %v704, %v703
        %v775 = vpack.c.b16 %v706, %v705
        %v776 = vpack.c.b16 %v708, %v707
        %v777 = vpack.c.b16 %v710, %v709
        %v778 = vpack.c.b16 %v712, %v711
        %v779 = vpack.c.b16 %v714, %v713
        %v780 = vpack.c.b16 %v716, %v715
        %v781 = vpack.c.b16 %v718, %v717
        %v782 = vpack.c.b16 %v720, %v719
        %v783 = vpack.c.b16 %v722, %v721
        %v784 = vpack.c.b16 %v724, %v723
        %v785 = vpack.c.b16 %v726, %v725
        %v786 = vpack.c.b16 %v728, %v727
        %v787 = vpack.c.b16 %v730, %v729
        %v788 = vpack.c.b16 %v731, %v731
        %v793 = vunpack.c.l.b16 %v498
        %v794 = vunpack.c.l.b16 %v499
        %v795 = vunpack.c.l.b16 %v500
        %v796 = vunpack.c.l.b16 %v501
        %v797 = vpack.c.b16 %v794, %v793
        %v798 = vpack.c.b16 %v796, %v795
        %vm801 = vcmask 261120
        %v803 = vsel %vm801, %v732, 0
        %v806 = vsel %vm801, %v733, 0
        %v809 = vsel %vm801, %v734, 0
        %v812 = vsel %vm801, %v735, 0
        %v815 = vsel %vm801, %v736, 0
        %v818 = vsel %vm801, %v737, 0
        %v821 = vsel %vm801, %v738, 0
        %v824 = vsel %vm801, %v739, 0
        %v827 = vsel %vm801, %v740, 0
        %v830 = vsel %vm801, %v741, 0
        %v833 = vsel %vm801, %v742, 0
        %v836 = vsel %vm801, %v743, 0
        %v839 = vsel %vm801, %v744, 0
        %v842 = vsel %vm801, %v745, 0
        %v845 = vsel %vm801, %v746, 0
        %v848 = vsel %vm801, %v747, 0
        %v851 = vsel %vm801, %v748, 0
        %v854 = vsel %vm801, %v749, 0
        %v857 = vsel %vm801, %v750, 0
        %v860 = vsel %vm801, %v751, 0
        %v863 = vsel %vm801, %v752, 0
        %v866 = vsel %vm801, %v753, 0
        %v869 = vsel %vm801, %v754, 0
        %v872 = vsel %vm801, %v755, 0
        %v875 = vsel %vm801, %v756, 0
        %v878 = vsel %vm801, %v757, 0
        %v881 = vsel %vm801, %v758, 0
        %v884 = vsel %vm801, %v759, 0
        %v887 = vsel %vm801, %v760, 0
        %v890 = vsel %vm801, %v761, 0
        %v893 = vsel %vm801, %v762, 0
        %v896 = vsel %vm801, %v763, 0
        %v899 = vsel %vm801, %v764, 0
        %v902 = vsel %vm801, %v765, 0
        %v905 = vsel %vm801, %v766, 0
        %v908 = vsel %vm801, %v767, 0
        %v911 = vsel %vm801, %v768, 0
        %v914 = vsel %vm801, %v769, 0
        %v917 = vsel %vm801, %v770, 0
        %v920 = vsel %vm801, %v771, 0
        %v923 = vsel %vm801, %v772, 0
        %v926 = vsel %vm801, %v773, 0
        %v929 = vsel %vm801, %v774, 0
        %v932 = vsel %vm801, %v775, 0
        %v935 = vsel %vm801, %v776, 0
        %v938 = vsel %vm801, %v777, 0
        %v941 = vsel %vm801, %v778, 0
        %v944 = vsel %vm801, %v779, 0
        %v947 = vsel %vm801, %v780, 0
        %v950 = vsel %vm801, %v781, 0
        %v953 = vsel %vm801, %v782, 0
        %v956 = vsel %vm801, %v783, 0
        %v959 = vsel %vm801, %v784, 0
        %v962 = vsel %vm801, %v785, 0
        %v965 = vsel %vm801, %v786, 0
        %v968 = vsel %vm801, %v787, 0
        %v971 = vsel %vm801, %v788, 0
        %973 = vmatpush.bf16.msra.mxu0 0
        %974 = vmatpush.bf16.msra.mxu0 0
        %975 = vmatpush.bf16.msra.mxu0 0
        %976 = vmatpush.bf16.msra.mxu0 0
        %977 = vmatpush.bf16.msra.mxu0 0
        %978 = vmatpush.bf16.msra.mxu0 0
        %979 = vmatpush.bf16.msra.mxu0 %v798
        %980 = vmatpush.bf16.msra.mxu0 %v797
        %981 = vmatmul.bf16.gmra.mxu0 %v803
        %v982 = vpop.f32.mrf.mxu0
        %v983 = vadd.f32 %v504, %v982
        %v984 = vpop.f32.mrf.mxu0
        %v985 = vadd.f32 %v504, %v984
        %986 = vmatmul.bf16.gmra.mxu0 %v806
        %v987 = vpop.f32.mrf.mxu0
        %v988 = vadd.f32 %v504, %v987
        %v989 = vpop.f32.mrf.mxu0
        %v990 = vadd.f32 %v504, %v989
        %991 = vmatmul.bf16.gmra.mxu0 %v809
        %v992 = vpop.f32.mrf.mxu0
        %v993 = vadd.f32 %v504, %v992
        %v994 = vpop.f32.mrf.mxu0
        %v995 = vadd.f32 %v504, %v994
        %996 = vmatmul.bf16.gmra.mxu0 %v812
        %v997 = vpop.f32.mrf.mxu0
        %v998 = vadd.f32 %v504, %v997
        %v999 = vpop.f32.mrf.mxu0
        %v1000 = vadd.f32 %v504, %v999
        %1001 = vmatmul.bf16.gmra.mxu0 %v815
        %v1002 = vpop.f32.mrf.mxu0
        %v1003 = vadd.f32 %v504, %v1002
        %v1004 = vpop.f32.mrf.mxu0
        %v1005 = vadd.f32 %v504, %v1004
        %1006 = vmatmul.bf16.gmra.mxu0 %v818
        %v1007 = vpop.f32.mrf.mxu0
        %v1008 = vadd.f32 %v504, %v1007
        %v1009 = vpop.f32.mrf.mxu0
        %v1010 = vadd.f32 %v504, %v1009
        %1011 = vmatmul.bf16.gmra.mxu0 %v821
        %v1012 = vpop.f32.mrf.mxu0
        %v1013 = vadd.f32 %v504, %v1012
        %v1014 = vpop.f32.mrf.mxu0
        %v1015 = vadd.f32 %v504, %v1014
        %1016 = vmatmul.bf16.gmra.mxu0 %v824
        %v1017 = vpop.f32.mrf.mxu0
        %v1018 = vadd.f32 %v504, %v1017
        %v1019 = vpop.f32.mrf.mxu0
        %v1020 = vadd.f32 %v504, %v1019
        %1021 = vmatmul.bf16.gmra.mxu0 %v827
        %v1022 = vpop.f32.mrf.mxu0
        %v1023 = vadd.f32 %v504, %v1022
        %v1024 = vpop.f32.mrf.mxu0
        %v1025 = vadd.f32 %v504, %v1024
        %1026 = vmatmul.bf16.gmra.mxu0 %v830
        %v1027 = vpop.f32.mrf.mxu0
        %v1028 = vadd.f32 %v504, %v1027
        %v1029 = vpop.f32.mrf.mxu0
        %v1030 = vadd.f32 %v504, %v1029
        %1031 = vmatmul.bf16.gmra.mxu0 %v833
        %v1032 = vpop.f32.mrf.mxu0
        %v1033 = vadd.f32 %v504, %v1032
        %v1034 = vpop.f32.mrf.mxu0
        %v1035 = vadd.f32 %v504, %v1034
        %1036 = vmatmul.bf16.gmra.mxu0 %v836
        %v1037 = vpop.f32.mrf.mxu0
        %v1038 = vadd.f32 %v504, %v1037
        %v1039 = vpop.f32.mrf.mxu0
        %v1040 = vadd.f32 %v504, %v1039
        %1041 = vmatmul.bf16.gmra.mxu0 %v839
        %v1042 = vpop.f32.mrf.mxu0
        %v1043 = vadd.f32 %v504, %v1042
        %v1044 = vpop.f32.mrf.mxu0
        %v1045 = vadd.f32 %v504, %v1044
        %1046 = vmatmul.bf16.gmra.mxu0 %v842
        %v1047 = vpop.f32.mrf.mxu0
        %v1048 = vadd.f32 %v504, %v1047
        %v1049 = vpop.f32.mrf.mxu0
        %v1050 = vadd.f32 %v504, %v1049
        %1051 = vmatmul.bf16.gmra.mxu0 %v845
        %v1052 = vpop.f32.mrf.mxu0
        %v1053 = vadd.f32 %v504, %v1052
        %v1054 = vpop.f32.mrf.mxu0
        %v1055 = vadd.f32 %v504, %v1054
        %1056 = vmatmul.bf16.gmra.mxu0 %v848
        %v1057 = vpop.f32.mrf.mxu0
        %v1058 = vadd.f32 %v504, %v1057
        %v1059 = vpop.f32.mrf.mxu0
        %v1060 = vadd.f32 %v504, %v1059
        %1061 = vmatmul.bf16.gmra.mxu0 %v851
        %v1062 = vpop.f32.mrf.mxu0
        %v1063 = vadd.f32 %v504, %v1062
        %v1064 = vpop.f32.mrf.mxu0
        %v1065 = vadd.f32 %v504, %v1064
        %1066 = vmatmul.bf16.gmra.mxu0 %v854
        %v1067 = vpop.f32.mrf.mxu0
        %v1068 = vadd.f32 %v504, %v1067
        %v1069 = vpop.f32.mrf.mxu0
        %v1070 = vadd.f32 %v504, %v1069
        %1071 = vmatmul.bf16.gmra.mxu0 %v857
        %v1072 = vpop.f32.mrf.mxu0
        %v1073 = vadd.f32 %v504, %v1072
        %v1074 = vpop.f32.mrf.mxu0
        %v1075 = vadd.f32 %v504, %v1074
        %1076 = vmatmul.bf16.gmra.mxu0 %v860
        %v1077 = vpop.f32.mrf.mxu0
        %v1078 = vadd.f32 %v504, %v1077
        %v1079 = vpop.f32.mrf.mxu0
        %v1080 = vadd.f32 %v504, %v1079
        %1081 = vmatmul.bf16.gmra.mxu0 %v863
        %v1082 = vpop.f32.mrf.mxu0
        %v1083 = vadd.f32 %v504, %v1082
        %v1084 = vpop.f32.mrf.mxu0
        %v1085 = vadd.f32 %v504, %v1084
        %1086 = vmatmul.bf16.gmra.mxu0 %v866
        %v1087 = vpop.f32.mrf.mxu0
        %v1088 = vadd.f32 %v504, %v1087
        %v1089 = vpop.f32.mrf.mxu0
        %v1090 = vadd.f32 %v504, %v1089
        %1091 = vmatmul.bf16.gmra.mxu0 %v869
        %v1092 = vpop.f32.mrf.mxu0
        %v1093 = vadd.f32 %v504, %v1092
        %v1094 = vpop.f32.mrf.mxu0
        %v1095 = vadd.f32 %v504, %v1094
        %1096 = vmatmul.bf16.gmra.mxu0 %v872
        %v1097 = vpop.f32.mrf.mxu0
        %v1098 = vadd.f32 %v504, %v1097
        %v1099 = vpop.f32.mrf.mxu0
        %v1100 = vadd.f32 %v504, %v1099
        %1101 = vmatmul.bf16.gmra.mxu0 %v875
        %v1102 = vpop.f32.mrf.mxu0
        %v1103 = vadd.f32 %v504, %v1102
        %v1104 = vpop.f32.mrf.mxu0
        %v1105 = vadd.f32 %v504, %v1104
        %1106 = vmatmul.bf16.gmra.mxu0 %v878
        %v1107 = vpop.f32.mrf.mxu0
        %v1108 = vadd.f32 %v504, %v1107
        %v1109 = vpop.f32.mrf.mxu0
        %v1110 = vadd.f32 %v504, %v1109
        %1111 = vmatmul.bf16.gmra.mxu0 %v881
        %v1112 = vpop.f32.mrf.mxu0
        %v1113 = vadd.f32 %v504, %v1112
        %v1114 = vpop.f32.mrf.mxu0
        %v1115 = vadd.f32 %v504, %v1114
        %1116 = vmatmul.bf16.gmra.mxu0 %v884
        %v1117 = vpop.f32.mrf.mxu0
        %v1118 = vadd.f32 %v504, %v1117
        %v1119 = vpop.f32.mrf.mxu0
        %v1120 = vadd.f32 %v504, %v1119
        %1121 = vmatmul.bf16.gmra.mxu0 %v887
        %v1122 = vpop.f32.mrf.mxu0
        %v1123 = vadd.f32 %v504, %v1122
        %v1124 = vpop.f32.mrf.mxu0
        %v1125 = vadd.f32 %v504, %v1124
        %1126 = vmatmul.bf16.gmra.mxu0 %v890
        %v1127 = vpop.f32.mrf.mxu0
        %v1128 = vadd.f32 %v504, %v1127
        %v1129 = vpop.f32.mrf.mxu0
        %v1130 = vadd.f32 %v504, %v1129
        %1131 = vmatmul.bf16.gmra.mxu0 %v893
        %v1132 = vpop.f32.mrf.mxu0
        %v1133 = vadd.f32 %v504, %v1132
        %v1134 = vpop.f32.mrf.mxu0
        %v1135 = vadd.f32 %v504, %v1134
        %1136 = vmatmul.bf16.gmra.mxu0 %v896
        %v1137 = vpop.f32.mrf.mxu0
        %v1138 = vadd.f32 %v504, %v1137
        %v1139 = vpop.f32.mrf.mxu0
        %v1140 = vadd.f32 %v504, %v1139
        %1141 = vmatmul.bf16.gmra.mxu0 %v899
        %v1142 = vpop.f32.mrf.mxu0
        %v1143 = vadd.f32 %v504, %v1142
        %v1144 = vpop.f32.mrf.mxu0
        %v1145 = vadd.f32 %v504, %v1144
        %1146 = vmatmul.bf16.gmra.mxu0 %v902
        %v1147 = vpop.f32.mrf.mxu0
        %v1148 = vadd.f32 %v504, %v1147
        %v1149 = vpop.f32.mrf.mxu0
        %v1150 = vadd.f32 %v504, %v1149
        %1151 = vmatmul.bf16.gmra.mxu0 %v905
        %v1152 = vpop.f32.mrf.mxu0
        %v1153 = vadd.f32 %v504, %v1152
        %v1154 = vpop.f32.mrf.mxu0
        %v1155 = vadd.f32 %v504, %v1154
        %1156 = vmatmul.bf16.gmra.mxu0 %v908
        %v1157 = vpop.f32.mrf.mxu0
        %v1158 = vadd.f32 %v504, %v1157
        %v1159 = vpop.f32.mrf.mxu0
        %v1160 = vadd.f32 %v504, %v1159
        %1161 = vmatmul.bf16.gmra.mxu0 %v911
        %v1162 = vpop.f32.mrf.mxu0
        %v1163 = vadd.f32 %v504, %v1162
        %v1164 = vpop.f32.mrf.mxu0
        %v1165 = vadd.f32 %v504, %v1164
        %1166 = vmatmul.bf16.gmra.mxu0 %v914
        %v1167 = vpop.f32.mrf.mxu0
        %v1168 = vadd.f32 %v504, %v1167
        %v1169 = vpop.f32.mrf.mxu0
        %v1170 = vadd.f32 %v504, %v1169
        %1171 = vmatmul.bf16.gmra.mxu0 %v917
        %v1172 = vpop.f32.mrf.mxu0
        %v1173 = vadd.f32 %v504, %v1172
        %v1174 = vpop.f32.mrf.mxu0
        %v1175 = vadd.f32 %v504, %v1174
        %1176 = vmatmul.bf16.gmra.mxu0 %v920
        %v1177 = vpop.f32.mrf.mxu0
        %v1178 = vadd.f32 %v504, %v1177
        %v1179 = vpop.f32.mrf.mxu0
        %v1180 = vadd.f32 %v504, %v1179
        %1181 = vmatmul.bf16.gmra.mxu0 %v923
        %v1182 = vpop.f32.mrf.mxu0
        %v1183 = vadd.f32 %v504, %v1182
        %v1184 = vpop.f32.mrf.mxu0
        %v1185 = vadd.f32 %v504, %v1184
        %1186 = vmatmul.bf16.gmra.mxu0 %v926
        %v1187 = vpop.f32.mrf.mxu0
        %v1188 = vadd.f32 %v504, %v1187
        %v1189 = vpop.f32.mrf.mxu0
        %v1190 = vadd.f32 %v504, %v1189
        %1191 = vmatmul.bf16.gmra.mxu0 %v929
        %v1192 = vpop.f32.mrf.mxu0
        %v1193 = vadd.f32 %v504, %v1192
        %v1194 = vpop.f32.mrf.mxu0
        %v1195 = vadd.f32 %v504, %v1194
        %1196 = vmatmul.bf16.gmra.mxu0 %v932
        %v1197 = vpop.f32.mrf.mxu0
        %v1198 = vadd.f32 %v504, %v1197
        %v1199 = vpop.f32.mrf.mxu0
        %v1200 = vadd.f32 %v504, %v1199
        %1201 = vmatmul.bf16.gmra.mxu0 %v935
        %v1202 = vpop.f32.mrf.mxu0
        %v1203 = vadd.f32 %v504, %v1202
        %v1204 = vpop.f32.mrf.mxu0
        %v1205 = vadd.f32 %v504, %v1204
        %1206 = vmatmul.bf16.gmra.mxu0 %v938
        %v1207 = vpop.f32.mrf.mxu0
        %v1208 = vadd.f32 %v504, %v1207
        %v1209 = vpop.f32.mrf.mxu0
        %v1210 = vadd.f32 %v504, %v1209
        %1211 = vmatmul.bf16.gmra.mxu0 %v941
        %v1212 = vpop.f32.mrf.mxu0
        %v1213 = vadd.f32 %v504, %v1212
        %v1214 = vpop.f32.mrf.mxu0
        %v1215 = vadd.f32 %v504, %v1214
        %1216 = vmatmul.bf16.gmra.mxu0 %v944
        %v1217 = vpop.f32.mrf.mxu0
        %v1218 = vadd.f32 %v504, %v1217
        %v1219 = vpop.f32.mrf.mxu0
        %v1220 = vadd.f32 %v504, %v1219
        %1221 = vmatmul.bf16.gmra.mxu0 %v947
        %v1222 = vpop.f32.mrf.mxu0
        %v1223 = vadd.f32 %v504, %v1222
        %v1224 = vpop.f32.mrf.mxu0
        %v1225 = vadd.f32 %v504, %v1224
        %1226 = vmatmul.bf16.gmra.mxu0 %v950
        %v1227 = vpop.f32.mrf.mxu0
        %v1228 = vadd.f32 %v504, %v1227
        %v1229 = vpop.f32.mrf.mxu0
        %v1230 = vadd.f32 %v504, %v1229
        %1231 = vmatmul.bf16.gmra.mxu0 %v953
        %v1232 = vpop.f32.mrf.mxu0
        %v1233 = vadd.f32 %v504, %v1232
        %v1234 = vpop.f32.mrf.mxu0
        %v1235 = vadd.f32 %v504, %v1234
        %1236 = vmatmul.bf16.gmra.mxu0 %v956
        %v1237 = vpop.f32.mrf.mxu0
        %v1238 = vadd.f32 %v504, %v1237
        %v1239 = vpop.f32.mrf.mxu0
        %v1240 = vadd.f32 %v504, %v1239
        %1241 = vmatmul.bf16.gmra.mxu0 %v959
        %v1242 = vpop.f32.mrf.mxu0
        %v1243 = vadd.f32 %v504, %v1242
        %v1244 = vpop.f32.mrf.mxu0
        %v1245 = vadd.f32 %v504, %v1244
        %1246 = vmatmul.bf16.gmra.mxu0 %v962
        %v1247 = vpop.f32.mrf.mxu0
        %v1248 = vadd.f32 %v504, %v1247
        %v1249 = vpop.f32.mrf.mxu0
        %v1250 = vadd.f32 %v504, %v1249
        %1251 = vmatmul.bf16.gmra.mxu0 %v965
        %v1252 = vpop.f32.mrf.mxu0
        %v1253 = vadd.f32 %v504, %v1252
        %v1254 = vpop.f32.mrf.mxu0
        %v1255 = vadd.f32 %v504, %v1254
        %1256 = vmatmul.bf16.gmra.mxu0 %v968
        %v1257 = vpop.f32.mrf.mxu0
        %v1258 = vadd.f32 %v504, %v1257
        %v1259 = vpop.f32.mrf.mxu0
        %v1260 = vadd.f32 %v504, %v1259
        %1261 = vmatmul.bf16.gmra.mxu0 %v971
        %v1262 = vpop.f32.mrf.mxu0
        %v1263 = vadd.f32 %v504, %v1262
        %v1264 = vpop.f32.mrf.mxu0
        %1265 = vdwg.mxu0
        %v1266 = vmax.f32 %v983, 0.0
        %v1267 = vmax.f32 %v985, 0.0
        %v1268 = vmax.f32 %v988, 0.0
        %v1269 = vmax.f32 %v990, 0.0
        %v1270 = vmax.f32 %v993, 0.0
        %v1271 = vmax.f32 %v995, 0.0
        %v1272 = vmax.f32 %v998, 0.0
        %v1273 = vmax.f32 %v1000, 0.0
        %v1274 = vmax.f32 %v1003, 0.0
        %v1275 = vmax.f32 %v1005, 0.0
        %v1276 = vmax.f32 %v1008, 0.0
        %v1277 = vmax.f32 %v1010, 0.0
        %v1278 = vmax.f32 %v1013, 0.0
        %v1279 = vmax.f32 %v1015, 0.0
        %v1280 = vmax.f32 %v1018, 0.0
        %v1281 = vmax.f32 %v1020, 0.0
        %v1282 = vmax.f32 %v1023, 0.0
        %v1283 = vmax.f32 %v1025, 0.0
        %v1284 = vmax.f32 %v1028, 0.0
        %v1285 = vmax.f32 %v1030, 0.0
        %v1286 = vmax.f32 %v1033, 0.0
        %v1287 = vmax.f32 %v1035, 0.0
        %v1288 = vmax.f32 %v1038, 0.0
        %v1289 = vmax.f32 %v1040, 0.0
        %v1290 = vmax.f32 %v1043, 0.0
        %v1291 = vmax.f32 %v1045, 0.0
        %v1292 = vmax.f32 %v1048, 0.0
        %v1293 = vmax.f32 %v1050, 0.0
        %v1294 = vmax.f32 %v1053, 0.0
        %v1295 = vmax.f32 %v1055, 0.0
        %v1296 = vmax.f32 %v1058, 0.0
        %v1297 = vmax.f32 %v1060, 0.0
        %v1298 = vmax.f32 %v1063, 0.0
        %v1299 = vmax.f32 %v1065, 0.0
        %v1300 = vmax.f32 %v1068, 0.0
        %v1301 = vmax.f32 %v1070, 0.0
        %v1302 = vmax.f32 %v1073, 0.0
        %v1303 = vmax.f32 %v1075, 0.0
        %v1304 = vmax.f32 %v1078, 0.0
        %v1305 = vmax.f32 %v1080, 0.0
        %v1306 = vmax.f32 %v1083, 0.0
        %v1307 = vmax.f32 %v1085, 0.0
        %v1308 = vmax.f32 %v1088, 0.0
        %v1309 = vmax.f32 %v1090, 0.0
        %v1310 = vmax.f32 %v1093, 0.0
        %v1311 = vmax.f32 %v1095, 0.0
        %v1312 = vmax.f32 %v1098, 0.0
        %v1313 = vmax.f32 %v1100, 0.0
        %v1314 = vmax.f32 %v1103, 0.0
        %v1315 = vmax.f32 %v1105, 0.0
        %v1316 = vmax.f32 %v1108, 0.0
        %v1317 = vmax.f32 %v1110, 0.0
        %v1318 = vmax.f32 %v1113, 0.0
        %v1319 = vmax.f32 %v1115, 0.0
        %v1320 = vmax.f32 %v1118, 0.0
        %v1321 = vmax.f32 %v1120, 0.0
        %v1322 = vmax.f32 %v1123, 0.0
        %v1323 = vmax.f32 %v1125, 0.0
        %v1324 = vmax.f32 %v1128, 0.0
        %v1325 = vmax.f32 %v1130, 0.0
        %v1326 = vmax.f32 %v1133, 0.0
        %v1327 = vmax.f32 %v1135, 0.0
        %v1328 = vmax.f32 %v1138, 0.0
        %v1329 = vmax.f32 %v1140, 0.0
        %v1330 = vmax.f32 %v1143, 0.0
        %v1331 = vmax.f32 %v1145, 0.0
        %v1332 = vmax.f32 %v1148, 0.0
        %v1333 = vmax.f32 %v1150, 0.0
        %v1334 = vmax.f32 %v1153, 0.0
        %v1335 = vmax.f32 %v1155, 0.0
        %v1336 = vmax.f32 %v1158, 0.0
        %v1337 = vmax.f32 %v1160, 0.0
        %v1338 = vmax.f32 %v1163, 0.0
        %v1339 = vmax.f32 %v1165, 0.0
        %v1340 = vmax.f32 %v1168, 0.0
        %v1341 = vmax.f32 %v1170, 0.0
        %v1342 = vmax.f32 %v1173, 0.0
        %v1343 = vmax.f32 %v1175, 0.0
        %v1344 = vmax.f32 %v1178, 0.0
        %v1345 = vmax.f32 %v1180, 0.0
        %v1346 = vmax.f32 %v1183, 0.0
        %v1347 = vmax.f32 %v1185, 0.0
        %v1348 = vmax.f32 %v1188, 0.0
        %v1349 = vmax.f32 %v1190, 0.0
        %v1350 = vmax.f32 %v1193, 0.0
        %v1351 = vmax.f32 %v1195, 0.0
        %v1352 = vmax.f32 %v1198, 0.0
        %v1353 = vmax.f32 %v1200, 0.0
        %v1354 = vmax.f32 %v1203, 0.0
        %v1355 = vmax.f32 %v1205, 0.0
        %v1356 = vmax.f32 %v1208, 0.0
        %v1357 = vmax.f32 %v1210, 0.0
        %v1358 = vmax.f32 %v1213, 0.0
        %v1359 = vmax.f32 %v1215, 0.0
        %v1360 = vmax.f32 %v1218, 0.0
        %v1361 = vmax.f32 %v1220, 0.0
        %v1362 = vmax.f32 %v1223, 0.0
        %v1363 = vmax.f32 %v1225, 0.0
        %v1364 = vmax.f32 %v1228, 0.0
        %v1365 = vmax.f32 %v1230, 0.0
        %v1366 = vmax.f32 %v1233, 0.0
        %v1367 = vmax.f32 %v1235, 0.0
        %v1368 = vmax.f32 %v1238, 0.0
        %v1369 = vmax.f32 %v1240, 0.0
        %v1370 = vmax.f32 %v1243, 0.0
        %v1371 = vmax.f32 %v1245, 0.0
        %v1372 = vmax.f32 %v1248, 0.0
        %v1373 = vmax.f32 %v1250, 0.0
        %v1374 = vmax.f32 %v1253, 0.0
        %v1375 = vmax.f32 %v1255, 0.0
        %v1376 = vmax.f32 %v1258, 0.0
        %v1377 = vmax.f32 %v1260, 0.0
        %v1378 = vmax.f32 %v1263, 0.0
        %v1491 = vrot.slane %v1266, 4
        %v1492 = vrot.slane %v1267, 4
        %v1493 = vrot.slane %v1268, 4
        %v1494 = vrot.slane %v1269, 4
        %v1495 = vrot.slane %v1270, 4
        %v1496 = vrot.slane %v1271, 4
        %v1497 = vrot.slane %v1272, 4
        %v1498 = vrot.slane %v1273, 4
        %v1499 = vrot.slane %v1274, 4
        %v1500 = vrot.slane %v1275, 4
        %v1501 = vrot.slane %v1276, 4
        %v1502 = vrot.slane %v1277, 4
        %v1503 = vrot.slane %v1278, 4
        %v1504 = vrot.slane %v1279, 4
        %v1505 = vrot.slane %v1280, 4
        %v1506 = vrot.slane %v1281, 4
        %v1507 = vrot.slane %v1282, 4
        %v1508 = vrot.slane %v1283, 4
        %v1509 = vrot.slane %v1284, 4
        %v1510 = vrot.slane %v1285, 4
        %v1511 = vrot.slane %v1286, 4
        %v1512 = vrot.slane %v1287, 4
        %v1513 = vrot.slane %v1288, 4
        %v1514 = vrot.slane %v1289, 4
        %v1515 = vrot.slane %v1290, 4
        %v1516 = vrot.slane %v1291, 4
        %v1517 = vrot.slane %v1292, 4
        %v1518 = vrot.slane %v1293, 4
        %v1519 = vrot.slane %v1294, 4
        %v1520 = vrot.slane %v1295, 4
        %v1521 = vrot.slane %v1296, 4
        %v1522 = vrot.slane %v1297, 4
        %v1523 = vrot.slane %v1298, 4
        %v1524 = vrot.slane %v1299, 4
        %v1525 = vrot.slane %v1300, 4
        %v1526 = vrot.slane %v1301, 4
        %v1527 = vrot.slane %v1302, 4
        %v1528 = vrot.slane %v1303, 4
        %v1529 = vrot.slane %v1304, 4
        %v1530 = vrot.slane %v1305, 4
        %v1531 = vrot.slane %v1306, 4
        %v1532 = vrot.slane %v1307, 4
        %v1533 = vrot.slane %v1308, 4
        %v1534 = vrot.slane %v1309, 4
        %v1535 = vrot.slane %v1310, 4
        %v1536 = vrot.slane %v1311, 4
        %v1537 = vrot.slane %v1312, 4
        %v1538 = vrot.slane %v1313, 4
        %v1539 = vrot.slane %v1314, 4
        %v1540 = vrot.slane %v1315, 4
        %v1541 = vrot.slane %v1316, 4
        %v1542 = vrot.slane %v1317, 4
        %v1543 = vrot.slane %v1318, 4
        %v1544 = vrot.slane %v1319, 4
        %v1545 = vrot.slane %v1320, 4
        %v1546 = vrot.slane %v1321, 4
        %v1547 = vrot.slane %v1322, 4
        %v1548 = vrot.slane %v1323, 4
        %v1549 = vrot.slane %v1324, 4
        %v1550 = vrot.slane %v1325, 4
        %v1551 = vrot.slane %v1326, 4
        %v1552 = vrot.slane %v1327, 4
        %v1553 = vrot.slane %v1328, 4
        %v1554 = vrot.slane %v1329, 4
        %v1555 = vrot.slane %v1330, 4
        %v1556 = vrot.slane %v1331, 4
        %v1557 = vrot.slane %v1332, 4
        %v1558 = vrot.slane %v1333, 4
        %v1559 = vrot.slane %v1334, 4
        %v1560 = vrot.slane %v1335, 4
        %v1561 = vrot.slane %v1336, 4
        %v1562 = vrot.slane %v1337, 4
        %v1563 = vrot.slane %v1338, 4
        %v1564 = vrot.slane %v1339, 4
        %v1565 = vrot.slane %v1340, 4
        %v1566 = vrot.slane %v1341, 4
        %v1567 = vrot.slane %v1342, 4
        %v1568 = vrot.slane %v1343, 4
        %v1569 = vrot.slane %v1344, 4
        %v1570 = vrot.slane %v1345, 4
        %v1571 = vrot.slane %v1346, 4
        %v1572 = vrot.slane %v1347, 4
        %v1573 = vrot.slane %v1348, 4
        %v1574 = vrot.slane %v1349, 4
        %v1575 = vrot.slane %v1350, 4
        %v1576 = vrot.slane %v1351, 4
        %v1577 = vrot.slane %v1352, 4
        %v1578 = vrot.slane %v1353, 4
        %v1579 = vrot.slane %v1354, 4
        %v1580 = vrot.slane %v1355, 4
        %v1581 = vrot.slane %v1356, 4
        %v1582 = vrot.slane %v1357, 4
        %v1583 = vrot.slane %v1358, 4
        %v1584 = vrot.slane %v1359, 4
        %v1585 = vrot.slane %v1360, 4
        %v1586 = vrot.slane %v1361, 4
        %v1587 = vrot.slane %v1362, 4
        %v1588 = vrot.slane %v1363, 4
        %v1589 = vrot.slane %v1364, 4
        %v1590 = vrot.slane %v1365, 4
        %v1591 = vrot.slane %v1366, 4
        %v1592 = vrot.slane %v1367, 4
        %v1593 = vrot.slane %v1368, 4
        %v1594 = vrot.slane %v1369, 4
        %v1595 = vrot.slane %v1370, 4
        %v1596 = vrot.slane %v1371, 4
        %v1597 = vrot.slane %v1372, 4
        %v1598 = vrot.slane %v1373, 4
        %v1599 = vrot.slane %v1374, 4
        %v1600 = vrot.slane %v1375, 4
        %v1601 = vrot.slane %v1376, 4
        %v1602 = vrot.slane %v1377, 4
        %vm1715 = vcmask 125952
        %v1716 = vsel %vm1715, %v1266, -inf
        %v1717 = vsel %vm1715, %v1503, -inf
        %v1718 = vmax.f32 %v1716, %v1717
        %v1719 = vsel %vm1715, %v1291, -inf
        %v1720 = vmax.f32 %v1718, %v1719
        %v1721 = vsel %vm1715, %v1528, -inf
        %v1722 = vmax.f32 %v1720, %v1721
        %v1723 = vsel %vm1715, %v1316, -inf
        %v1724 = vmax.f32 %v1722, %v1723
        %v1725 = vsel %vm1715, %v1553, -inf
        %v1726 = vmax.f32 %v1724, %v1725
        %v1727 = vsel %vm1715, %v1341, -inf
        %v1728 = vmax.f32 %v1726, %v1727
        %v1729 = vsel %vm1715, %v1578, -inf
        %v1730 = vmax.f32 %v1728, %v1729
        %v1731 = vsel %vm1715, %v1366, -inf
        %v1732 = vmax.f32 %v1730, %v1731
        %v1733 = vsel %vm1715, %v1491, -inf
        %v1734 = vsel %vm1715, %v1279, -inf
        %v1735 = vmax.f32 %v1733, %v1734
        %v1736 = vsel %vm1715, %v1516, -inf
        %v1737 = vmax.f32 %v1735, %v1736
        %v1738 = vsel %vm1715, %v1304, -inf
        %v1739 = vmax.f32 %v1737, %v1738
        %v1740 = vsel %vm1715, %v1541, -inf
        %v1741 = vmax.f32 %v1739, %v1740
        %v1742 = vsel %vm1715, %v1329, -inf
        %v1743 = vmax.f32 %v1741, %v1742
        %v1744 = vsel %vm1715, %v1566, -inf
        %v1745 = vmax.f32 %v1743, %v1744
        %v1746 = vsel %vm1715, %v1354, -inf
        %v1747 = vmax.f32 %v1745, %v1746
        %v1748 = vsel %vm1715, %v1591, -inf
        %v1749 = vmax.f32 %v1747, %v1748
        %v1750 = vsel %vm1715, %v1267, -inf
        %v1751 = vsel %vm1715, %v1504, -inf
        %v1752 = vmax.f32 %v1750, %v1751
        %v1753 = vsel %vm1715, %v1292, -inf
        %v1754 = vmax.f32 %v1752, %v1753
        %v1755 = vsel %vm1715, %v1529, -inf
        %v1756 = vmax.f32 %v1754, %v1755
        %v1757 = vsel %vm1715, %v1317, -inf
        %v1758 = vmax.f32 %v1756, %v1757
        %v1759 = vsel %vm1715, %v1554, -inf
        %v1760 = vmax.f32 %v1758, %v1759
        %v1761 = vsel %vm1715, %v1342, -inf
        %v1762 = vmax.f32 %v1760, %v1761
        %v1763 = vsel %vm1715, %v1579, -inf
        %v1764 = vmax.f32 %v1762, %v1763
        %v1765 = vsel %vm1715, %v1367, -inf
        %v1766 = vmax.f32 %v1764, %v1765
        %v1767 = vsel %vm1715, %v1492, -inf
        %v1768 = vsel %vm1715, %v1280, -inf
        %v1769 = vmax.f32 %v1767, %v1768
        %v1770 = vsel %vm1715, %v1517, -inf
        %v1771 = vmax.f32 %v1769, %v1770
        %v1772 = vsel %vm1715, %v1305, -inf
        %v1773 = vmax.f32 %v1771, %v1772
        %v1774 = vsel %vm1715, %v1542, -inf
        %v1775 = vmax.f32 %v1773, %v1774
        %v1776 = vsel %vm1715, %v1330, -inf
        %v1777 = vmax.f32 %v1775, %v1776
        %v1778 = vsel %vm1715, %v1567, -inf
        %v1779 = vmax.f32 %v1777, %v1778
        %v1780 = vsel %vm1715, %v1355, -inf
        %v1781 = vmax.f32 %v1779, %v1780
        %v1782 = vsel %vm1715, %v1592, -inf
        %v1783 = vmax.f32 %v1781, %v1782
        %v1784 = vsel %vm1715, %v1268, -inf
        %v1785 = vsel %vm1715, %v1505, -inf
        %v1786 = vmax.f32 %v1784, %v1785
        %v1787 = vsel %vm1715, %v1293, -inf
        %v1788 = vmax.f32 %v1786, %v1787
        %v1789 = vsel %vm1715, %v1530, -inf
        %v1790 = vmax.f32 %v1788, %v1789
        %v1791 = vsel %vm1715, %v1318, -inf
        %v1792 = vmax.f32 %v1790, %v1791
        %v1793 = vsel %vm1715, %v1555, -inf
        %v1794 = vmax.f32 %v1792, %v1793
        %v1795 = vsel %vm1715, %v1343, -inf
        %v1796 = vmax.f32 %v1794, %v1795
        %v1797 = vsel %vm1715, %v1580, -inf
        %v1798 = vmax.f32 %v1796, %v1797
        %v1799 = vsel %vm1715, %v1368, -inf
        %v1800 = vmax.f32 %v1798, %v1799
        %v1801 = vsel %vm1715, %v1493, -inf
        %v1802 = vsel %vm1715, %v1281, -inf
        %v1803 = vmax.f32 %v1801, %v1802
        %v1804 = vsel %vm1715, %v1518, -inf
        %v1805 = vmax.f32 %v1803, %v1804
        %v1806 = vsel %vm1715, %v1306, -inf
        %v1807 = vmax.f32 %v1805, %v1806
        %v1808 = vsel %vm1715, %v1543, -inf
        %v1809 = vmax.f32 %v1807, %v1808
        %v1810 = vsel %vm1715, %v1331, -inf
        %v1811 = vmax.f32 %v1809, %v1810
        %v1812 = vsel %vm1715, %v1568, -inf
        %v1813 = vmax.f32 %v1811, %v1812
        %v1814 = vsel %vm1715, %v1356, -inf
        %v1815 = vmax.f32 %v1813, %v1814
        %v1816 = vsel %vm1715, %v1593, -inf
        %v1817 = vmax.f32 %v1815, %v1816
        %v1818 = vsel %vm1715, %v1269, -inf
        %v1819 = vsel %vm1715, %v1506, -inf
        %v1820 = vmax.f32 %v1818, %v1819
        %v1821 = vsel %vm1715, %v1294, -inf
        %v1822 = vmax.f32 %v1820, %v1821
        %v1823 = vsel %vm1715, %v1531, -inf
        %v1824 = vmax.f32 %v1822, %v1823
        %v1825 = vsel %vm1715, %v1319, -inf
        %v1826 = vmax.f32 %v1824, %v1825
        %v1827 = vsel %vm1715, %v1556, -inf
        %v1828 = vmax.f32 %v1826, %v1827
        %v1829 = vsel %vm1715, %v1344, -inf
        %v1830 = vmax.f32 %v1828, %v1829
        %v1831 = vsel %vm1715, %v1581, -inf
        %v1832 = vmax.f32 %v1830, %v1831
        %v1833 = vsel %vm1715, %v1369, -inf
        %v1834 = vmax.f32 %v1832, %v1833
        %v1835 = vsel %vm1715, %v1494, -inf
        %v1836 = vsel %vm1715, %v1282, -inf
        %v1837 = vmax.f32 %v1835, %v1836
        %v1838 = vsel %vm1715, %v1519, -inf
        %v1839 = vmax.f32 %v1837, %v1838
        %v1840 = vsel %vm1715, %v1307, -inf
        %v1841 = vmax.f32 %v1839, %v1840
        %v1842 = vsel %vm1715, %v1544, -inf
        %v1843 = vmax.f32 %v1841, %v1842
        %v1844 = vsel %vm1715, %v1332, -inf
        %v1845 = vmax.f32 %v1843, %v1844
        %v1846 = vsel %vm1715, %v1569, -inf
        %v1847 = vmax.f32 %v1845, %v1846
        %v1848 = vsel %vm1715, %v1357, -inf
        %v1849 = vmax.f32 %v1847, %v1848
        %v1850 = vsel %vm1715, %v1594, -inf
        %v1851 = vmax.f32 %v1849, %v1850
        %v1852 = vsel %vm1715, %v1270, -inf
        %v1853 = vsel %vm1715, %v1507, -inf
        %v1854 = vmax.f32 %v1852, %v1853
        %v1855 = vsel %vm1715, %v1295, -inf
        %v1856 = vmax.f32 %v1854, %v1855
        %v1857 = vsel %vm1715, %v1532, -inf
        %v1858 = vmax.f32 %v1856, %v1857
        %v1859 = vsel %vm1715, %v1320, -inf
        %v1860 = vmax.f32 %v1858, %v1859
        %v1861 = vsel %vm1715, %v1557, -inf
        %v1862 = vmax.f32 %v1860, %v1861
        %v1863 = vsel %vm1715, %v1345, -inf
        %v1864 = vmax.f32 %v1862, %v1863
        %v1865 = vsel %vm1715, %v1582, -inf
        %v1866 = vmax.f32 %v1864, %v1865
        %v1867 = vsel %vm1715, %v1370, -inf
        %v1868 = vmax.f32 %v1866, %v1867
        %v1869 = vsel %vm1715, %v1495, -inf
        %v1870 = vsel %vm1715, %v1283, -inf
        %v1871 = vmax.f32 %v1869, %v1870
        %v1872 = vsel %vm1715, %v1520, -inf
        %v1873 = vmax.f32 %v1871, %v1872
        %v1874 = vsel %vm1715, %v1308, -inf
        %v1875 = vmax.f32 %v1873, %v1874
        %v1876 = vsel %vm1715, %v1545, -inf
        %v1877 = vmax.f32 %v1875, %v1876
        %v1878 = vsel %vm1715, %v1333, -inf
        %v1879 = vmax.f32 %v1877, %v1878
        %v1880 = vsel %vm1715, %v1570, -inf
        %v1881 = vmax.f32 %v1879, %v1880
        %v1882 = vsel %vm1715, %v1358, -inf
        %v1883 = vmax.f32 %v1881, %v1882
        %v1884 = vsel %vm1715, %v1595, -inf
        %v1885 = vmax.f32 %v1883, %v1884
        %v1886 = vsel %vm1715, %v1271, -inf
        %v1887 = vsel %vm1715, %v1508, -inf
        %v1888 = vmax.f32 %v1886, %v1887
        %v1889 = vsel %vm1715, %v1296, -inf
        %v1890 = vmax.f32 %v1888, %v1889
        %v1891 = vsel %vm1715, %v1533, -inf
        %v1892 = vmax.f32 %v1890, %v1891
        %v1893 = vsel %vm1715, %v1321, -inf
        %v1894 = vmax.f32 %v1892, %v1893
        %v1895 = vsel %vm1715, %v1558, -inf
        %v1896 = vmax.f32 %v1894, %v1895
        %v1897 = vsel %vm1715, %v1346, -inf
        %v1898 = vmax.f32 %v1896, %v1897
        %v1899 = vsel %vm1715, %v1583, -inf
        %v1900 = vmax.f32 %v1898, %v1899
        %v1901 = vsel %vm1715, %v1371, -inf
        %v1902 = vmax.f32 %v1900, %v1901
        %v1903 = vsel %vm1715, %v1496, -inf
        %v1904 = vsel %vm1715, %v1284, -inf
        %v1905 = vmax.f32 %v1903, %v1904
        %v1906 = vsel %vm1715, %v1521, -inf
        %v1907 = vmax.f32 %v1905, %v1906
        %v1908 = vsel %vm1715, %v1309, -inf
        %v1909 = vmax.f32 %v1907, %v1908
        %v1910 = vsel %vm1715, %v1546, -inf
        %v1911 = vmax.f32 %v1909, %v1910
        %v1912 = vsel %vm1715, %v1334, -inf
        %v1913 = vmax.f32 %v1911, %v1912
        %v1914 = vsel %vm1715, %v1571, -inf
        %v1915 = vmax.f32 %v1913, %v1914
        %v1916 = vsel %vm1715, %v1359, -inf
        %v1917 = vmax.f32 %v1915, %v1916
        %v1918 = vsel %vm1715, %v1596, -inf
        %v1919 = vmax.f32 %v1917, %v1918
        %v1920 = vsel %vm1715, %v1272, -inf
        %v1921 = vsel %vm1715, %v1509, -inf
        %v1922 = vmax.f32 %v1920, %v1921
        %v1923 = vsel %vm1715, %v1297, -inf
        %v1924 = vmax.f32 %v1922, %v1923
        %v1925 = vsel %vm1715, %v1534, -inf
        %v1926 = vmax.f32 %v1924, %v1925
        %v1927 = vsel %vm1715, %v1322, -inf
        %v1928 = vmax.f32 %v1926, %v1927
        %v1929 = vsel %vm1715, %v1559, -inf
        %v1930 = vmax.f32 %v1928, %v1929
        %v1931 = vsel %vm1715, %v1347, -inf
        %v1932 = vmax.f32 %v1930, %v1931
        %v1933 = vsel %vm1715, %v1584, -inf
        %v1934 = vmax.f32 %v1932, %v1933
        %v1935 = vsel %vm1715, %v1372, -inf
        %v1936 = vmax.f32 %v1934, %v1935
        %v1937 = vsel %vm1715, %v1497, -inf
        %v1938 = vsel %vm1715, %v1285, -inf
        %v1939 = vmax.f32 %v1937, %v1938
        %v1940 = vsel %vm1715, %v1522, -inf
        %v1941 = vmax.f32 %v1939, %v1940
        %v1942 = vsel %vm1715, %v1310, -inf
        %v1943 = vmax.f32 %v1941, %v1942
        %v1944 = vsel %vm1715, %v1547, -inf
        %v1945 = vmax.f32 %v1943, %v1944
        %v1946 = vsel %vm1715, %v1335, -inf
        %v1947 = vmax.f32 %v1945, %v1946
        %v1948 = vsel %vm1715, %v1572, -inf
        %v1949 = vmax.f32 %v1947, %v1948
        %v1950 = vsel %vm1715, %v1360, -inf
        %v1951 = vmax.f32 %v1949, %v1950
        %v1952 = vsel %vm1715, %v1597, -inf
        %v1953 = vmax.f32 %v1951, %v1952
        %v1954 = vsel %vm1715, %v1273, -inf
        %v1955 = vsel %vm1715, %v1510, -inf
        %v1956 = vmax.f32 %v1954, %v1955
        %v1957 = vsel %vm1715, %v1298, -inf
        %v1958 = vmax.f32 %v1956, %v1957
        %v1959 = vsel %vm1715, %v1535, -inf
        %v1960 = vmax.f32 %v1958, %v1959
        %v1961 = vsel %vm1715, %v1323, -inf
        %v1962 = vmax.f32 %v1960, %v1961
        %v1963 = vsel %vm1715, %v1560, -inf
        %v1964 = vmax.f32 %v1962, %v1963
        %v1965 = vsel %vm1715, %v1348, -inf
        %v1966 = vmax.f32 %v1964, %v1965
        %v1967 = vsel %vm1715, %v1585, -inf
        %v1968 = vmax.f32 %v1966, %v1967
        %v1969 = vsel %vm1715, %v1373, -inf
        %v1970 = vmax.f32 %v1968, %v1969
        %v1971 = vsel %vm1715, %v1498, -inf
        %v1972 = vsel %vm1715, %v1286, -inf
        %v1973 = vmax.f32 %v1971, %v1972
        %v1974 = vsel %vm1715, %v1523, -inf
        %v1975 = vmax.f32 %v1973, %v1974
        %v1976 = vsel %vm1715, %v1311, -inf
        %v1977 = vmax.f32 %v1975, %v1976
        %v1978 = vsel %vm1715, %v1548, -inf
        %v1979 = vmax.f32 %v1977, %v1978
        %v1980 = vsel %vm1715, %v1336, -inf
        %v1981 = vmax.f32 %v1979, %v1980
        %v1982 = vsel %vm1715, %v1573, -inf
        %v1983 = vmax.f32 %v1981, %v1982
        %v1984 = vsel %vm1715, %v1361, -inf
        %v1985 = vmax.f32 %v1983, %v1984
        %v1986 = vsel %vm1715, %v1598, -inf
        %v1987 = vmax.f32 %v1985, %v1986
        %v1988 = vsel %vm1715, %v1274, -inf
        %v1989 = vsel %vm1715, %v1511, -inf
        %v1990 = vmax.f32 %v1988, %v1989
        %v1991 = vsel %vm1715, %v1299, -inf
        %v1992 = vmax.f32 %v1990, %v1991
        %v1993 = vsel %vm1715, %v1536, -inf
        %v1994 = vmax.f32 %v1992, %v1993
        %v1995 = vsel %vm1715, %v1324, -inf
        %v1996 = vmax.f32 %v1994, %v1995
        %v1997 = vsel %vm1715, %v1561, -inf
        %v1998 = vmax.f32 %v1996, %v1997
        %v1999 = vsel %vm1715, %v1349, -inf
        %v2000 = vmax.f32 %v1998, %v1999
        %v2001 = vsel %vm1715, %v1586, -inf
        %v2002 = vmax.f32 %v2000, %v2001
        %v2003 = vsel %vm1715, %v1374, -inf
        %v2004 = vmax.f32 %v2002, %v2003
        %v2005 = vsel %vm1715, %v1499, -inf
        %v2006 = vsel %vm1715, %v1287, -inf
        %v2007 = vmax.f32 %v2005, %v2006
        %v2008 = vsel %vm1715, %v1524, -inf
        %v2009 = vmax.f32 %v2007, %v2008
        %v2010 = vsel %vm1715, %v1312, -inf
        %v2011 = vmax.f32 %v2009, %v2010
        %v2012 = vsel %vm1715, %v1549, -inf
        %v2013 = vmax.f32 %v2011, %v2012
        %v2014 = vsel %vm1715, %v1337, -inf
        %v2015 = vmax.f32 %v2013, %v2014
        %v2016 = vsel %vm1715, %v1574, -inf
        %v2017 = vmax.f32 %v2015, %v2016
        %v2018 = vsel %vm1715, %v1362, -inf
        %v2019 = vmax.f32 %v2017, %v2018
        %v2020 = vsel %vm1715, %v1599, -inf
        %v2021 = vmax.f32 %v2019, %v2020
        %v2022 = vsel %vm1715, %v1275, -inf
        %v2023 = vsel %vm1715, %v1512, -inf
        %v2024 = vmax.f32 %v2022, %v2023
        %v2025 = vsel %vm1715, %v1300, -inf
        %v2026 = vmax.f32 %v2024, %v2025
        %v2027 = vsel %vm1715, %v1537, -inf
        %v2028 = vmax.f32 %v2026, %v2027
        %v2029 = vsel %vm1715, %v1325, -inf
        %v2030 = vmax.f32 %v2028, %v2029
        %v2031 = vsel %vm1715, %v1562, -inf
        %v2032 = vmax.f32 %v2030, %v2031
        %v2033 = vsel %vm1715, %v1350, -inf
        %v2034 = vmax.f32 %v2032, %v2033
        %v2035 = vsel %vm1715, %v1587, -inf
        %v2036 = vmax.f32 %v2034, %v2035
        %v2037 = vsel %vm1715, %v1375, -inf
        %v2038 = vmax.f32 %v2036, %v2037
        %v2039 = vsel %vm1715, %v1500, -inf
        %v2040 = vsel %vm1715, %v1288, -inf
        %v2041 = vmax.f32 %v2039, %v2040
        %v2042 = vsel %vm1715, %v1525, -inf
        %v2043 = vmax.f32 %v2041, %v2042
        %v2044 = vsel %vm1715, %v1313, -inf
        %v2045 = vmax.f32 %v2043, %v2044
        %v2046 = vsel %vm1715, %v1550, -inf
        %v2047 = vmax.f32 %v2045, %v2046
        %v2048 = vsel %vm1715, %v1338, -inf
        %v2049 = vmax.f32 %v2047, %v2048
        %v2050 = vsel %vm1715, %v1575, -inf
        %v2051 = vmax.f32 %v2049, %v2050
        %v2052 = vsel %vm1715, %v1363, -inf
        %v2053 = vmax.f32 %v2051, %v2052
        %v2054 = vsel %vm1715, %v1600, -inf
        %v2055 = vmax.f32 %v2053, %v2054
        %v2056 = vsel %vm1715, %v1276, -inf
        %v2057 = vsel %vm1715, %v1513, -inf
        %v2058 = vmax.f32 %v2056, %v2057
        %v2059 = vsel %vm1715, %v1301, -inf
        %v2060 = vmax.f32 %v2058, %v2059
        %v2061 = vsel %vm1715, %v1538, -inf
        %v2062 = vmax.f32 %v2060, %v2061
        %v2063 = vsel %vm1715, %v1326, -inf
        %v2064 = vmax.f32 %v2062, %v2063
        %v2065 = vsel %vm1715, %v1563, -inf
        %v2066 = vmax.f32 %v2064, %v2065
        %v2067 = vsel %vm1715, %v1351, -inf
        %v2068 = vmax.f32 %v2066, %v2067
        %v2069 = vsel %vm1715, %v1588, -inf
        %v2070 = vmax.f32 %v2068, %v2069
        %v2071 = vsel %vm1715, %v1376, -inf
        %v2072 = vmax.f32 %v2070, %v2071
        %v2073 = vsel %vm1715, %v1501, -inf
        %v2074 = vsel %vm1715, %v1289, -inf
        %v2075 = vmax.f32 %v2073, %v2074
        %v2076 = vsel %vm1715, %v1526, -inf
        %v2077 = vmax.f32 %v2075, %v2076
        %v2078 = vsel %vm1715, %v1314, -inf
        %v2079 = vmax.f32 %v2077, %v2078
        %v2080 = vsel %vm1715, %v1551, -inf
        %v2081 = vmax.f32 %v2079, %v2080
        %v2082 = vsel %vm1715, %v1339, -inf
        %v2083 = vmax.f32 %v2081, %v2082
        %v2084 = vsel %vm1715, %v1576, -inf
        %v2085 = vmax.f32 %v2083, %v2084
        %v2086 = vsel %vm1715, %v1364, -inf
        %v2087 = vmax.f32 %v2085, %v2086
        %v2088 = vsel %vm1715, %v1601, -inf
        %v2089 = vmax.f32 %v2087, %v2088
        %v2090 = vsel %vm1715, %v1277, -inf
        %v2091 = vsel %vm1715, %v1514, -inf
        %v2092 = vmax.f32 %v2090, %v2091
        %v2093 = vsel %vm1715, %v1302, -inf
        %v2094 = vmax.f32 %v2092, %v2093
        %v2095 = vsel %vm1715, %v1539, -inf
        %v2096 = vmax.f32 %v2094, %v2095
        %v2097 = vsel %vm1715, %v1327, -inf
        %v2098 = vmax.f32 %v2096, %v2097
        %v2099 = vsel %vm1715, %v1564, -inf
        %v2100 = vmax.f32 %v2098, %v2099
        %v2101 = vsel %vm1715, %v1352, -inf
        %v2102 = vmax.f32 %v2100, %v2101
        %v2103 = vsel %vm1715, %v1589, -inf
        %v2104 = vmax.f32 %v2102, %v2103
        %v2105 = vsel %vm1715, %v1377, -inf
        %v2106 = vmax.f32 %v2104, %v2105
        %v2107 = vsel %vm1715, %v1502, -inf
        %v2108 = vsel %vm1715, %v1290, -inf
        %v2109 = vmax.f32 %v2107, %v2108
        %v2110 = vsel %vm1715, %v1527, -inf
        %v2111 = vmax.f32 %v2109, %v2110
        %v2112 = vsel %vm1715, %v1315, -inf
        %v2113 = vmax.f32 %v2111, %v2112
        %v2114 = vsel %vm1715, %v1552, -inf
        %v2115 = vmax.f32 %v2113, %v2114
        %v2116 = vsel %vm1715, %v1340, -inf
        %v2117 = vmax.f32 %v2115, %v2116
        %v2118 = vsel %vm1715, %v1577, -inf
        %v2119 = vmax.f32 %v2117, %v2118
        %v2120 = vsel %vm1715, %v1365, -inf
        %v2121 = vmax.f32 %v2119, %v2120
        %v2122 = vsel %vm1715, %v1602, -inf
        %v2123 = vmax.f32 %v2121, %v2122
        %v2124 = vsel %vm1715, %v1278, -inf
        %v2125 = vsel %vm1715, %v1515, -inf
        %v2126 = vmax.f32 %v2124, %v2125
        %v2127 = vsel %vm1715, %v1303, -inf
        %v2128 = vmax.f32 %v2126, %v2127
        %v2129 = vsel %vm1715, %v1540, -inf
        %v2130 = vmax.f32 %v2128, %v2129
        %v2131 = vsel %vm1715, %v1328, -inf
        %v2132 = vmax.f32 %v2130, %v2131
        %v2133 = vsel %vm1715, %v1565, -inf
        %v2134 = vmax.f32 %v2132, %v2133
        %v2135 = vsel %vm1715, %v1353, -inf
        %v2136 = vmax.f32 %v2134, %v2135
        %v2137 = vsel %vm1715, %v1590, -inf
        %v2138 = vmax.f32 %v2136, %v2137
        %v2139 = vsel %vm1715, %v1378, -inf
        %v2140 = vmax.f32 %v2138, %v2139
        %v2166 = vrot.slane %v1732, 2
        %v2167 = vrot.slane %v1749, 2
        %v2168 = vrot.slane %v1766, 2
        %v2169 = vrot.slane %v1783, 2
        %v2170 = vrot.slane %v1800, 2
        %v2171 = vrot.slane %v1817, 2
        %v2172 = vrot.slane %v1834, 2
        %v2173 = vrot.slane %v1851, 2
        %v2174 = vrot.slane %v1868, 2
        %v2175 = vrot.slane %v1885, 2
        %v2176 = vrot.slane %v1902, 2
        %v2177 = vrot.slane %v1919, 2
        %v2178 = vrot.slane %v1936, 2
        %v2179 = vrot.slane %v1953, 2
        %v2180 = vrot.slane %v1970, 2
        %v2181 = vrot.slane %v1987, 2
        %v2182 = vrot.slane %v2004, 2
        %v2183 = vrot.slane %v2021, 2
        %v2184 = vrot.slane %v2038, 2
        %v2185 = vrot.slane %v2055, 2
        %v2186 = vrot.slane %v2072, 2
        %v2187 = vrot.slane %v2089, 2
        %v2188 = vrot.slane %v2106, 2
        %v2189 = vrot.slane %v2123, 2
        %v2190 = vrot.slane %v2140, 2
        %vm2191 = vcmask 1041408
        %v2192 = vsel %vm2191, %v1732, %v2166
        %vm2193 = vcmask 1043458
        %v2194 = vsel %vm2193, %v1732, %v2166
        %v2195 = vrot.slane %v2194, 2
        %v2196 = vsel %vm2191, %v1749, %v2167
        %v2197 = vsel %vm2193, %v1749, %v2167
        %v2198 = vrot.slane %v2197, 2
        %v2199 = vsel %vm2191, %v1766, %v2168
        %v2200 = vsel %vm2193, %v1766, %v2168
        %v2201 = vrot.slane %v2200, 2
        %v2202 = vsel %vm2191, %v1783, %v2169
        %v2203 = vsel %vm2193, %v1783, %v2169
        %v2204 = vrot.slane %v2203, 2
        %v2205 = vsel %vm2191, %v1800, %v2170
        %v2206 = vsel %vm2193, %v1800, %v2170
        %v2207 = vrot.slane %v2206, 2
        %v2208 = vsel %vm2191, %v1817, %v2171
        %v2209 = vsel %vm2193, %v1817, %v2171
        %v2210 = vrot.slane %v2209, 2
        %v2211 = vsel %vm2191, %v1834, %v2172
        %v2212 = vsel %vm2193, %v1834, %v2172
        %v2213 = vrot.slane %v2212, 2
        %v2214 = vsel %vm2191, %v1851, %v2173
        %v2215 = vsel %vm2193, %v1851, %v2173
        %v2216 = vrot.slane %v2215, 2
        %v2217 = vsel %vm2191, %v1868, %v2174
        %v2218 = vsel %vm2193, %v1868, %v2174
        %v2219 = vrot.slane %v2218, 2
        %v2220 = vsel %vm2191, %v1885, %v2175
        %v2221 = vsel %vm2193, %v1885, %v2175
        %v2222 = vrot.slane %v2221, 2
        %v2223 = vsel %vm2191, %v1902, %v2176
        %v2224 = vsel %vm2193, %v1902, %v2176
        %v2225 = vrot.slane %v2224, 2
        %v2226 = vsel %vm2191, %v1919, %v2177
        %v2227 = vsel %vm2193, %v1919, %v2177
        %v2228 = vrot.slane %v2227, 2
        %v2229 = vsel %vm2191, %v1936, %v2178
        %v2230 = vsel %vm2193, %v1936, %v2178
        %v2231 = vrot.slane %v2230, 2
        %v2232 = vsel %vm2191, %v1953, %v2179
        %v2233 = vsel %vm2193, %v1953, %v2179
        %v2234 = vrot.slane %v2233, 2
        %v2235 = vsel %vm2191, %v1970, %v2180
        %v2236 = vsel %vm2193, %v1970, %v2180
        %v2237 = vrot.slane %v2236, 2
        %v2238 = vsel %vm2191, %v1987, %v2181
        %v2239 = vsel %vm2193, %v1987, %v2181
        %v2240 = vrot.slane %v2239, 2
        %v2241 = vsel %vm2191, %v2004, %v2182
        %v2242 = vsel %vm2193, %v2004, %v2182
        %v2243 = vrot.slane %v2242, 2
        %v2244 = vsel %vm2191, %v2021, %v2183
        %v2245 = vsel %vm2193, %v2021, %v2183
        %v2246 = vrot.slane %v2245, 2
        %v2247 = vsel %vm2191, %v2038, %v2184
        %v2248 = vsel %vm2193, %v2038, %v2184
        %v2249 = vrot.slane %v2248, 2
        %v2250 = vsel %vm2191, %v2055, %v2185
        %v2251 = vsel %vm2193, %v2055, %v2185
        %v2252 = vrot.slane %v2251, 2
        %v2253 = vsel %vm2191, %v2072, %v2186
        %v2254 = vsel %vm2193, %v2072, %v2186
        %v2255 = vrot.slane %v2254, 2
        %v2256 = vsel %vm2191, %v2089, %v2187
        %v2257 = vsel %vm2193, %v2089, %v2187
        %v2258 = vrot.slane %v2257, 2
        %v2259 = vsel %vm2191, %v2106, %v2188
        %v2260 = vsel %vm2193, %v2106, %v2188
        %v2261 = vrot.slane %v2260, 2
        %v2262 = vsel %vm2191, %v2123, %v2189
        %v2263 = vsel %vm2193, %v2123, %v2189
        %v2264 = vrot.slane %v2263, 2
        %v2265 = vsel %vm2191, %v2140, %v2190
        %v2266 = vsel %vm2193, %v2140, %v2190
        %v2267 = vrot.slane %v2266, 2
        %2268 = vst [vmem:[#allocation1] ss:$4 sm:$0xff] %v2192
        %s2269 = scalar_lea.vmem [#allocation1], 1
        %2270 = vst [vmem:[%s2269] ss:$4 sm:$0xff] %v2195
        %s2271 = scalar_lea.vmem [#allocation1], 2
        %2272 = vst [vmem:[%s2271] ss:$4 sm:$0xff] %v2196
        %s2273 = scalar_lea.vmem [#allocation1], 3
        %2274 = vst [vmem:[%s2273] ss:$4 sm:$0xff] %v2198
        %s2275 = scalar_lea.vmem [#allocation1], 32
        %2276 = vst [vmem:[%s2275] ss:$4 sm:$0xff] %v2199
        %v2277 = vld.sshfl [vmem:[#allocation1] sm:$0xff pattern:$0x73625140]
        %v2278 = vld.sshfl [vmem:[#allocation1 + $0x20] sm:$0xff pattern:$0x73625140]
        %2279 = vst [vmem:[#allocation1] ss:$4 sm:$0xff] %v2201
        %2280 = vst [vmem:[%s2269] ss:$4 sm:$0xff] %v2202
        %2281 = vst [vmem:[%s2271] ss:$4 sm:$0xff] %v2204
        %2282 = vst [vmem:[%s2273] ss:$4 sm:$0xff] %v2205
        %2283 = vst [vmem:[%s2275] ss:$4 sm:$0xff] %v2207
        %v2284 = vld.sshfl [vmem:[#allocation1] sm:$0xff pattern:$0x73625140]
        %v2285 = vld.sshfl [vmem:[#allocation1 + $0x20] sm:$0xff pattern:$0x73625140]
        %2286 = vst [vmem:[#allocation1] ss:$4 sm:$0xff] %v2208
        %2287 = vst [vmem:[%s2269] ss:$4 sm:$0xff] %v2210
        %2288 = vst [vmem:[%s2271] ss:$4 sm:$0xff] %v2211
        %2289 = vst [vmem:[%s2273] ss:$4 sm:$0xff] %v2213
        %2290 = vst [vmem:[%s2275] ss:$4 sm:$0xff] %v2214
        %v2291 = vld.sshfl [vmem:[#allocation1] sm:$0xff pattern:$0x73625140]
        %v2292 = vld.sshfl [vmem:[#allocation1 + $0x20] sm:$0xff pattern:$0x73625140]
        %2293 = vst [vmem:[#allocation1] ss:$4 sm:$0xff] %v2216
        %2294 = vst [vmem:[%s2269] ss:$4 sm:$0xff] %v2217
        %2295 = vst [vmem:[%s2271] ss:$4 sm:$0xff] %v2219
        %2296 = vst [vmem:[%s2273] ss:$4 sm:$0xff] %v2220
        %2297 = vst [vmem:[%s2275] ss:$4 sm:$0xff] %v2222
        %v2298 = vld.sshfl [vmem:[#allocation1] sm:$0xff pattern:$0x73625140]
        %v2299 = vld.sshfl [vmem:[#allocation1 + $0x20] sm:$0xff pattern:$0x73625140]
        %2300 = vst [vmem:[#allocation1] ss:$4 sm:$0xff] %v2223
        %2301 = vst [vmem:[%s2269] ss:$4 sm:$0xff] %v2225
        %2302 = vst [vmem:[%s2271] ss:$4 sm:$0xff] %v2226
        %2303 = vst [vmem:[%s2273] ss:$4 sm:$0xff] %v2228
        %2304 = vst [vmem:[%s2275] ss:$4 sm:$0xff] %v2229
        %v2305 = vld.sshfl [vmem:[#allocation1] sm:$0xff pattern:$0x73625140]
        %v2306 = vld.sshfl [vmem:[#allocation1 + $0x20] sm:$0xff pattern:$0x73625140]
        %2307 = vst [vmem:[#allocation1] ss:$4 sm:$0xff] %v2231
        %2308 = vst [vmem:[%s2269] ss:$4 sm:$0xff] %v2232
        %2309 = vst [vmem:[%s2271] ss:$4 sm:$0xff] %v2234
        %2310 = vst [vmem:[%s2273] ss:$4 sm:$0xff] %v2235
        %2311 = vst [vmem:[%s2275] ss:$4 sm:$0xff] %v2237
        %v2312 = vld.sshfl [vmem:[#allocation1] sm:$0xff pattern:$0x73625140]
        %v2313 = vld.sshfl [vmem:[#allocation1 + $0x20] sm:$0xff pattern:$0x73625140]
        %2314 = vst [vmem:[#allocation1] ss:$4 sm:$0xff] %v2238
        %2315 = vst [vmem:[%s2269] ss:$4 sm:$0xff] %v2240
        %2316 = vst [vmem:[%s2271] ss:$4 sm:$0xff] %v2241
        %2317 = vst [vmem:[%s2273] ss:$4 sm:$0xff] %v2243
        %2318 = vst [vmem:[%s2275] ss:$4 sm:$0xff] %v2244
        %v2319 = vld.sshfl [vmem:[#allocation1] sm:$0xff pattern:$0x73625140]
        %v2320 = vld.sshfl [vmem:[#allocation1 + $0x20] sm:$0xff pattern:$0x73625140]
        %2321 = vst [vmem:[#allocation1] ss:$4 sm:$0xff] %v2246
        %2322 = vst [vmem:[%s2269] ss:$4 sm:$0xff] %v2247
        %2323 = vst [vmem:[%s2271] ss:$4 sm:$0xff] %v2249
        %2324 = vst [vmem:[%s2273] ss:$4 sm:$0xff] %v2250
        %2325 = vst [vmem:[%s2275] ss:$4 sm:$0xff] %v2252
        %v2326 = vld.sshfl [vmem:[#allocation1] sm:$0xff pattern:$0x73625140]
        %v2327 = vld.sshfl [vmem:[#allocation1 + $0x20] sm:$0xff pattern:$0x73625140]
        %2328 = vst [vmem:[#allocation1] ss:$4 sm:$0xff] %v2253
        %2329 = vst [vmem:[%s2269] ss:$4 sm:$0xff] %v2255
        %2330 = vst [vmem:[%s2271] ss:$4 sm:$0xff] %v2256
        %2331 = vst [vmem:[%s2273] ss:$4 sm:$0xff] %v2258
        %2332 = vst [vmem:[%s2275] ss:$4 sm:$0xff] %v2259
        %v2333 = vld.sshfl [vmem:[#allocation1] sm:$0xff pattern:$0x73625140]
        %v2334 = vld.sshfl [vmem:[#allocation1 + $0x20] sm:$0xff pattern:$0x73625140]
        %2335 = vst [vmem:[#allocation1] ss:$4 sm:$0xff] %v2261
        %2336 = vst [vmem:[%s2269] ss:$4 sm:$0xff] %v2262
        %2337 = vst [vmem:[%s2271] ss:$4 sm:$0xff] %v2264
        %2338 = vst [vmem:[%s2273] ss:$4 sm:$0xff] %v2265
        %2339 = vst [vmem:[%s2275] ss:$4 sm:$0xff] %v2267
        %v2340 = vld.sshfl [vmem:[#allocation1] sm:$0xff pattern:$0x73625140]
        %v2341 = vld.sshfl [vmem:[#allocation1 + $0x20] sm:$0xff pattern:$0x73625140]
        %v2362 = vpack.c.bf16 %v2277, %v2277
        %v2363 = vpack.c.bf16 %v2278, %v2278
        %v2364 = vpack.c.bf16 %v2284, %v2284
        %v2365 = vpack.c.bf16 %v2285, %v2285
        %v2366 = vpack.c.bf16 %v2291, %v2291
        %v2367 = vpack.c.bf16 %v2292, %v2292
        %v2368 = vpack.c.bf16 %v2298, %v2298
        %v2369 = vpack.c.bf16 %v2299, %v2299
        %v2370 = vpack.c.bf16 %v2305, %v2305
        %v2371 = vpack.c.bf16 %v2306, %v2306
        %v2372 = vpack.c.bf16 %v2312, %v2312
        %v2373 = vpack.c.bf16 %v2313, %v2313
        %v2374 = vpack.c.bf16 %v2319, %v2319
        %v2375 = vpack.c.bf16 %v2320, %v2320
        %v2376 = vpack.c.bf16 %v2326, %v2326
        %v2377 = vpack.c.bf16 %v2327, %v2327
        %v2378 = vpack.c.bf16 %v2333, %v2333
        %v2379 = vpack.c.bf16 %v2334, %v2334
        %v2380 = vpack.c.bf16 %v2340, %v2340
        %v2381 = vpack.c.bf16 %v2341, %v2341
        %v2402 = vunpack.c.l.b16 %v2362
        %v2403 = vunpack.c.l.b16 %v2363
        %v2404 = vunpack.c.l.b16 %v2364
        %v2405 = vunpack.c.l.b16 %v2365
        %v2406 = vunpack.c.l.b16 %v2366
        %v2407 = vunpack.c.l.b16 %v2367
        %v2408 = vunpack.c.l.b16 %v2368
        %v2409 = vunpack.c.l.b16 %v2369
        %v2410 = vunpack.c.l.b16 %v2370
        %v2411 = vunpack.c.l.b16 %v2371
        %v2412 = vunpack.c.l.b16 %v2372
        %v2413 = vunpack.c.l.b16 %v2373
        %v2414 = vunpack.c.l.b16 %v2374
        %v2415 = vunpack.c.l.b16 %v2375
        %v2416 = vunpack.c.l.b16 %v2376
        %v2417 = vunpack.c.l.b16 %v2377
        %v2418 = vunpack.c.l.b16 %v2378
        %v2419 = vunpack.c.l.b16 %v2379
        %v2420 = vunpack.c.l.b16 %v2380
        %v2421 = vunpack.c.l.b16 %v2381
        %v2422 = vpack.c.b16 %v2403, %v2402
        %v2423 = vpack.c.b16 %v2405, %v2404
        %v2424 = vpack.c.b16 %v2407, %v2406
        %v2425 = vpack.c.b16 %v2409, %v2408
        %v2426 = vpack.c.b16 %v2411, %v2410
        %v2427 = vpack.c.b16 %v2413, %v2412
        %v2428 = vpack.c.b16 %v2415, %v2414
        %v2429 = vpack.c.b16 %v2417, %v2416
        %v2430 = vpack.c.b16 %v2419, %v2418
        %v2431 = vpack.c.b16 %v2421, %v2420
        %v2433 = vshrl.u32 0, 16
        %v2435 = vrot.slane %v2433, 7
        %v2436 = vshll.u32 0, 16
        %v2438 = vor.u32 %v2435, %v2436
        %v2440 = vshrl.u32 %v2422, 16
        %v2442 = vrot.slane %v2440, 7
        %v2443 = vshll.u32 %v2422, 16
        %v2445 = vor.u32 %v2442, %v2443
        %v2447 = vshrl.u32 %v2423, 16
        %v2449 = vrot.slane %v2447, 7
        %v2450 = vshll.u32 %v2423, 16
        %v2452 = vor.u32 %v2449, %v2450
        %v2454 = vshrl.u32 %v2424, 16
        %v2456 = vrot.slane %v2454, 7
        %v2457 = vshll.u32 %v2424, 16
        %v2459 = vor.u32 %v2456, %v2457
        %v2461 = vshrl.u32 %v2425, 16
        %v2463 = vrot.slane %v2461, 7
        %v2464 = vshll.u32 %v2425, 16
        %v2466 = vor.u32 %v2463, %v2464
        %v2468 = vshrl.u32 %v2426, 16
        %v2470 = vrot.slane %v2468, 7
        %v2471 = vshll.u32 %v2426, 16
        %v2473 = vor.u32 %v2470, %v2471
        %v2475 = vshrl.u32 %v2427, 16
        %v2477 = vrot.slane %v2475, 7
        %v2478 = vshll.u32 %v2427, 16
        %v2480 = vor.u32 %v2477, %v2478
        %v2482 = vshrl.u32 %v2428, 16
        %v2484 = vrot.slane %v2482, 7
        %v2485 = vshll.u32 %v2428, 16
        %v2487 = vor.u32 %v2484, %v2485
        %v2489 = vshrl.u32 %v2429, 16
        %v2491 = vrot.slane %v2489, 7
        %v2492 = vshll.u32 %v2429, 16
        %v2494 = vor.u32 %v2491, %v2492
        %v2496 = vshrl.u32 %v2430, 16
        %v2498 = vrot.slane %v2496, 7
        %v2499 = vshll.u32 %v2430, 16
        %v2501 = vor.u32 %v2498, %v2499
        %v2503 = vshrl.u32 %v2431, 16
        %v2505 = vrot.slane %v2503, 7
        %v2506 = vshll.u32 %v2431, 16
        %v2508 = vor.u32 %v2505, %v2506
        %vm2520 = vcmask 1040384
        %vm2521 = vsmask.f32 256
        %vm2522 = vmand %vm2520, %vm2521
        %v2523 = vsel %vm2522, 0, %v2438
        %v2524 = vsel %vm2522, 0, %v2445
        %v2525 = vsel %vm2522, 0, %v2452
        %v2526 = vsel %vm2522, 0, %v2459
        %v2527 = vsel %vm2522, 0, %v2466
        %v2528 = vsel %vm2522, 0, %v2473
        %v2529 = vsel %vm2522, 0, %v2480
        %v2530 = vsel %vm2522, 0, %v2487
        %v2531 = vsel %vm2522, 0, %v2494
        %v2532 = vsel %vm2522, 0, %v2501
        %v2533 = vsel %vm2522, 0, %v2508
        %vm2534 = vcmask 1045504
        %vm2535 = vsmask.f32 5376
        %vm2536 = vmand %vm2534, %vm2535
        %v2537 = vsel %vm2536, %v2523, 0
        %v2538 = vsel %vm2536, %v2524, 0
        %v2539 = vsel %vm2536, %v2525, 0
        %v2540 = vsel %vm2536, %v2526, 0
        %v2541 = vsel %vm2536, %v2527, 0
        %v2542 = vsel %vm2536, %v2528, 0
        %v2543 = vsel %vm2536, %v2529, 0
        %v2544 = vsel %vm2536, %v2530, 0
        %v2545 = vsel %vm2536, %v2531, 0
        %v2546 = vsel %vm2536, %v2532, 0
        %v2547 = vsel %vm2536, %v2533, 0
        %v2549 = vshrl.u32 %v2537, 16
        %v2551 = vshll.u32 %v2537, 16
        %v2553 = vrot.slane %v2551, 1
        %v2554 = vor.u32 %v2549, %v2553
        %v2556 = vshrl.u32 %v2538, 16
        %v2558 = vshll.u32 %v2538, 16
        %v2560 = vrot.slane %v2558, 1
        %v2561 = vor.u32 %v2556, %v2560
        %v2563 = vshrl.u32 %v2539, 16
        %v2565 = vshll.u32 %v2539, 16
        %v2567 = vrot.slane %v2565, 1
        %v2568 = vor.u32 %v2563, %v2567
        %v2570 = vshrl.u32 %v2540, 16
        %v2572 = vshll.u32 %v2540, 16
        %v2574 = vrot.slane %v2572, 1
        %v2575 = vor.u32 %v2570, %v2574
        %v2577 = vshrl.u32 %v2541, 16
        %v2579 = vshll.u32 %v2541, 16
        %v2581 = vrot.slane %v2579, 1
        %v2582 = vor.u32 %v2577, %v2581
        %v2584 = vshrl.u32 %v2542, 16
        %v2586 = vshll.u32 %v2542, 16
        %v2588 = vrot.slane %v2586, 1
        %v2589 = vor.u32 %v2584, %v2588
        %v2591 = vshrl.u32 %v2543, 16
        %v2593 = vshll.u32 %v2543, 16
        %v2595 = vrot.slane %v2593, 1
        %v2596 = vor.u32 %v2591, %v2595
        %v2598 = vshrl.u32 %v2544, 16
        %v2600 = vshll.u32 %v2544, 16
        %v2602 = vrot.slane %v2600, 1
        %v2603 = vor.u32 %v2598, %v2602
        %2604 = vrot.lane.b32.xlu0 %v2554, 16
        %v2605 = vpop.permute.xlu0 %2604
        %2606 = vrot.lane.b32.xlu0 %v2561, 16
        %v2607 = vpop.permute.xlu0 %2606
        %2608 = vrot.lane.b32.xlu0 %v2568, 16
        %v2609 = vpop.permute.xlu0 %2608
        %2610 = vrot.lane.b32.xlu0 %v2575, 16
        %v2611 = vpop.permute.xlu0 %2610
        %2612 = vrot.lane.b32.xlu0 %v2582, 16
        %v2613 = vpop.permute.xlu0 %2612
        %2614 = vrot.lane.b32.xlu0 %v2589, 16
        %v2615 = vpop.permute.xlu0 %2614
        %2616 = vrot.lane.b32.xlu0 %v2596, 16
        %v2617 = vpop.permute.xlu0 %2616
        %2618 = vrot.lane.b32.xlu0 %v2603, 16
        %v2619 = vpop.permute.xlu0 %2618
        %v2628 = vrot.slane %v2537, 1
        %v2629 = vrot.slane %v2538, 1
        %v2630 = vrot.slane %v2539, 1
        %v2631 = vrot.slane %v2540, 1
        %v2632 = vrot.slane %v2541, 1
        %v2633 = vrot.slane %v2542, 1
        %v2634 = vrot.slane %v2543, 1
        %v2635 = vrot.slane %v2544, 1
        %2636 = vrot.lane.b32.xlu0 %v2628, 32
        %v2637 = vpop.permute.xlu0 %2636
        %2638 = vrot.lane.b32.xlu0 %v2629, 32
        %v2639 = vpop.permute.xlu0 %2638
        %2640 = vrot.lane.b32.xlu0 %v2630, 32
        %v2641 = vpop.permute.xlu0 %2640
        %2642 = vrot.lane.b32.xlu0 %v2631, 32
        %v2643 = vpop.permute.xlu0 %2642
        %2644 = vrot.lane.b32.xlu0 %v2632, 32
        %v2645 = vpop.permute.xlu0 %2644
        %2646 = vrot.lane.b32.xlu0 %v2633, 32
        %v2647 = vpop.permute.xlu0 %2646
        %2648 = vrot.lane.b32.xlu0 %v2634, 32
        %v2649 = vpop.permute.xlu0 %2648
        %2650 = vrot.lane.b32.xlu0 %v2635, 32
        %v2651 = vpop.permute.xlu0 %2650
        %v2652 = vrot.slane %v2549, 1
        %v2653 = vrot.slane %v2551, 2
        %v2654 = vor.u32 %v2652, %v2653
        %v2655 = vrot.slane %v2556, 1
        %v2656 = vrot.slane %v2558, 2
        %v2657 = vor.u32 %v2655, %v2656
        %v2658 = vrot.slane %v2563, 1
        %v2659 = vrot.slane %v2565, 2
        %v2660 = vor.u32 %v2658, %v2659
        %v2661 = vrot.slane %v2570, 1
        %v2662 = vrot.slane %v2572, 2
        %v2663 = vor.u32 %v2661, %v2662
        %v2664 = vrot.slane %v2577, 1
        %v2665 = vrot.slane %v2579, 2
        %v2666 = vor.u32 %v2664, %v2665
        %v2667 = vrot.slane %v2584, 1
        %v2668 = vrot.slane %v2586, 2
        %v2669 = vor.u32 %v2667, %v2668
        %v2670 = vrot.slane %v2591, 1
        %v2671 = vrot.slane %v2593, 2
        %v2672 = vor.u32 %v2670, %v2671
        %v2673 = vrot.slane %v2598, 1
        %v2674 = vrot.slane %v2600, 2
        %v2675 = vor.u32 %v2673, %v2674
        %2676 = vrot.lane.b32.xlu0 %v2654, 48
        %v2677 = vpop.permute.xlu0 %2676
        %2678 = vrot.lane.b32.xlu0 %v2657, 48
        %v2679 = vpop.permute.xlu0 %2678
        %2680 = vrot.lane.b32.xlu0 %v2660, 48
        %v2681 = vpop.permute.xlu0 %2680
        %2682 = vrot.lane.b32.xlu0 %v2663, 48
        %v2683 = vpop.permute.xlu0 %2682
        %2684 = vrot.lane.b32.xlu0 %v2666, 48
        %v2685 = vpop.permute.xlu0 %2684
        %2686 = vrot.lane.b32.xlu0 %v2669, 48
        %v2687 = vpop.permute.xlu0 %2686
        %2688 = vrot.lane.b32.xlu0 %v2672, 48
        %v2689 = vpop.permute.xlu0 %2688
        %2690 = vrot.lane.b32.xlu0 %v2675, 48
        %v2691 = vpop.permute.xlu0 %2690
        %2693 = vrot.lane.b32.xlu0 %v2538, 64
        %v2694 = vpop.permute.xlu0 %2693
        %2695 = vrot.lane.b32.xlu0 %v2539, 64
        %v2696 = vpop.permute.xlu0 %2695
        %2697 = vrot.lane.b32.xlu0 %v2540, 64
        %v2698 = vpop.permute.xlu0 %2697
        %2699 = vrot.lane.b32.xlu0 %v2541, 64
        %v2700 = vpop.permute.xlu0 %2699
        %2701 = vrot.lane.b32.xlu0 %v2542, 64
        %v2702 = vpop.permute.xlu0 %2701
        %2703 = vrot.lane.b32.xlu0 %v2543, 64
        %v2704 = vpop.permute.xlu0 %2703
        %2705 = vrot.lane.b32.xlu0 %v2544, 64
        %v2706 = vpop.permute.xlu0 %2705
        %2707 = vrot.lane.b32.xlu0 %v2545, 64
        %v2708 = vpop.permute.xlu0 %2707
        %v2710 = vshrl.u32 %v2545, 16
        %v2712 = vshll.u32 %v2545, 16
        %v2714 = vrot.slane %v2712, 1
        %v2715 = vor.u32 %v2710, %v2714
        %2716 = vrot.lane.b32.xlu0 %v2561, 80
        %v2717 = vpop.permute.xlu0 %2716
        %2718 = vrot.lane.b32.xlu0 %v2568, 80
        %v2719 = vpop.permute.xlu0 %2718
        %2720 = vrot.lane.b32.xlu0 %v2575, 80
        %v2721 = vpop.permute.xlu0 %2720
        %2722 = vrot.lane.b32.xlu0 %v2582, 80
        %v2723 = vpop.permute.xlu0 %2722
        %2724 = vrot.lane.b32.xlu0 %v2589, 80
        %v2725 = vpop.permute.xlu0 %2724
        %2726 = vrot.lane.b32.xlu0 %v2596, 80
        %v2727 = vpop.permute.xlu0 %2726
        %2728 = vrot.lane.b32.xlu0 %v2603, 80
        %v2729 = vpop.permute.xlu0 %2728
        %2730 = vrot.lane.b32.xlu0 %v2715, 80
        %v2731 = vpop.permute.xlu0 %2730
        %v2732 = vrot.slane %v2545, 1
        %2733 = vrot.lane.b32.xlu0 %v2629, 96
        %v2734 = vpop.permute.xlu0 %2733
        %2735 = vrot.lane.b32.xlu0 %v2630, 96
        %v2736 = vpop.permute.xlu0 %2735
        %2737 = vrot.lane.b32.xlu0 %v2631, 96
        %v2738 = vpop.permute.xlu0 %2737
        %2739 = vrot.lane.b32.xlu0 %v2632, 96
        %v2740 = vpop.permute.xlu0 %2739
        %2741 = vrot.lane.b32.xlu0 %v2633, 96
        %v2742 = vpop.permute.xlu0 %2741
        %2743 = vrot.lane.b32.xlu0 %v2634, 96
        %v2744 = vpop.permute.xlu0 %2743
        %2745 = vrot.lane.b32.xlu0 %v2635, 96
        %v2746 = vpop.permute.xlu0 %2745
        %2747 = vrot.lane.b32.xlu0 %v2732, 96
        %v2748 = vpop.permute.xlu0 %2747
        %v2749 = vrot.slane %v2710, 1
        %v2750 = vrot.slane %v2712, 2
        %v2751 = vor.u32 %v2749, %v2750
        %2752 = vrot.lane.b32.xlu0 %v2657, 112
        %v2753 = vpop.permute.xlu0 %2752
        %2754 = vrot.lane.b32.xlu0 %v2660, 112
        %v2755 = vpop.permute.xlu0 %2754
        %2756 = vrot.lane.b32.xlu0 %v2663, 112
        %v2757 = vpop.permute.xlu0 %2756
        %2758 = vrot.lane.b32.xlu0 %v2666, 112
        %v2759 = vpop.permute.xlu0 %2758
        %2760 = vrot.lane.b32.xlu0 %v2669, 112
        %v2761 = vpop.permute.xlu0 %2760
        %2762 = vrot.lane.b32.xlu0 %v2672, 112
        %v2763 = vpop.permute.xlu0 %2762
        %2764 = vrot.lane.b32.xlu0 %v2675, 112
        %v2765 = vpop.permute.xlu0 %2764
        %2766 = vrot.lane.b32.xlu0 %v2751, 112
        %v2767 = vpop.permute.xlu0 %2766
        %v2769 = vshrl.u32 %v2546, 16
        %v2771 = vshll.u32 %v2546, 16
        %v2773 = vrot.slane %v2771, 1
        %v2774 = vor.u32 %v2769, %v2773
        %2775 = vrot.lane.b32.xlu0 %v2715, 16
        %v2776 = vpop.permute.xlu0 %2775
        %2777 = vrot.lane.b32.xlu0 %v2774, 16
        %v2778 = vpop.permute.xlu0 %2777
        %v2780 = vrot.slane %v2546, 1
        %2781 = vrot.lane.b32.xlu0 %v2732, 32
        %v2782 = vpop.permute.xlu0 %2781
        %2783 = vrot.lane.b32.xlu0 %v2780, 32
        %v2784 = vpop.permute.xlu0 %2783
        %v2785 = vrot.slane %v2769, 1
        %v2786 = vrot.slane %v2771, 2
        %v2787 = vor.u32 %v2785, %v2786
        %2788 = vrot.lane.b32.xlu0 %v2751, 48
        %v2789 = vpop.permute.xlu0 %2788
        %2790 = vrot.lane.b32.xlu0 %v2787, 48
        %v2791 = vpop.permute.xlu0 %2790
        %2793 = vrot.lane.b32.xlu0 %v2546, 64
        %v2794 = vpop.permute.xlu0 %2793
        %2795 = vrot.lane.b32.xlu0 %v2547, 64
        %v2796 = vpop.permute.xlu0 %2795
        %v2798 = vshrl.u32 %v2547, 16
        %v2800 = vshll.u32 %v2547, 16
        %v2802 = vrot.slane %v2800, 1
        %v2803 = vor.u32 %v2798, %v2802
        %2804 = vrot.lane.b32.xlu0 %v2774, 80
        %v2805 = vpop.permute.xlu0 %2804
        %2806 = vrot.lane.b32.xlu0 %v2803, 80
        %v2807 = vpop.permute.xlu0 %2806
        %v2808 = vrot.slane %v2547, 1
        %2809 = vrot.lane.b32.xlu0 %v2780, 96
        %v2810 = vpop.permute.xlu0 %2809
        %2811 = vrot.lane.b32.xlu0 %v2808, 96
        %v2812 = vpop.permute.xlu0 %2811
        %v2813 = vrot.slane %v2798, 1
        %v2814 = vrot.slane %v2800, 2
        %v2815 = vor.u32 %v2813, %v2814
        %2816 = vrot.lane.b32.xlu0 %v2787, 112
        %v2817 = vpop.permute.xlu0 %2816
        %2818 = vrot.lane.b32.xlu0 %v2815, 112
        %v2819 = vpop.permute.xlu0 %2818
        %vm2820 = vcmask 130048
        %v2822 = vsel %vm2820, %v2537, %v2605
        %v2824 = vsel %vm2820, %v2538, %v2607
        %v2826 = vsel %vm2820, %v2539, %v2609
        %v2828 = vsel %vm2820, %v2540, %v2611
        %v2830 = vsel %vm2820, %v2541, %v2613
        %v2832 = vsel %vm2820, %v2542, %v2615
        %v2834 = vsel %vm2820, %v2543, %v2617
        %v2836 = vsel %vm2820, %v2544, %v2619
        %v2838 = vsel %vm801, %v2822, %v2637
        %v2840 = vsel %vm801, %v2824, %v2639
        %v2842 = vsel %vm801, %v2826, %v2641
        %v2844 = vsel %vm801, %v2828, %v2643
        %v2846 = vsel %vm801, %v2830, %v2645
        %v2848 = vsel %vm801, %v2832, %v2647
        %v2850 = vsel %vm801, %v2834, %v2649
        %v2852 = vsel %vm801, %v2836, %v2651
        %vm2853 = vcmask 392192
        %v2855 = vsel %vm2853, %v2838, %v2677
        %v2857 = vsel %vm2853, %v2840, %v2679
        %v2859 = vsel %vm2853, %v2842, %v2681
        %v2861 = vsel %vm2853, %v2844, %v2683
        %v2863 = vsel %vm2853, %v2846, %v2685
        %v2865 = vsel %vm2853, %v2848, %v2687
        %v2867 = vsel %vm2853, %v2850, %v2689
        %v2869 = vsel %vm2853, %v2852, %v2691
        %vm2870 = vcmask 523264
        %v2872 = vsel %vm2870, %v2855, %v2694
        %v2874 = vsel %vm2870, %v2857, %v2696
        %v2876 = vsel %vm2870, %v2859, %v2698
        %v2878 = vsel %vm2870, %v2861, %v2700
        %v2880 = vsel %vm2870, %v2863, %v2702
        %v2882 = vsel %vm2870, %v2865, %v2704
        %v2884 = vsel %vm2870, %v2867, %v2706
        %v2886 = vsel %vm2870, %v2869, %v2708
        %vm2887 = vcmask 654336
        %v2889 = vsel %vm2887, %v2872, %v2717
        %v2891 = vsel %vm2887, %v2874, %v2719
        %v2893 = vsel %vm2887, %v2876, %v2721
        %v2895 = vsel %vm2887, %v2878, %v2723
        %v2897 = vsel %vm2887, %v2880, %v2725
        %v2899 = vsel %vm2887, %v2882, %v2727
        %v2901 = vsel %vm2887, %v2884, %v2729
        %v2903 = vsel %vm2887, %v2886, %v2731
        %vm2904 = vcmask 785408
        %v2906 = vsel %vm2904, %v2889, %v2734
        %v2908 = vsel %vm2904, %v2891, %v2736
        %v2910 = vsel %vm2904, %v2893, %v2738
        %v2912 = vsel %vm2904, %v2895, %v2740
        %v2914 = vsel %vm2904, %v2897, %v2742
        %v2916 = vsel %vm2904, %v2899, %v2744
        %v2918 = vsel %vm2904, %v2901, %v2746
        %v2920 = vsel %vm2904, %v2903, %v2748
        %vm2921 = vcmask 916480
        %v2923 = vsel %vm2921, %v2906, %v2753
        %v2925 = vsel %vm2921, %v2908, %v2755
        %v2927 = vsel %vm2921, %v2910, %v2757
        %v2929 = vsel %vm2921, %v2912, %v2759
        %v2931 = vsel %vm2921, %v2914, %v2761
        %v2933 = vsel %vm2921, %v2916, %v2763
        %v2935 = vsel %vm2921, %v2918, %v2765
        %v2937 = vsel %vm2921, %v2920, %v2767
        %v2939 = vsel %vm2820, %v2545, %v2776
        %v2941 = vsel %vm2820, %v2546, %v2778
        %v2943 = vsel %vm801, %v2939, %v2782
        %v2945 = vsel %vm801, %v2941, %v2784
        %v2947 = vsel %vm2853, %v2943, %v2789
        %v2949 = vsel %vm2853, %v2945, %v2791
        %v2951 = vsel %vm2870, %v2947, %v2794
        %v2953 = vsel %vm2870, %v2949, %v2796
        %v2955 = vsel %vm2887, %v2951, %v2805
        %v2957 = vsel %vm2887, %v2953, %v2807
        %v2959 = vsel %vm2904, %v2955, %v2810
        %v2961 = vsel %vm2904, %v2957, %v2812
        %v2963 = vsel %vm2921, %v2959, %v2817
        %v2965 = vsel %vm2921, %v2961, %v2819
        %v2976 = vunpack.c.l.b16 %v2923
        %v2977 = vunpack.c.l.b16 %v2927
        %v2978 = vunpack.c.l.b16 %v2925
        %v2979 = vunpack.c.l.b16 %v2929
        %v2980 = vunpack.c.l.b16 %v2931
        %v2981 = vunpack.c.l.b16 %v2933
        %v2982 = vunpack.c.l.b16 %v2935
        %v2983 = vunpack.c.l.b16 %v2937
        %v2984 = vunpack.c.l.b16 %v2963
        %v2985 = vunpack.c.l.b16 %v2965
        %v2986 = vld [vmem:[%s3] sm:$0xf]
        %v2987 = vld [vmem:[%s3 + $0x4] sm:$0xf]
        %v2988 = vld [vmem:[%s3 + $0x8] sm:$0xf]
        %v2989 = vld [vmem:[%s3 + $0xc] sm:$0xf]
        %v2990 = vld [vmem:[%s3 + $0x10] sm:$0xf]
        %v2991 = vld [vmem:[%s3 + $0x14] sm:$0xf]
        %v2992 = vld [vmem:[%s3 + $0x18] sm:$0xf]
        %v2993 = vld [vmem:[%s3 + $0x1c] sm:$0xf]
        %v2994 = vld [vmem:[%s3 + $0x20] sm:$0xf]
        %v2995 = vld [vmem:[%s3 + $0x24] sm:$0xf]
        %v2996 = vld [vmem:[%s3 + $0x28] sm:$0xf]
        %v2997 = vld [vmem:[%s3 + $0x2c] sm:$0xf]
        %v2998 = vld [vmem:[%s3 + $0x30] sm:$0xf]
        %v2999 = vld [vmem:[%s3 + $0x34] sm:$0xf]
        %v3000 = vld [vmem:[%s3 + $0x38] sm:$0xf]
        %v3001 = vld [vmem:[%s3 + $0x3c] sm:$0xf]
        %v3002 = vld [vmem:[%s3 + $0x40] sm:$0xf]
        %v3003 = vld [vmem:[%s3 + $0x44] sm:$0xf]
        %v3004 = vld [vmem:[%s3 + $0x48] sm:$0xf]
        %v3005 = vld [vmem:[%s3 + $0x4c] sm:$0xf]
        %v3006 = vld [vmem:[%s3 + $0x50] sm:$0xf]
        %v3007 = vld [vmem:[%s3 + $0x54] sm:$0xf]
        %v3008 = vld [vmem:[%s3 + $0x58] sm:$0xf]
        %v3009 = vld [vmem:[%s3 + $0x5c] sm:$0xf]
        %v3010 = vld [vmem:[%s3 + $0x60] sm:$0xf]
        %v3011 = vld [vmem:[%s3 + $0x64] sm:$0xf]
        %v3012 = vld [vmem:[%s3 + $0x68] sm:$0xf]
        %v3013 = vld [vmem:[%s3 + $0x6c] sm:$0xf]
        %v3014 = vld [vmem:[%s3 + $0x70] sm:$0xf]
        %v3015 = vld [vmem:[%s3 + $0x74] sm:$0xf]
        %v3016 = vld [vmem:[%s3 + $0x78] sm:$0xf]
        %v3017 = vld [vmem:[%s3 + $0x7c] sm:$0xf]
        %v3018 = vld [vmem:[%s4] sm:$0x1]
        %v3020 = vperm.slane %v3018, 0
        %v3022 = vpack.c.b16 %v2978, %v2976
        %v3023 = vpack.c.b16 %v2979, %v2977
        %v3024 = vpack.c.b16 %v2981, %v2980
        %v3025 = vpack.c.b16 %v2983, %v2982
        %v3026 = vpack.c.b16 %v2985, %v2984
        %v3064 = vunpack.c.l.b16 %v2986
        %v3065 = vunpack.c.l.b16 %v2987
        %v3066 = vunpack.c.l.b16 %v2988
        %v3067 = vunpack.c.l.b16 %v2989
        %v3068 = vunpack.c.l.b16 %v2990
        %v3069 = vunpack.c.l.b16 %v2991
        %v3070 = vunpack.c.l.b16 %v2992
        %v3071 = vunpack.c.l.b16 %v2993
        %v3072 = vunpack.c.l.b16 %v2994
        %v3073 = vunpack.c.l.b16 %v2995
        %v3074 = vunpack.c.l.b16 %v2996
        %v3075 = vunpack.c.l.b16 %v2997
        %v3076 = vunpack.c.l.b16 %v2998
        %v3077 = vunpack.c.l.b16 %v2999
        %v3078 = vunpack.c.l.b16 %v3000
        %v3079 = vunpack.c.l.b16 %v3001
        %v3080 = vunpack.c.l.b16 %v3002
        %v3081 = vunpack.c.l.b16 %v3003
        %v3082 = vunpack.c.l.b16 %v3004
        %v3083 = vunpack.c.l.b16 %v3005
        %v3084 = vunpack.c.l.b16 %v3006
        %v3085 = vunpack.c.l.b16 %v3007
        %v3086 = vunpack.c.l.b16 %v3008
        %v3087 = vunpack.c.l.b16 %v3009
        %v3088 = vunpack.c.l.b16 %v3010
        %v3089 = vunpack.c.l.b16 %v3011
        %v3090 = vunpack.c.l.b16 %v3012
        %v3091 = vunpack.c.l.b16 %v3013
        %v3092 = vunpack.c.l.b16 %v3014
        %v3093 = vunpack.c.l.b16 %v3015
        %v3094 = vunpack.c.l.b16 %v3016
        %v3095 = vunpack.c.l.b16 %v3017
        %v3096 = vpack.c.b16 %v3065, %v3064
        %v3097 = vpack.c.b16 %v3067, %v3066
        %v3098 = vpack.c.b16 %v3069, %v3068
        %v3099 = vpack.c.b16 %v3071, %v3070
        %v3100 = vpack.c.b16 %v3073, %v3072
        %v3101 = vpack.c.b16 %v3075, %v3074
        %v3102 = vpack.c.b16 %v3077, %v3076
        %v3103 = vpack.c.b16 %v3079, %v3078
        %v3104 = vpack.c.b16 %v3081, %v3080
        %v3105 = vpack.c.b16 %v3083, %v3082
        %v3106 = vpack.c.b16 %v3085, %v3084
        %v3107 = vpack.c.b16 %v3087, %v3086
        %v3108 = vpack.c.b16 %v3089, %v3088
        %v3109 = vpack.c.b16 %v3091, %v3090
        %v3110 = vpack.c.b16 %v3093, %v3092
        %v3111 = vpack.c.b16 %v3095, %v3094
        %3128 = vmatpush.bf16.msra.mxu0 %v3103
        %3129 = vmatpush.bf16.msra.mxu0 %v3102
        %3130 = vmatpush.bf16.msra.mxu0 %v3101
        %3131 = vmatpush.bf16.msra.mxu0 %v3100
        %3132 = vmatpush.bf16.msra.mxu0 %v3099
        %3133 = vmatpush.bf16.msra.mxu0 %v3098
        %3134 = vmatpush.bf16.msra.mxu0 %v3097
        %3135 = vmatpush.bf16.msra.mxu0 %v3096
        %3136 = vmatmul.bf16.gmra.mxu0 %v3022
        %v3137 = vpop.f32.mrf.mxu0
        %v3138 = vadd.f32 %v3020, %v3137
        %v3139 = vpop.f32.mrf.mxu0
        %v3140 = vadd.f32 %v3020, %v3139
        %3141 = vmatmul.bf16.gmra.mxu0 %v3023
        %v3142 = vpop.f32.mrf.mxu0
        %v3143 = vadd.f32 %v3020, %v3142
        %v3144 = vpop.f32.mrf.mxu0
        %v3145 = vadd.f32 %v3020, %v3144
        %3146 = vmatmul.bf16.gmra.mxu0 %v3024
        %v3147 = vpop.f32.mrf.mxu0
        %v3148 = vadd.f32 %v3020, %v3147
        %v3149 = vpop.f32.mrf.mxu0
        %v3150 = vadd.f32 %v3020, %v3149
        %3151 = vmatmul.bf16.gmra.mxu0 %v3025
        %v3152 = vpop.f32.mrf.mxu0
        %v3153 = vadd.f32 %v3020, %v3152
        %v3154 = vpop.f32.mrf.mxu0
        %v3155 = vadd.f32 %v3020, %v3154
        %3156 = vdwg.mxu0
        %3157 = vmatpush.bf16.msra.mxu0 %v3111
        %3158 = vmatpush.bf16.msra.mxu0 %v3110
        %3159 = vmatpush.bf16.msra.mxu0 %v3109
        %3160 = vmatpush.bf16.msra.mxu0 %v3108
        %3161 = vmatpush.bf16.msra.mxu0 %v3107
        %3162 = vmatpush.bf16.msra.mxu0 %v3106
        %3163 = vmatpush.bf16.msra.mxu0 %v3105
        %3164 = vmatpush.bf16.msra.mxu0 %v3104
        %3165 = vmatmul.bf16.gmra.mxu0 %v3023
        %v3166 = vpop.f32.mrf.mxu0
        %v3167 = vadd.f32 %v3138, %v3166
        %v3168 = vpop.f32.mrf.mxu0
        %v3169 = vadd.f32 %v3140, %v3168
        %3170 = vmatmul.bf16.gmra.mxu0 %v3024
        %v3171 = vpop.f32.mrf.mxu0
        %v3172 = vadd.f32 %v3143, %v3171
        %v3173 = vpop.f32.mrf.mxu0
        %v3174 = vadd.f32 %v3145, %v3173
        %3175 = vmatmul.bf16.gmra.mxu0 %v3025
        %v3176 = vpop.f32.mrf.mxu0
        %v3177 = vadd.f32 %v3148, %v3176
        %v3178 = vpop.f32.mrf.mxu0
        %v3179 = vadd.f32 %v3150, %v3178
        %3180 = vmatmul.bf16.gmra.mxu0 %v3026
        %v3181 = vpop.f32.mrf.mxu0
        %v3182 = vadd.f32 %v3153, %v3181
        %v3183 = vpop.f32.mrf.mxu0
        %v3184 = vadd.f32 %v3155, %v3183
        %3185 = vdwg.mxu0
        %v3186 = vmax.f32 %v3167, 0.0
        %v3187 = vmax.f32 %v3169, 0.0
        %v3188 = vmax.f32 %v3172, 0.0
        %v3189 = vmax.f32 %v3174, 0.0
        %v3190 = vmax.f32 %v3177, 0.0
        %v3191 = vmax.f32 %v3179, 0.0
        %v3192 = vmax.f32 %v3182, 0.0
        %v3193 = vmax.f32 %v3184, 0.0
        %3198 = vst [vmem:[#allocation1] ss:$2 sm:$0xff] %v3186
        %s3199 = scalar_lea.vmem [#allocation1], 1
        %3200 = vst [vmem:[%s3199] ss:$2 sm:$0xff] %v3187
        %s3201 = scalar_lea.vmem [#allocation1], 16
        %3202 = vst [vmem:[%s3201] ss:$2 sm:$0xff] %v3188
        %s3203 = scalar_lea.vmem [#allocation1], 17
        %3204 = vst [vmem:[%s3203] ss:$2 sm:$0xff] %v3189
        %v3205 = vld.sshfl [vmem:[#allocation1] sm:$0xff pattern:$0x75316420]
        %v3206 = vld.sshfl [vmem:[#allocation1 + $0x10] sm:$0xff pattern:$0x75316420]
        %v3209 = vsel %vm2870, %v3205, -inf
        %v3210 = vsel %vm2870, %v3206, -inf
        %v3211 = vmax.f32 %v3209, %v3210
        %v3212 = vrot.slane %v3211, 4
        %v3213 = vmax.f32 %v3211, %v3212
        %v3214 = vrot.slane %v3213, 2
        %v3215 = vmax.f32 %v3213, %v3214
        %v3216 = vrot.slane %v3215, 1
        %v3217 = vmax.f32 %v3215, %v3216
        %3218 = vst.sshfl [vmem:[#allocation1] sm:$0xff pattern:$0x75316420] %v3186
        %s3219 = scalar_lea.vmem [#allocation1], 1
        %v3220 = vld [vmem:[%s3219] ss:$2 sm:$0xff]
        %3221 = vst.sshfl [vmem:[#allocation1 + $0x10] sm:$0xff pattern:$0x75316420] %v3187
        %s3222 = scalar_lea.vmem [#allocation1], 17
        %v3223 = vld [vmem:[%s3222] ss:$2 sm:$0xff]
        %3224 = vst.sshfl [vmem:[#allocation1 + $0x20] sm:$0xff pattern:$0x75316420] %v3188
        %s3225 = scalar_lea.vmem [#allocation1], 33
        %v3226 = vld [vmem:[%s3225] ss:$2 sm:$0xff]
        %3227 = vst.sshfl [vmem:[#allocation1 + $0x30] sm:$0xff pattern:$0x75316420] %v3189
        %s3228 = scalar_lea.vmem [#allocation1], 49
        %v3229 = vld [vmem:[%s3228] ss:$2 sm:$0xff]
        %3230 = vst [vmem:[#allocation1] ss:$2 sm:$0xff] %v3220
        %s3231 = scalar_lea.vmem [#allocation1], 1
        %3232 = vst [vmem:[%s3231] ss:$2 sm:$0xff] %v3223
        %s3233 = scalar_lea.vmem [#allocation1], 16
        %3234 = vst [vmem:[%s3233] ss:$2 sm:$0xff] %v3226
        %s3235 = scalar_lea.vmem [#allocation1], 17
        %3236 = vst [vmem:[%s3235] ss:$2 sm:$0xff] %v3229
        %v3237 = vld.sshfl [vmem:[#allocation1] sm:$0xff pattern:$0x75316420]
        %v3238 = vld.sshfl [vmem:[#allocation1 + $0x10] sm:$0xff pattern:$0x75316420]
        %v3241 = vsel %vm2870, %v3237, -inf
        %v3242 = vsel %vm2870, %v3238, -inf
        %v3243 = vmax.f32 %v3241, %v3242
        %v3244 = vrot.slane %v3243, 4
        %v3245 = vmax.f32 %v3243, %v3244
        %v3246 = vrot.slane %v3245, 2
        %v3247 = vmax.f32 %v3245, %v3246
        %v3248 = vrot.slane %v3247, 1
        %v3249 = vmax.f32 %v3247, %v3248
        %3254 = vst [vmem:[#allocation1] ss:$2 sm:$0xff] %v3190
        %s3255 = scalar_lea.vmem [#allocation1], 1
        %3256 = vst [vmem:[%s3255] ss:$2 sm:$0xff] %v3191
        %s3257 = scalar_lea.vmem [#allocation1], 16
        %3258 = vst [vmem:[%s3257] ss:$2 sm:$0xff] %v3192
        %s3259 = scalar_lea.vmem [#allocation1], 17
        %3260 = vst [vmem:[%s3259] ss:$2 sm:$0xff] %v3193
        %v3261 = vld.sshfl [vmem:[#allocation1] sm:$0xff pattern:$0x75316420]
        %v3262 = vld.sshfl [vmem:[#allocation1 + $0x10] sm:$0xff pattern:$0x75316420]
        %v3265 = vsel %vm2870, %v3261, -inf
        %v3266 = vsel %vm2870, %v3262, -inf
        %v3267 = vmax.f32 %v3265, %v3266
        %v3268 = vrot.slane %v3267, 4
        %v3269 = vmax.f32 %v3267, %v3268
        %v3270 = vrot.slane %v3269, 2
        %v3271 = vmax.f32 %v3269, %v3270
        %v3272 = vrot.slane %v3271, 1
        %v3273 = vmax.f32 %v3271, %v3272
        %3274 = vst.sshfl [vmem:[#allocation1] sm:$0xff pattern:$0x75316420] %v3190
        %s3275 = scalar_lea.vmem [#allocation1], 1
        %v3276 = vld [vmem:[%s3275] ss:$2 sm:$0xff]
        %3277 = vst.sshfl [vmem:[#allocation1 + $0x10] sm:$0xff pattern:$0x75316420] %v3191
        %s3278 = scalar_lea.vmem [#allocation1], 17
        %v3279 = vld [vmem:[%s3278] ss:$2 sm:$0xff]
        %3280 = vst.sshfl [vmem:[#allocation1 + $0x20] sm:$0xff pattern:$0x75316420] %v3192
        %s3281 = scalar_lea.vmem [#allocation1], 33
        %v3282 = vld [vmem:[%s3281] ss:$2 sm:$0xff]
        %3283 = vst.sshfl [vmem:[#allocation1 + $0x30] sm:$0xff pattern:$0x75316420] %v3193
        %s3284 = scalar_lea.vmem [#allocation1], 49
        %v3285 = vld [vmem:[%s3284] ss:$2 sm:$0xff]
        %3286 = vst [vmem:[#allocation1] ss:$2 sm:$0xff] %v3276
        %s3287 = scalar_lea.vmem [#allocation1], 1
        %3288 = vst [vmem:[%s3287] ss:$2 sm:$0xff] %v3279
        %s3289 = scalar_lea.vmem [#allocation1], 16
        %3290 = vst [vmem:[%s3289] ss:$2 sm:$0xff] %v3282
        %s3291 = scalar_lea.vmem [#allocation1], 17
        %3292 = vst [vmem:[%s3291] ss:$2 sm:$0xff] %v3285
        %v3293 = vld.sshfl [vmem:[#allocation1] sm:$0xff pattern:$0x75316420]
        %v3294 = vld.sshfl [vmem:[#allocation1 + $0x10] sm:$0xff pattern:$0x75316420]
        %v3297 = vsel %vm2870, %v3293, -inf
        %v3298 = vsel %vm2870, %v3294, -inf
        %v3299 = vmax.f32 %v3297, %v3298
        %v3300 = vrot.slane %v3299, 4
        %v3301 = vmax.f32 %v3299, %v3300
        %v3302 = vrot.slane %v3301, 2
        %v3303 = vmax.f32 %v3301, %v3302
        %v3304 = vrot.slane %v3303, 1
        %v3305 = vmax.f32 %v3303, %v3304
        %3307 = vrot.lane.b32.xlu0 %v3249, 64
        %v3308 = vpop.permute.xlu0 %3307
        %3311 = vrot.lane.b32.xlu0 %v3305, 64
        %v3312 = vpop.permute.xlu0 %3311
        %v3314 = vsel %vm2870, %v3217, %v3308
        %v3315 = vsel %vm2870, %v3273, %v3312
        %v3316 = vpack.c.bf16 %v3314, %v3314
        %v3317 = vpack.c.bf16 %v3315, %v3315
        %v3318 = vld [vmem:[%s5] sm:$0xff]
        %v3319 = vld [vmem:[%s5 + $0x8] sm:$0xf]
        %v3320 = vld [vmem:[%s5 + $0xc] sm:$0xff]
        %v3321 = vld [vmem:[%s5 + $0x14] sm:$0xf]
        %v3322 = vld [vmem:[%s5 + $0x18] sm:$0xff]
        %v3323 = vld [vmem:[%s5 + $0x20] sm:$0xf]
        %v3324 = vld [vmem:[%s5 + $0x24] sm:$0xff]
        %v3325 = vld [vmem:[%s5 + $0x2c] sm:$0xf]
        %v3326 = vld [vmem:[%s5 + $0x30] sm:$0xff]
        %v3327 = vld [vmem:[%s5 + $0x38] sm:$0xf]
        %v3328 = vld [vmem:[%s5 + $0x3c] sm:$0xff]
        %v3329 = vld [vmem:[%s5 + $0x44] sm:$0xf]
        %v3330 = vld [vmem:[%s5 + $0x48] sm:$0xff]
        %v3331 = vld [vmem:[%s5 + $0x50] sm:$0xf]
        %v3332 = vld [vmem:[%s5 + $0x54] sm:$0xff]
        %v3333 = vld [vmem:[%s5 + $0x5c] sm:$0xf]
        %v3334 = vld [vmem:[%s5 + $0x60] sm:$0xff]
        %v3335 = vld [vmem:[%s5 + $0x68] sm:$0xf]
        %v3336 = vld [vmem:[%s5 + $0x6c] sm:$0xff]
        %v3337 = vld [vmem:[%s5 + $0x74] sm:$0xf]
        %v3338 = vld [vmem:[%s5 + $0x78] sm:$0xff]
        %v3339 = vld [vmem:[%s5 + $0x80] sm:$0xf]
        %v3340 = vld [vmem:[%s5 + $0x84] sm:$0xff]
        %v3341 = vld [vmem:[%s5 + $0x8c] sm:$0xf]
        %v3342 = vld [vmem:[%s5 + $0x90] sm:$0xff]
        %v3343 = vld [vmem:[%s5 + $0x98] sm:$0xf]
        %v3344 = vld [vmem:[%s5 + $0x9c] sm:$0xff]
        %v3345 = vld [vmem:[%s5 + $0xa4] sm:$0xf]
        %v3346 = vld [vmem:[%s5 + $0xa8] sm:$0xff]
        %v3347 = vld [vmem:[%s5 + $0xb0] sm:$0xf]
        %v3348 = vld [vmem:[%s5 + $0xb4] sm:$0xff]
        %v3349 = vld [vmem:[%s5 + $0xbc] sm:$0xf]
        %v3350 = vld [vmem:[%s5 + $0xc0] sm:$0xff]
        %v3351 = vld [vmem:[%s5 + $0xc8] sm:$0xf]
        %v3352 = vld [vmem:[%s5 + $0xcc] sm:$0xff]
        %v3353 = vld [vmem:[%s5 + $0xd4] sm:$0xf]
        %v3354 = vld [vmem:[%s5 + $0xd8] sm:$0xff]
        %v3355 = vld [vmem:[%s5 + $0xe0] sm:$0xf]
        %v3356 = vld [vmem:[%s5 + $0xe4] sm:$0xff]
        %v3357 = vld [vmem:[%s5 + $0xec] sm:$0xf]
        %v3358 = vld [vmem:[%s5 + $0xf0] sm:$0xff]
        %v3359 = vld [vmem:[%s5 + $0xf8] sm:$0xf]
        %v3360 = vld [vmem:[%s5 + $0xfc] sm:$0xff]
        %v3361 = vld [vmem:[%s5 + $0x104] sm:$0xf]
        %v3362 = vld [vmem:[%s5 + $0x108] sm:$0xff]
        %v3363 = vld [vmem:[%s5 + $0x110] sm:$0xf]
        %v3364 = vld [vmem:[%s5 + $0x114] sm:$0xff]
        %v3365 = vld [vmem:[%s5 + $0x11c] sm:$0xf]
        %v3366 = vld [vmem:[%s5 + $0x120] sm:$0xff]
        %v3367 = vld [vmem:[%s5 + $0x128] sm:$0xf]
        %v3368 = vld [vmem:[%s5 + $0x12c] sm:$0xff]
        %v3369 = vld [vmem:[%s5 + $0x134] sm:$0xf]
        %v3370 = vld [vmem:[%s5 + $0x138] sm:$0xff]
        %v3371 = vld [vmem:[%s5 + $0x140] sm:$0xf]
        %v3372 = vld [vmem:[%s5 + $0x144] sm:$0xff]
        %v3373 = vld [vmem:[%s5 + $0x14c] sm:$0xf]
        %v3374 = vld [vmem:[%s5 + $0x150] sm:$0xff]
        %v3375 = vld [vmem:[%s5 + $0x158] sm:$0xf]
        %v3376 = vld [vmem:[%s5 + $0x15c] sm:$0xff]
        %v3377 = vld [vmem:[%s5 + $0x164] sm:$0xf]
        %v3378 = vld [vmem:[%s5 + $0x168] sm:$0xff]
        %v3379 = vld [vmem:[%s5 + $0x170] sm:$0xf]
        %v3380 = vld [vmem:[%s5 + $0x174] sm:$0xff]
        %v3381 = vld [vmem:[%s5 + $0x17c] sm:$0xf]
        %v3382 = vld [vmem:[%s6] sm:$0x7]
        %v3447 = vunpack.c.l.b16 %v3318
        %v3448 = vunpack.c.h.b16 %v3318
        %v3449 = vunpack.c.l.b16 %v3319
        %v3450 = vunpack.c.l.b16 %v3320
        %v3451 = vunpack.c.h.b16 %v3320
        %v3452 = vunpack.c.l.b16 %v3321
        %v3453 = vunpack.c.l.b16 %v3322
        %v3454 = vunpack.c.h.b16 %v3322
        %v3455 = vunpack.c.l.b16 %v3323
        %v3456 = vunpack.c.l.b16 %v3324
        %v3457 = vunpack.c.h.b16 %v3324
        %v3458 = vunpack.c.l.b16 %v3325
        %v3459 = vunpack.c.l.b16 %v3326
        %v3460 = vunpack.c.h.b16 %v3326
        %v3461 = vunpack.c.l.b16 %v3327
        %v3462 = vunpack.c.l.b16 %v3328
        %v3463 = vunpack.c.h.b16 %v3328
        %v3464 = vunpack.c.l.b16 %v3329
        %v3465 = vunpack.c.l.b16 %v3330
        %v3466 = vunpack.c.h.b16 %v3330
        %v3467 = vunpack.c.l.b16 %v3331
        %v3468 = vunpack.c.l.b16 %v3332
        %v3469 = vunpack.c.h.b16 %v3332
        %v3470 = vunpack.c.l.b16 %v3333
        %v3471 = vunpack.c.l.b16 %v3334
        %v3472 = vunpack.c.h.b16 %v3334
        %v3473 = vunpack.c.l.b16 %v3335
        %v3474 = vunpack.c.l.b16 %v3336
        %v3475 = vunpack.c.h.b16 %v3336
        %v3476 = vunpack.c.l.b16 %v3337
        %v3477 = vunpack.c.l.b16 %v3338
        %v3478 = vunpack.c.h.b16 %v3338
        %v3479 = vunpack.c.l.b16 %v3339
        %v3480 = vunpack.c.l.b16 %v3340
        %v3481 = vunpack.c.h.b16 %v3340
        %v3482 = vunpack.c.l.b16 %v3341
        %v3483 = vunpack.c.l.b16 %v3342
        %v3484 = vunpack.c.h.b16 %v3342
        %v3485 = vunpack.c.l.b16 %v3343
        %v3486 = vunpack.c.l.b16 %v3344
        %v3487 = vunpack.c.h.b16 %v3344
        %v3488 = vunpack.c.l.b16 %v3345
        %v3489 = vunpack.c.l.b16 %v3346
        %v3490 = vunpack.c.h.b16 %v3346
        %v3491 = vunpack.c.l.b16 %v3347
        %v3492 = vunpack.c.l.b16 %v3348
        %v3493 = vunpack.c.h.b16 %v3348
        %v3494 = vunpack.c.l.b16 %v3349
        %v3495 = vunpack.c.l.b16 %v3350
        %v3496 = vunpack.c.h.b16 %v3350
        %v3497 = vunpack.c.l.b16 %v3351
        %v3498 = vunpack.c.l.b16 %v3352
        %v3499 = vunpack.c.h.b16 %v3352
        %v3500 = vunpack.c.l.b16 %v3353
        %v3501 = vunpack.c.l.b16 %v3354
        %v3502 = vunpack.c.h.b16 %v3354
        %v3503 = vunpack.c.l.b16 %v3355
        %v3504 = vunpack.c.l.b16 %v3356
        %v3505 = vunpack.c.h.b16 %v3356
        %v3506 = vunpack.c.l.b16 %v3357
        %v3507 = vunpack.c.l.b16 %v3358
        %v3508 = vunpack.c.h.b16 %v3358
        %v3509 = vunpack.c.l.b16 %v3359
        %v3510 = vunpack.c.l.b16 %v3360
        %v3511 = vunpack.c.h.b16 %v3360
        %v3512 = vunpack.c.l.b16 %v3361
        %v3513 = vunpack.c.l.b16 %v3362
        %v3514 = vunpack.c.h.b16 %v3362
        %v3515 = vunpack.c.l.b16 %v3363
        %v3516 = vunpack.c.l.b16 %v3364
        %v3517 = vunpack.c.h.b16 %v3364
        %v3518 = vunpack.c.l.b16 %v3365
        %v3519 = vunpack.c.l.b16 %v3366
        %v3520 = vunpack.c.h.b16 %v3366
        %v3521 = vunpack.c.l.b16 %v3367
        %v3522 = vunpack.c.l.b16 %v3368
        %v3523 = vunpack.c.h.b16 %v3368
        %v3524 = vunpack.c.l.b16 %v3369
        %v3525 = vunpack.c.l.b16 %v3370
        %v3526 = vunpack.c.h.b16 %v3370
        %v3527 = vunpack.c.l.b16 %v3371
        %v3528 = vunpack.c.l.b16 %v3372
        %v3529 = vunpack.c.h.b16 %v3372
        %v3530 = vunpack.c.l.b16 %v3373
        %v3531 = vunpack.c.l.b16 %v3374
        %v3532 = vunpack.c.h.b16 %v3374
        %v3533 = vunpack.c.l.b16 %v3375
        %v3534 = vunpack.c.l.b16 %v3376
        %v3535 = vunpack.c.h.b16 %v3376
        %v3536 = vunpack.c.l.b16 %v3377
        %v3537 = vunpack.c.l.b16 %v3378
        %v3538 = vunpack.c.h.b16 %v3378
        %v3539 = vunpack.c.l.b16 %v3379
        %v3540 = vunpack.c.l.b16 %v3380
        %v3541 = vunpack.c.h.b16 %v3380
        %v3542 = vunpack.c.l.b16 %v3381
        %v3543 = vpack.c.b16 %v3450, %v3447
        %v3544 = vpack.c.b16 %v3451, %v3448
        %v3545 = vpack.c.b16 %v3452, %v3449
        %v3546 = vpack.c.b16 %v3456, %v3453
        %v3547 = vpack.c.b16 %v3457, %v3454
        %v3548 = vpack.c.b16 %v3458, %v3455
        %v3549 = vpack.c.b16 %v3462, %v3459
        %v3550 = vpack.c.b16 %v3463, %v3460
        %v3551 = vpack.c.b16 %v3464, %v3461
        %v3552 = vpack.c.b16 %v3468, %v3465
        %v3553 = vpack.c.b16 %v3469, %v3466
        %v3554 = vpack.c.b16 %v3470, %v3467
        %v3555 = vpack.c.b16 %v3474, %v3471
        %v3556 = vpack.c.b16 %v3475, %v3472
        %v3557 = vpack.c.b16 %v3476, %v3473
        %v3558 = vpack.c.b16 %v3480, %v3477
        %v3559 = vpack.c.b16 %v3481, %v3478
        %v3560 = vpack.c.b16 %v3482, %v3479
        %v3561 = vpack.c.b16 %v3486, %v3483
        %v3562 = vpack.c.b16 %v3487, %v3484
        %v3563 = vpack.c.b16 %v3488, %v3485
        %v3564 = vpack.c.b16 %v3492, %v3489
        %v3565 = vpack.c.b16 %v3493, %v3490
        %v3566 = vpack.c.b16 %v3494, %v3491
        %v3567 = vpack.c.b16 %v3498, %v3495
        %v3568 = vpack.c.b16 %v3499, %v3496
        %v3569 = vpack.c.b16 %v3500, %v3497
        %v3570 = vpack.c.b16 %v3504, %v3501
        %v3571 = vpack.c.b16 %v3505, %v3502
        %v3572 = vpack.c.b16 %v3506, %v3503
        %v3573 = vpack.c.b16 %v3510, %v3507
        %v3574 = vpack.c.b16 %v3511, %v3508
        %v3575 = vpack.c.b16 %v3512, %v3509
        %v3576 = vpack.c.b16 %v3516, %v3513
        %v3577 = vpack.c.b16 %v3517, %v3514
        %v3578 = vpack.c.b16 %v3518, %v3515
        %v3579 = vpack.c.b16 %v3522, %v3519
        %v3580 = vpack.c.b16 %v3523, %v3520
        %v3581 = vpack.c.b16 %v3524, %v3521
        %v3582 = vpack.c.b16 %v3528, %v3525
        %v3583 = vpack.c.b16 %v3529, %v3526
        %v3584 = vpack.c.b16 %v3530, %v3527
        %v3585 = vpack.c.b16 %v3534, %v3531
        %v3586 = vpack.c.b16 %v3535, %v3532
        %v3587 = vpack.c.b16 %v3536, %v3533
        %v3588 = vpack.c.b16 %v3540, %v3537
        %v3589 = vpack.c.b16 %v3541, %v3538
        %v3590 = vpack.c.b16 %v3542, %v3539
        %v3640 = vperm.slane %v3382, 0
        %v3641 = vperm.slane %v3382, 1
        %v3642 = vperm.slane %v3382, 2
        %3646 = vmatpush.bf16.msra.mxu0 %v3564
        %3647 = vmatpush.bf16.msra.mxu0 %v3561
        %3648 = vmatpush.bf16.msra.mxu0 %v3558
        %3649 = vmatpush.bf16.msra.mxu0 %v3555
        %3650 = vmatpush.bf16.msra.mxu0 %v3552
        %3651 = vmatpush.bf16.msra.mxu0 %v3549
        %3652 = vmatpush.bf16.msra.mxu0 %v3546
        %3653 = vmatpush.bf16.msra.mxu0 %v3543
        %3654 = vmatmul.bf16.gmra.mxu0 %v3316
        %v3655 = vpop.f32.mrf.mxu0
        %v3656 = vadd.f32 %v3640, %v3655
        %v3657 = vpop.f32.mrf.mxu0
        %3658 = vdwg.mxu0
        %3659 = vmatpush.bf16.msra.mxu0 %v3588
        %3660 = vmatpush.bf16.msra.mxu0 %v3585
        %3661 = vmatpush.bf16.msra.mxu0 %v3582
        %3662 = vmatpush.bf16.msra.mxu0 %v3579
        %3663 = vmatpush.bf16.msra.mxu0 %v3576
        %3664 = vmatpush.bf16.msra.mxu0 %v3573
        %3665 = vmatpush.bf16.msra.mxu0 %v3570
        %3666 = vmatpush.bf16.msra.mxu0 %v3567
        %3667 = vmatmul.bf16.gmra.mxu0 %v3317
        %v3668 = vpop.f32.mrf.mxu0
        %v3669 = vadd.f32 %v3656, %v3668
        %v3670 = vpop.f32.mrf.mxu0
        %3671 = vdwg.mxu0
        %3672 = vmatpush.bf16.msra.mxu0 %v3565
        %3673 = vmatpush.bf16.msra.mxu0 %v3562
        %3674 = vmatpush.bf16.msra.mxu0 %v3559
        %3675 = vmatpush.bf16.msra.mxu0 %v3556
        %3676 = vmatpush.bf16.msra.mxu0 %v3553
        %3677 = vmatpush.bf16.msra.mxu0 %v3550
        %3678 = vmatpush.bf16.msra.mxu0 %v3547
        %3679 = vmatpush.bf16.msra.mxu0 %v3544
        %3680 = vmatmul.bf16.gmra.mxu0 %v3316
        %v3681 = vpop.f32.mrf.mxu0
        %v3682 = vadd.f32 %v3641, %v3681
        %v3683 = vpop.f32.mrf.mxu0
        %3684 = vdwg.mxu0
        %3685 = vmatpush.bf16.msra.mxu0 %v3589
        %3686 = vmatpush.bf16.msra.mxu0 %v3586
        %3687 = vmatpush.bf16.msra.mxu0 %v3583
        %3688 = vmatpush.bf16.msra.mxu0 %v3580
        %3689 = vmatpush.bf16.msra.mxu0 %v3577
        %3690 = vmatpush.bf16.msra.mxu0 %v3574
        %3691 = vmatpush.bf16.msra.mxu0 %v3571
        %3692 = vmatpush.bf16.msra.mxu0 %v3568
        %3693 = vmatmul.bf16.gmra.mxu0 %v3317
        %v3694 = vpop.f32.mrf.mxu0
        %v3695 = vadd.f32 %v3682, %v3694
        %v3696 = vpop.f32.mrf.mxu0
        %3697 = vdwg.mxu0
        %3698 = vmatpush.bf16.msra.mxu0 %v3566
        %3699 = vmatpush.bf16.msra.mxu0 %v3563
        %3700 = vmatpush.bf16.msra.mxu0 %v3560
        %3701 = vmatpush.bf16.msra.mxu0 %v3557
        %3702 = vmatpush.bf16.msra.mxu0 %v3554
        %3703 = vmatpush.bf16.msra.mxu0 %v3551
        %3704 = vmatpush.bf16.msra.mxu0 %v3548
        %3705 = vmatpush.bf16.msra.mxu0 %v3545
        %3706 = vmatmul.bf16.gmra.mxu0 %v3316
        %v3707 = vpop.f32.mrf.mxu0
        %v3708 = vadd.f32 %v3642, %v3707
        %v3709 = vpop.f32.mrf.mxu0
        %3710 = vdwg.mxu0
        %3711 = vmatpush.bf16.msra.mxu0 %v3590
        %3712 = vmatpush.bf16.msra.mxu0 %v3587
        %3713 = vmatpush.bf16.msra.mxu0 %v3584
        %3714 = vmatpush.bf16.msra.mxu0 %v3581
        %3715 = vmatpush.bf16.msra.mxu0 %v3578
        %3716 = vmatpush.bf16.msra.mxu0 %v3575
        %3717 = vmatpush.bf16.msra.mxu0 %v3572
        %3718 = vmatpush.bf16.msra.mxu0 %v3569
        %3719 = vmatmul.bf16.gmra.mxu0 %v3317
        %v3720 = vpop.f32.mrf.mxu0
        %v3721 = vadd.f32 %v3708, %v3720
        %v3722 = vpop.f32.mrf.mxu0
        %3723 = vdwg.mxu0
        %v3724 = vmax.f32 %v3669, 0.0
        %v3725 = vmax.f32 %v3695, 0.0
        %v3726 = vmax.f32 %v3721, 0.0
        %v3727 = vpack.c.bf16 %v3724, %v3724
        %v3728 = vpack.c.bf16 %v3725, %v3725
        %v3729 = vpack.c.bf16 %v3726, %v3726
        %v3730 = vld [vmem:[%s7] sm:$0xff]
        %v3731 = vld [vmem:[%s7 + $0x8] sm:$0xff]
        %v3732 = vld [vmem:[%s7 + $0x10] sm:$0xff]
        %v3733 = vld [vmem:[%s7 + $0x18] sm:$0xff]
        %v3734 = vld [vmem:[%s7 + $0x20] sm:$0xff]
        %v3735 = vld [vmem:[%s7 + $0x28] sm:$0xff]
        %v3736 = vld [vmem:[%s7 + $0x30] sm:$0xff]
        %v3737 = vld [vmem:[%s7 + $0x38] sm:$0xff]
        %v3738 = vld [vmem:[%s7 + $0x40] sm:$0xff]
        %v3739 = vld [vmem:[%s7 + $0x48] sm:$0xff]
        %v3740 = vld [vmem:[%s7 + $0x50] sm:$0xff]
        %v3741 = vld [vmem:[%s7 + $0x58] sm:$0xff]
        %v3742 = vld [vmem:[%s7 + $0x60] sm:$0xff]
        %v3743 = vld [vmem:[%s7 + $0x68] sm:$0xff]
        %v3744 = vld [vmem:[%s7 + $0x70] sm:$0xff]
        %v3745 = vld [vmem:[%s7 + $0x78] sm:$0xff]
        %v3746 = vld [vmem:[%s7 + $0x80] sm:$0xff]
        %v3747 = vld [vmem:[%s7 + $0x88] sm:$0xff]
        %v3748 = vld [vmem:[%s7 + $0x90] sm:$0xff]
        %v3749 = vld [vmem:[%s7 + $0x98] sm:$0xff]
        %v3750 = vld [vmem:[%s7 + $0xa0] sm:$0xff]
        %v3751 = vld [vmem:[%s7 + $0xa8] sm:$0xff]
        %v3752 = vld [vmem:[%s7 + $0xb0] sm:$0xff]
        %v3753 = vld [vmem:[%s7 + $0xb8] sm:$0xff]
        %v3754 = vld [vmem:[%s7 + $0xc0] sm:$0xff]
        %v3755 = vld [vmem:[%s7 + $0xc8] sm:$0xff]
        %v3756 = vld [vmem:[%s7 + $0xd0] sm:$0xff]
        %v3757 = vld [vmem:[%s7 + $0xd8] sm:$0xff]
        %v3758 = vld [vmem:[%s7 + $0xe0] sm:$0xff]
        %v3759 = vld [vmem:[%s7 + $0xe8] sm:$0xff]
        %v3760 = vld [vmem:[%s7 + $0xf0] sm:$0xff]
        %v3761 = vld [vmem:[%s7 + $0xf8] sm:$0xff]
        %v3762 = vld [vmem:[%s7 + $0x100] sm:$0xff]
        %v3763 = vld [vmem:[%s7 + $0x108] sm:$0xff]
        %v3764 = vld [vmem:[%s7 + $0x110] sm:$0xff]
        %v3765 = vld [vmem:[%s7 + $0x118] sm:$0xff]
        %v3766 = vld [vmem:[%s7 + $0x120] sm:$0xff]
        %v3767 = vld [vmem:[%s7 + $0x128] sm:$0xff]
        %v3768 = vld [vmem:[%s7 + $0x130] sm:$0xff]
        %v3769 = vld [vmem:[%s7 + $0x138] sm:$0xff]
        %v3770 = vld [vmem:[%s7 + $0x140] sm:$0xff]
        %v3771 = vld [vmem:[%s7 + $0x148] sm:$0xff]
        %v3772 = vld [vmem:[%s7 + $0x150] sm:$0xff]
        %v3773 = vld [vmem:[%s7 + $0x158] sm:$0xff]
        %v3774 = vld [vmem:[%s7 + $0x160] sm:$0xff]
        %v3775 = vld [vmem:[%s7 + $0x168] sm:$0xff]
        %v3776 = vld [vmem:[%s7 + $0x170] sm:$0xff]
        %v3777 = vld [vmem:[%s7 + $0x178] sm:$0xff]
        %v3778 = vld [vmem:[%s8] sm:$0x3]
        %v3827 = vunpack.c.l.b16 %v3730
        %v3828 = vunpack.c.h.b16 %v3730
        %v3829 = vunpack.c.l.b16 %v3731
        %v3830 = vunpack.c.h.b16 %v3731
        %v3831 = vunpack.c.l.b16 %v3732
        %v3832 = vunpack.c.h.b16 %v3732
        %v3833 = vunpack.c.l.b16 %v3733
        %v3834 = vunpack.c.h.b16 %v3733
        %v3835 = vunpack.c.l.b16 %v3734
        %v3836 = vunpack.c.h.b16 %v3734
        %v3837 = vunpack.c.l.b16 %v3735
        %v3838 = vunpack.c.h.b16 %v3735
        %v3839 = vunpack.c.l.b16 %v3736
        %v3840 = vunpack.c.h.b16 %v3736
        %v3841 = vunpack.c.l.b16 %v3737
        %v3842 = vunpack.c.h.b16 %v3737
        %v3843 = vunpack.c.l.b16 %v3738
        %v3844 = vunpack.c.h.b16 %v3738
        %v3845 = vunpack.c.l.b16 %v3739
        %v3846 = vunpack.c.h.b16 %v3739
        %v3847 = vunpack.c.l.b16 %v3740
        %v3848 = vunpack.c.h.b16 %v3740
        %v3849 = vunpack.c.l.b16 %v3741
        %v3850 = vunpack.c.h.b16 %v3741
        %v3851 = vunpack.c.l.b16 %v3742
        %v3852 = vunpack.c.h.b16 %v3742
        %v3853 = vunpack.c.l.b16 %v3743
        %v3854 = vunpack.c.h.b16 %v3743
        %v3855 = vunpack.c.l.b16 %v3744
        %v3856 = vunpack.c.h.b16 %v3744
        %v3857 = vunpack.c.l.b16 %v3745
        %v3858 = vunpack.c.h.b16 %v3745
        %v3859 = vunpack.c.l.b16 %v3746
        %v3860 = vunpack.c.h.b16 %v3746
        %v3861 = vunpack.c.l.b16 %v3747
        %v3862 = vunpack.c.h.b16 %v3747
        %v3863 = vunpack.c.l.b16 %v3748
        %v3864 = vunpack.c.h.b16 %v3748
        %v3865 = vunpack.c.l.b16 %v3749
        %v3866 = vunpack.c.h.b16 %v3749
        %v3867 = vunpack.c.l.b16 %v3750
        %v3868 = vunpack.c.h.b16 %v3750
        %v3869 = vunpack.c.l.b16 %v3751
        %v3870 = vunpack.c.h.b16 %v3751
        %v3871 = vunpack.c.l.b16 %v3752
        %v3872 = vunpack.c.h.b16 %v3752
        %v3873 = vunpack.c.l.b16 %v3753
        %v3874 = vunpack.c.h.b16 %v3753
        %v3875 = vunpack.c.l.b16 %v3754
        %v3876 = vunpack.c.h.b16 %v3754
        %v3877 = vunpack.c.l.b16 %v3755
        %v3878 = vunpack.c.h.b16 %v3755
        %v3879 = vunpack.c.l.b16 %v3756
        %v3880 = vunpack.c.h.b16 %v3756
        %v3881 = vunpack.c.l.b16 %v3757
        %v3882 = vunpack.c.h.b16 %v3757
        %v3883 = vunpack.c.l.b16 %v3758
        %v3884 = vunpack.c.h.b16 %v3758
        %v3885 = vunpack.c.l.b16 %v3759
        %v3886 = vunpack.c.h.b16 %v3759
        %v3887 = vunpack.c.l.b16 %v3760
        %v3888 = vunpack.c.h.b16 %v3760
        %v3889 = vunpack.c.l.b16 %v3761
        %v3890 = vunpack.c.h.b16 %v3761
        %v3891 = vunpack.c.l.b16 %v3762
        %v3892 = vunpack.c.h.b16 %v3762
        %v3893 = vunpack.c.l.b16 %v3763
        %v3894 = vunpack.c.h.b16 %v3763
        %v3895 = vunpack.c.l.b16 %v3764
        %v3896 = vunpack.c.h.b16 %v3764
        %v3897 = vunpack.c.l.b16 %v3765
        %v3898 = vunpack.c.h.b16 %v3765
        %v3899 = vunpack.c.l.b16 %v3766
        %v3900 = vunpack.c.h.b16 %v3766
        %v3901 = vunpack.c.l.b16 %v3767
        %v3902 = vunpack.c.h.b16 %v3767
        %v3903 = vunpack.c.l.b16 %v3768
        %v3904 = vunpack.c.h.b16 %v3768
        %v3905 = vunpack.c.l.b16 %v3769
        %v3906 = vunpack.c.h.b16 %v3769
        %v3907 = vunpack.c.l.b16 %v3770
        %v3908 = vunpack.c.h.b16 %v3770
        %v3909 = vunpack.c.l.b16 %v3771
        %v3910 = vunpack.c.h.b16 %v3771
        %v3911 = vunpack.c.l.b16 %v3772
        %v3912 = vunpack.c.h.b16 %v3772
        %v3913 = vunpack.c.l.b16 %v3773
        %v3914 = vunpack.c.h.b16 %v3773
        %v3915 = vunpack.c.l.b16 %v3774
        %v3916 = vunpack.c.h.b16 %v3774
        %v3917 = vunpack.c.l.b16 %v3775
        %v3918 = vunpack.c.h.b16 %v3775
        %v3919 = vunpack.c.l.b16 %v3776
        %v3920 = vunpack.c.h.b16 %v3776
        %v3921 = vunpack.c.l.b16 %v3777
        %v3922 = vunpack.c.h.b16 %v3777
        %v3923 = vpack.c.b16 %v3829, %v3827
        %v3924 = vpack.c.b16 %v3830, %v3828
        %v3925 = vpack.c.b16 %v3833, %v3831
        %v3926 = vpack.c.b16 %v3834, %v3832
        %v3927 = vpack.c.b16 %v3837, %v3835
        %v3928 = vpack.c.b16 %v3838, %v3836
        %v3929 = vpack.c.b16 %v3841, %v3839
        %v3930 = vpack.c.b16 %v3842, %v3840
        %v3931 = vpack.c.b16 %v3845, %v3843
        %v3932 = vpack.c.b16 %v3846, %v3844
        %v3933 = vpack.c.b16 %v3849, %v3847
        %v3934 = vpack.c.b16 %v3850, %v3848
        %v3935 = vpack.c.b16 %v3853, %v3851
        %v3936 = vpack.c.b16 %v3854, %v3852
        %v3937 = vpack.c.b16 %v3857, %v3855
        %v3938 = vpack.c.b16 %v3858, %v3856
        %v3939 = vpack.c.b16 %v3861, %v3859
        %v3940 = vpack.c.b16 %v3862, %v3860
        %v3941 = vpack.c.b16 %v3865, %v3863
        %v3942 = vpack.c.b16 %v3866, %v3864
        %v3943 = vpack.c.b16 %v3869, %v3867
        %v3944 = vpack.c.b16 %v3870, %v3868
        %v3945 = vpack.c.b16 %v3873, %v3871
        %v3946 = vpack.c.b16 %v3874, %v3872
        %v3947 = vpack.c.b16 %v3877, %v3875
        %v3948 = vpack.c.b16 %v3878, %v3876
        %v3949 = vpack.c.b16 %v3881, %v3879
        %v3950 = vpack.c.b16 %v3882, %v3880
        %v3951 = vpack.c.b16 %v3885, %v3883
        %v3952 = vpack.c.b16 %v3886, %v3884
        %v3953 = vpack.c.b16 %v3889, %v3887
        %v3954 = vpack.c.b16 %v3890, %v3888
        %v3955 = vpack.c.b16 %v3893, %v3891
        %v3956 = vpack.c.b16 %v3894, %v3892
        %v3957 = vpack.c.b16 %v3897, %v3895
        %v3958 = vpack.c.b16 %v3898, %v3896
        %v3959 = vpack.c.b16 %v3901, %v3899
        %v3960 = vpack.c.b16 %v3902, %v3900
        %v3961 = vpack.c.b16 %v3905, %v3903
        %v3962 = vpack.c.b16 %v3906, %v3904
        %v3963 = vpack.c.b16 %v3909, %v3907
        %v3964 = vpack.c.b16 %v3910, %v3908
        %v3965 = vpack.c.b16 %v3913, %v3911
        %v3966 = vpack.c.b16 %v3914, %v3912
        %v3967 = vpack.c.b16 %v3917, %v3915
        %v3968 = vpack.c.b16 %v3918, %v3916
        %v3969 = vpack.c.b16 %v3921, %v3919
        %v3970 = vpack.c.b16 %v3922, %v3920
        %v4020 = vperm.slane %v3778, 0
        %v4021 = vperm.slane %v3778, 1
        %4024 = vmatpush.bf16.msra.mxu0 %v3937
        %4025 = vmatpush.bf16.msra.mxu0 %v3935
        %4026 = vmatpush.bf16.msra.mxu0 %v3933
        %4027 = vmatpush.bf16.msra.mxu0 %v3931
        %4028 = vmatpush.bf16.msra.mxu0 %v3929
        %4029 = vmatpush.bf16.msra.mxu0 %v3927
        %4030 = vmatpush.bf16.msra.mxu0 %v3925
        %4031 = vmatpush.bf16.msra.mxu0 %v3923
        %4032 = vmatmul.bf16.gmra.mxu0 %v3727
        %v4033 = vpop.f32.mrf.mxu0
        %v4034 = vadd.f32 %v4020, %v4033
        %v4035 = vpop.f32.mrf.mxu0
        %4036 = vdwg.mxu0
        %4037 = vmatpush.bf16.msra.mxu0 %v3953
        %4038 = vmatpush.bf16.msra.mxu0 %v3951
        %4039 = vmatpush.bf16.msra.mxu0 %v3949
        %4040 = vmatpush.bf16.msra.mxu0 %v3947
        %4041 = vmatpush.bf16.msra.mxu0 %v3945
        %4042 = vmatpush.bf16.msra.mxu0 %v3943
        %4043 = vmatpush.bf16.msra.mxu0 %v3941
        %4044 = vmatpush.bf16.msra.mxu0 %v3939
        %4045 = vmatmul.bf16.gmra.mxu0 %v3728
        %v4046 = vpop.f32.mrf.mxu0
        %v4047 = vadd.f32 %v4034, %v4046
        %v4048 = vpop.f32.mrf.mxu0
        %4049 = vdwg.mxu0
        %4050 = vmatpush.bf16.msra.mxu0 %v3969
        %4051 = vmatpush.bf16.msra.mxu0 %v3967
        %4052 = vmatpush.bf16.msra.mxu0 %v3965
        %4053 = vmatpush.bf16.msra.mxu0 %v3963
        %4054 = vmatpush.bf16.msra.mxu0 %v3961
        %4055 = vmatpush.bf16.msra.mxu0 %v3959
        %4056 = vmatpush.bf16.msra.mxu0 %v3957
        %4057 = vmatpush.bf16.msra.mxu0 %v3955
        %4058 = vmatmul.bf16.gmra.mxu0 %v3729
        %v4059 = vpop.f32.mrf.mxu0
        %v4060 = vadd.f32 %v4047, %v4059
        %v4061 = vpop.f32.mrf.mxu0
        %4062 = vdwg.mxu0
        %4063 = vmatpush.bf16.msra.mxu0 %v3938
        %4064 = vmatpush.bf16.msra.mxu0 %v3936
        %4065 = vmatpush.bf16.msra.mxu0 %v3934
        %4066 = vmatpush.bf16.msra.mxu0 %v3932
        %4067 = vmatpush.bf16.msra.mxu0 %v3930
        %4068 = vmatpush.bf16.msra.mxu0 %v3928
        %4069 = vmatpush.bf16.msra.mxu0 %v3926
        %4070 = vmatpush.bf16.msra.mxu0 %v3924
        %4071 = vmatmul.bf16.gmra.mxu0 %v3727
        %v4072 = vpop.f32.mrf.mxu0
        %v4073 = vadd.f32 %v4021, %v4072
        %v4074 = vpop.f32.mrf.mxu0
        %4075 = vdwg.mxu0
        %4076 = vmatpush.bf16.msra.mxu0 %v3954
        %4077 = vmatpush.bf16.msra.mxu0 %v3952
        %4078 = vmatpush.bf16.msra.mxu0 %v3950
        %4079 = vmatpush.bf16.msra.mxu0 %v3948
        %4080 = vmatpush.bf16.msra.mxu0 %v3946
        %4081 = vmatpush.bf16.msra.mxu0 %v3944
        %4082 = vmatpush.bf16.msra.mxu0 %v3942
        %4083 = vmatpush.bf16.msra.mxu0 %v3940
        %4084 = vmatmul.bf16.gmra.mxu0 %v3728
        %v4085 = vpop.f32.mrf.mxu0
        %v4086 = vadd.f32 %v4073, %v4085
        %v4087 = vpop.f32.mrf.mxu0
        %4088 = vdwg.mxu0
        %4089 = vmatpush.bf16.msra.mxu0 %v3970
        %4090 = vmatpush.bf16.msra.mxu0 %v3968
        %4091 = vmatpush.bf16.msra.mxu0 %v3966
        %4092 = vmatpush.bf16.msra.mxu0 %v3964
        %4093 = vmatpush.bf16.msra.mxu0 %v3962
        %4094 = vmatpush.bf16.msra.mxu0 %v3960
        %4095 = vmatpush.bf16.msra.mxu0 %v3958
        %4096 = vmatpush.bf16.msra.mxu0 %v3956
        %4097 = vmatmul.bf16.gmra.mxu0 %v3729
        %v4098 = vpop.f32.mrf.mxu0
        %v4099 = vadd.f32 %v4086, %v4098
        %v4100 = vpop.f32.mrf.mxu0
        %4101 = vdwg.mxu0
        %v4102 = vmax.f32 %v4060, 0.0
        %v4103 = vmax.f32 %v4099, 0.0
        %v4104 = vpack.c.bf16 %v4102, %v4102
        %v4105 = vpack.c.bf16 %v4103, %v4103
        %v4106 = vld [vmem:[%s9] sm:$0xf]
        %v4107 = vld [vmem:[%s9 + $0x4] sm:$0xf]
        %v4108 = vld [vmem:[%s9 + $0x8] sm:$0xf]
        %v4109 = vld [vmem:[%s9 + $0xc] sm:$0xf]
        %v4110 = vld [vmem:[%s9 + $0x10] sm:$0xf]
        %v4111 = vld [vmem:[%s9 + $0x14] sm:$0xf]
        %v4112 = vld [vmem:[%s9 + $0x18] sm:$0xf]
        %v4113 = vld [vmem:[%s9 + $0x1c] sm:$0xf]
        %v4114 = vld [vmem:[%s9 + $0x20] sm:$0xf]
        %v4115 = vld [vmem:[%s9 + $0x24] sm:$0xf]
        %v4116 = vld [vmem:[%s9 + $0x28] sm:$0xf]
        %v4117 = vld [vmem:[%s9 + $0x2c] sm:$0xf]
        %v4118 = vld [vmem:[%s9 + $0x30] sm:$0xf]
        %v4119 = vld [vmem:[%s9 + $0x34] sm:$0xf]
        %v4120 = vld [vmem:[%s9 + $0x38] sm:$0xf]
        %v4121 = vld [vmem:[%s9 + $0x3c] sm:$0xf]
        %v4122 = vld [vmem:[%s9 + $0x40] sm:$0xf]
        %v4123 = vld [vmem:[%s9 + $0x44] sm:$0xf]
        %v4124 = vld [vmem:[%s9 + $0x48] sm:$0xf]
        %v4125 = vld [vmem:[%s9 + $0x4c] sm:$0xf]
        %v4126 = vld [vmem:[%s9 + $0x50] sm:$0xf]
        %v4127 = vld [vmem:[%s9 + $0x54] sm:$0xf]
        %v4128 = vld [vmem:[%s9 + $0x58] sm:$0xf]
        %v4129 = vld [vmem:[%s9 + $0x5c] sm:$0xf]
        %v4130 = vld [vmem:[%s9 + $0x60] sm:$0xf]
        %v4131 = vld [vmem:[%s9 + $0x64] sm:$0xf]
        %v4132 = vld [vmem:[%s9 + $0x68] sm:$0xf]
        %v4133 = vld [vmem:[%s9 + $0x6c] sm:$0xf]
        %v4134 = vld [vmem:[%s9 + $0x70] sm:$0xf]
        %v4135 = vld [vmem:[%s9 + $0x74] sm:$0xf]
        %v4136 = vld [vmem:[%s9 + $0x78] sm:$0xf]
        %v4137 = vld [vmem:[%s9 + $0x7c] sm:$0xf]
        %v4138 = vld [vmem:[%s10] sm:$0x1]
        %v4171 = vunpack.c.l.b16 %v4106
        %v4172 = vunpack.c.l.b16 %v4107
        %v4173 = vunpack.c.l.b16 %v4108
        %v4174 = vunpack.c.l.b16 %v4109
        %v4175 = vunpack.c.l.b16 %v4110
        %v4176 = vunpack.c.l.b16 %v4111
        %v4177 = vunpack.c.l.b16 %v4112
        %v4178 = vunpack.c.l.b16 %v4113
        %v4179 = vunpack.c.l.b16 %v4114
        %v4180 = vunpack.c.l.b16 %v4115
        %v4181 = vunpack.c.l.b16 %v4116
        %v4182 = vunpack.c.l.b16 %v4117
        %v4183 = vunpack.c.l.b16 %v4118
        %v4184 = vunpack.c.l.b16 %v4119
        %v4185 = vunpack.c.l.b16 %v4120
        %v4186 = vunpack.c.l.b16 %v4121
        %v4187 = vunpack.c.l.b16 %v4122
        %v4188 = vunpack.c.l.b16 %v4123
        %v4189 = vunpack.c.l.b16 %v4124
        %v4190 = vunpack.c.l.b16 %v4125
        %v4191 = vunpack.c.l.b16 %v4126
        %v4192 = vunpack.c.l.b16 %v4127
        %v4193 = vunpack.c.l.b16 %v4128
        %v4194 = vunpack.c.l.b16 %v4129
        %v4195 = vunpack.c.l.b16 %v4130
        %v4196 = vunpack.c.l.b16 %v4131
        %v4197 = vunpack.c.l.b16 %v4132
        %v4198 = vunpack.c.l.b16 %v4133
        %v4199 = vunpack.c.l.b16 %v4134
        %v4200 = vunpack.c.l.b16 %v4135
        %v4201 = vunpack.c.l.b16 %v4136
        %v4202 = vunpack.c.l.b16 %v4137
        %v4203 = vpack.c.b16 %v4172, %v4171
        %v4204 = vpack.c.b16 %v4174, %v4173
        %v4205 = vpack.c.b16 %v4176, %v4175
        %v4206 = vpack.c.b16 %v4178, %v4177
        %v4207 = vpack.c.b16 %v4180, %v4179
        %v4208 = vpack.c.b16 %v4182, %v4181
        %v4209 = vpack.c.b16 %v4184, %v4183
        %v4210 = vpack.c.b16 %v4186, %v4185
        %v4211 = vpack.c.b16 %v4188, %v4187
        %v4212 = vpack.c.b16 %v4190, %v4189
        %v4213 = vpack.c.b16 %v4192, %v4191
        %v4214 = vpack.c.b16 %v4194, %v4193
        %v4215 = vpack.c.b16 %v4196, %v4195
        %v4216 = vpack.c.b16 %v4198, %v4197
        %v4217 = vpack.c.b16 %v4200, %v4199
        %v4218 = vpack.c.b16 %v4202, %v4201
        %4235 = vmatpush.bf16.msra.mxu0 %v4210
        %4236 = vmatpush.bf16.msra.mxu0 %v4209
        %4237 = vmatpush.bf16.msra.mxu0 %v4208
        %4238 = vmatpush.bf16.msra.mxu0 %v4207
        %4239 = vmatpush.bf16.msra.mxu0 %v4206
        %4240 = vmatpush.bf16.msra.mxu0 %v4205
        %4241 = vmatpush.bf16.msra.mxu0 %v4204
        %4242 = vmatpush.bf16.msra.mxu0 %v4203
        %4243 = vmatmul.bf16.gmra.mxu0 %v4104
        %v4244 = vpop.f32.mrf.mxu0
        %v4245 = vadd.f32 %v4138, %v4244
        %v4246 = vpop.f32.mrf.mxu0
        %4247 = vdwg.mxu0
        %4248 = vmatpush.bf16.msra.mxu0 %v4218
        %4249 = vmatpush.bf16.msra.mxu0 %v4217
        %4250 = vmatpush.bf16.msra.mxu0 %v4216
        %4251 = vmatpush.bf16.msra.mxu0 %v4215
        %4252 = vmatpush.bf16.msra.mxu0 %v4214
        %4253 = vmatpush.bf16.msra.mxu0 %v4213
        %4254 = vmatpush.bf16.msra.mxu0 %v4212
        %4255 = vmatpush.bf16.msra.mxu0 %v4211
        %4256 = vmatmul.bf16.gmra.mxu0 %v4105
        %v4257 = vpop.f32.mrf.mxu0
        %v4258 = vadd.f32 %v4245, %v4257
        %v4259 = vpop.f32.mrf.mxu0
        %4260 = vdwg.mxu0
        %4261 = vst [vmem:[%s378] sm:$0x1] %v4258
        %s4262 = sand.u32 %s269, 1
        %s4263 = scalar_lea.sflag [#allocation3], %s4262
        %s4264 = sand.u32 %s269, 1
        %s4265 = scalar_lea.vmem [#allocation2], %s4264
        // Predicated region
        $region65: #{cifar10_forward.1} parent=63 // pred_check
          %p4266 = pneg %p279
        $region66: #{cifar10_forward.1} parent=63 // pred_check_branch
          %4268 = sbr.rel (%p4266) target = $region68
        $region67: #{cifar10_forward.1} parent=63 // pred_region
          %4270 = vsyncadd %s4263, 0
          %s4271 = scalar_lea.hbm %s11, %s25
          %s4273 = sshll.u32 %s4265, 4
          %s4274 = int_to_ptr.vmem [resolvable:$true] %s4273
          %s4275 = sshll.u32 %s4271, 4
          %s4276 = int_to_ptr.hbm [resolvable:$true] %s4275
          %4278 = dma.vmem_to_hbm [thread:$0]  %s4274, 16, %s4276, %s4263
        $region68: #{cifar10_forward.1} parent=63 // pred_fallthru
          _
      $region64: #{cifar10_forward.1} parent=5 // pred_fallthru
        _
      %p4279 = scmp.le.s32.totalorder 2, %s20
      // Predicated region
      $region69: #{cifar10_forward.1} parent=5 // pred_check
        %p4280 = pneg %p4279
      $region70: #{cifar10_forward.1} parent=5 // pred_check_branch
        %4282 = sbr.rel (%p4280) target = $region72
      $region71: #{cifar10_forward.1} parent=5 // pred_region
        %s4283 = ssub.s32 %s20, 2
        // Predicated region
        $region73: #{cifar10_forward.1} parent=71 // pred_check
          %p4284 = pneg %p285
        $region74: #{cifar10_forward.1} parent=71 // pred_check_branch
          %4286 = sbr.rel (%p4284) target = $region76
        $region75: #{cifar10_forward.1} parent=71 // pred_region
          %s4287 = sand.u32 %s270, 1
          %s4288 = scalar_lea.sflag [#allocation3], %s4287
          %s4289 = sand.u32 %s270, 1
          %s4290 = scalar_lea.vmem [#allocation2], %s4289
          %4292 = dma.done %s4288, 16
        $region76: #{cifar10_forward.1} parent=71 // pred_fallthru
          _
      $region72: #{cifar10_forward.1} parent=5 // pred_fallthru
        _
    $region6: #{cifar10_forward.1} parent=1 // loop_footer
      %s24 = sadd.s32 1, %s20
    $region7: #{cifar10_forward.1} parent=1 // loop_footer_branch
      %19 = sbr.rel target = $region3
    $region8: #{cifar10_forward.1} parent=1 // loop_exit
      _
    %4293 = vsyncpa [#allocation3], 1
    %s4294 = scalar_lea.sflag [#allocation3], 1
    %4295 = vsyncpa %s4294, 1

</llo_original>
